<compile_context>
chip_gen: v6e
topology: v6e:2x2x1
jax: 0.10.0
libtpu: 0.0.40
codegen_flags: <defaults>
</compile_context>

<pallas_src>
import functools

import jax
import jax.numpy as jnp
from jax import lax
from jax.experimental import pallas as pl
from jax.experimental.pallas import tpu as pltpu

# ----------------------------- config ---------------------------------------
VOCAB = 1000
TYPE_VOCAB = 2
MAX_POS = 64
HIDDEN = 128          # scaled down from 768 (bert-base) for the synthetic test
NUM_HEADS = 2
HEAD_DIM = HIDDEN // NUM_HEADS
INTERMEDIATE = 4 * HIDDEN
NUM_LAYERS = 2        # scaled down from 12
NUM_LABELS = 4
LOGIT_PAD = 128       # lane-dense classifier output, sliced to NUM_LABELS outside
LN_EPS = 1e-12
MASK_NEG = -1e9


# --------------------------- in-kernel helpers -------------------------------
def _layernorm(x, g, b):
    mean = jnp.mean(x, axis=-1, keepdims=True)
    xc = x - mean
    var = jnp.mean(xc * xc, axis=-1, keepdims=True)
    return xc * lax.rsqrt(var + LN_EPS) * g + b


def _gelu(x):
    # tanh-approximation of GELU (HF uses exact erf GELU; numerically close)
    return 0.5 * x * (1.0 + jnp.tanh(
        0.7978845608028654 * (x + 0.044715 * x * x * x)))


# ------------------------------ fused kernel ---------------------------------
def _bert_kernel(emb_ref, mask_ref, emb_g_ref, emb_b_ref,
                 wqkv_ref, bqkv_ref, wo_ref, bo_ref, ln1g_ref, ln1b_ref,
                 wi_ref, bi_ref, wo2_ref, bo2_ref, ln2g_ref, ln2b_ref,
                 poolw_ref, poolb_ref, clsw_ref, clsb_ref,
                 out_ref, x_sc, *, batch, seq):
    layer = pl.program_id(0)
    n_layers = pl.num_programs(0)
    H, nH, Dh = HIDDEN, NUM_HEADS, HEAD_DIM
    scale = 1.0 / (Dh ** 0.5)

    # ---- layer 0: embedding LayerNorm (no residual) into the resident state ----
    @pl.when(layer == 0)
    def _():
        x_sc[...] = _layernorm(emb_ref[...], emb_g_ref[...], emb_b_ref[...])

    x = x_sc[...]                           # (B*S, H) f32, carried across layers
    xb = x.astype(jnp.bfloat16)

    # ---- fused QKV projection: one (H, 3H) matmul ----
    qkv = jnp.dot(xb, wqkv_ref[0],
                  preferred_element_type=jnp.float32) + bqkv_ref[0]
    q = qkv[:, 0 * H:1 * H]
    k = qkv[:, 1 * H:2 * H]
    v = qkv[:, 2 * H:3 * H]

    # ---- attention: static loops over batch & head, all in VMEM/vregs ----
    ctx_rows = []
    for b in range(batch):
        r0, r1 = b * seq, (b + 1) * seq
        m_b = mask_ref[b:b + 1, :]                      # (1, S) additive mask
        head_pieces = []
        for h in range(nH):
            c0, c1 = h * Dh, (h + 1) * Dh
            qh = q[r0:r1, c0:c1]                        # (S, Dh)
            kh = k[r0:r1, c0:c1]
            vh = v[r0:r1, c0:c1]
            s = lax.dot_general(qh, kh, (((1,), (1,)), ((), ())),
                                preferred_element_type=jnp.float32) * scale
            s = s + m_b                                 # broadcast over query rows
            s_max = jnp.max(s, axis=-1, keepdims=True)
            p = jnp.exp(s - s_max)
            p = p * pl.reciprocal(jnp.sum(p, axis=-1, keepdims=True), approx=True)
            head_pieces.append(
                jnp.dot(p, vh, preferred_element_type=jnp.float32))
        ctx_rows.append(jnp.concatenate(head_pieces, axis=1))   # (S, H)
    ctx = jnp.concatenate(ctx_rows, axis=0)                     # (B*S, H)

    # ---- output projection + residual + LayerNorm (fused) ----
    attn = jnp.dot(ctx.astype(jnp.bfloat16), wo_ref[0],
                   preferred_element_type=jnp.float32) + bo_ref[0]
    x = _layernorm(attn + x, ln1g_ref[0], ln1b_ref[0])

    # ---- feed-forward: in-proj + GELU + out-proj + residual + LayerNorm ----
    h1 = _gelu(jnp.dot(x.astype(jnp.bfloat16), wi_ref[0],
                       preferred_element_type=jnp.float32) + bi_ref[0])
    h2 = jnp.dot(h1.astype(jnp.bfloat16), wo2_ref[0],
                 preferred_element_type=jnp.float32) + bo2_ref[0]
    x = _layernorm(h2 + x, ln2g_ref[0], ln2b_ref[0])
    x_sc[...] = x

    # ---- last layer: pool only the [CLS] rows (tanh) + classifier ----
    # Output is a single lane-dense (B, 128) tile; wrapper slices NUM_LABELS.
    @pl.when(layer == n_layers - 1)
    def _():
        cls_rows = jnp.concatenate(
            [x[b * seq:b * seq + 1, :] for b in range(batch)], axis=0)  # (B, H)
        pooled = jnp.tanh(
            jnp.dot(cls_rows.astype(jnp.bfloat16), poolw_ref[...],
                    preferred_element_type=jnp.float32) + poolb_ref[...])
        # TODO(synk): Dropout(0.3) between pooler and classifier omitted (eval).
        out_ref[...] = (jnp.dot(pooled.astype(jnp.bfloat16), clsw_ref[...],
                                preferred_element_type=jnp.float32)
                        + clsb_ref[...])


# --------------------------- parameter init ----------------------------------
def _normal(key, shape, std=0.02, dtype=jnp.float32):
    return (std * jax.random.normal(key, shape)).astype(dtype)


def init_params(key):
    ks = iter(jax.random.split(key, 16))
    f32, bf16 = jnp.float32, jnp.bfloat16
    H, I, L = HIDDEN, INTERMEDIATE, NUM_LAYERS

    cls_w = _normal(next(ks), (H, NUM_LABELS))
    cls_w_pad = jnp.zeros((H, LOGIT_PAD), f32).at[:, :NUM_LABELS].set(cls_w)

    return {
        # embeddings (gathered in XLA glue, f32)
        "word_emb": _normal(next(ks), (VOCAB, H)),
        "pos_emb": _normal(next(ks), (MAX_POS, H)),
        "type_emb": _normal(next(ks), (TYPE_VOCAB, H)),
        "emb_ln_g": jnp.ones((1, H), f32),
        "emb_ln_b": jnp.zeros((1, H), f32),
        # per-layer weights stacked along a leading L axis, bf16 for the MXU
        "wqkv": _normal(next(ks), (L, H, 3 * H), dtype=bf16),
        "bqkv": jnp.zeros((L, 1, 3 * H), f32),
        "wo": _normal(next(ks), (L, H, H), dtype=bf16),
        "bo": jnp.zeros((L, 1, H), f32),
        "ln1_g": jnp.ones((L, 1, H), f32),
        "ln1_b": jnp.zeros((L, 1, H), f32),
        "wi": _normal(next(ks), (L, H, I), dtype=bf16),
        "bi": jnp.zeros((L, 1, I), f32),
        "wo2": _normal(next(ks), (L, I, H), dtype=bf16),
        "bo2": jnp.zeros((L, 1, H), f32),
        "ln2_g": jnp.ones((L, 1, H), f32),
        "ln2_b": jnp.zeros((L, 1, H), f32),
        # pooler + classifier (classifier padded lane-dense to 128)
        "pool_w": _normal(next(ks), (H, H), dtype=bf16),
        "pool_b": jnp.zeros((1, H), f32),
        "cls_w": cls_w_pad.astype(bf16),
        "cls_b": jnp.zeros((1, LOGIT_PAD), f32),
    }


# ------------------------------ forward --------------------------------------
def bert_class_forward(params, ids, mask, token_type_ids):
    B, S = ids.shape
    M, H, L = B * S, HIDDEN, NUM_LAYERS

    # Embedding gathers stay in XLA (glue); sum done here, LN inside the kernel.
    emb = (jnp.take(params["word_emb"], ids, axis=0)
           + params["pos_emb"][:S][None, :, :]
           + jnp.take(params["type_emb"], token_type_ids, axis=0)
           ).reshape(M, H).astype(jnp.float32)
    # TODO(synk): embedding / hidden-state dropout (p=0.1) omitted — inference.

    # HF-style additive attention mask, kept as a tiny (B, S) block.
    mask_add = (1.0 - mask.astype(jnp.float32)) * MASK_NEG

    full2d = lambda a, b: pl.BlockSpec((a, b), lambda l: (0, 0))
    stack3d = lambda a, b: pl.BlockSpec((1, a, b), lambda l: (l, 0, 0))

    out = pl.pallas_call(
        functools.partial(_bert_kernel, batch=B, seq=S),
        out_shape=jax.ShapeDtypeStruct((B, LOGIT_PAD), jnp.float32),
        grid_spec=pltpu.PrefetchScalarGridSpec(
            num_scalar_prefetch=0,
            grid=(L,),
            in_specs=[
                full2d(M, H),                            # emb (sum of 3 tables)
                full2d(B, S),                            # additive mask
                full2d(1, H), full2d(1, H),              # emb LN gamma/beta
                stack3d(H, 3 * H), stack3d(1, 3 * H),    # wqkv, bqkv
                stack3d(H, H), stack3d(1, H),            # wo, bo
                stack3d(1, H), stack3d(1, H),            # ln1 g/b
                stack3d(H, INTERMEDIATE), stack3d(1, INTERMEDIATE),  # wi, bi
                stack3d(INTERMEDIATE, H), stack3d(1, H),             # wo2, bo2
                stack3d(1, H), stack3d(1, H),            # ln2 g/b
                full2d(H, H), full2d(1, H),              # pooler w/b
                full2d(H, LOGIT_PAD), full2d(1, LOGIT_PAD),  # classifier (padded)
            ],
            out_specs=pl.BlockSpec((B, LOGIT_PAD), lambda l: (0, 0)),
            scratch_shapes=[pltpu.VMEM((M, H), jnp.float32)],   # resident state
        ),
        compiler_params=pltpu.CompilerParams(
            dimension_semantics=("arbitrary",)),         # layer axis is sequential
    )(emb, mask_add,
      params["emb_ln_g"], params["emb_ln_b"],
      params["wqkv"], params["bqkv"], params["wo"], params["bo"],
      params["ln1_g"], params["ln1_b"],
      params["wi"], params["bi"], params["wo2"], params["bo2"],
      params["ln2_g"], params["ln2_b"],
      params["pool_w"], params["pool_b"],
      params["cls_w"], params["cls_b"])

    # Un-pad the lane-dense classifier output ([CLS] rows already selected in-kernel).
    return out[:, :NUM_LABELS]


# -------------------------------- main ----------------------------------------
if __name__ == "__main__":
    B, S = 2, 8
    key = jax.random.PRNGKey(0)
    k_ids, k_params = jax.random.split(key)

    ids = jax.random.randint(k_ids, (B, S), 0, VOCAB, dtype=jnp.int32)
    mask = jnp.ones((B, S), jnp.int32).at[1, 6:].set(0)        # pad last 2 of row 1
    token_type_ids = jnp.concatenate(
        [jnp.zeros((B, S // 2), jnp.int32), jnp.ones((B, S // 2), jnp.int32)],
        axis=1)

    params = init_params(k_params)
    logits = jax.jit(bert_class_forward)(params, ids, mask, token_type_ids)
    logits = jax.block_until_ready(logits)

    assert logits.shape == (B, NUM_LABELS), logits.shape
    assert logits.dtype == jnp.float32
    assert bool(jnp.all(jnp.isfinite(logits)))
    print("KERNEL_OK")
</pallas_src>

<mosaic_0001>
module attributes {stable_mosaic.version = 11 : i64} {
  func.func @_bert_kernel(%arg0: i32, %arg1: memref<16x128xf32, #tpu.memory_space<vmem>>, %arg2: memref<2x8xf32, #tpu.memory_space<vmem>>, %arg3: memref<1x128xf32, #tpu.memory_space<vmem>>, %arg4: memref<1x128xf32, #tpu.memory_space<vmem>>, %arg5: memref<1x128x384xbf16, #tpu.memory_space<vmem>>, %arg6: memref<1x1x384xf32, #tpu.memory_space<vmem>>, %arg7: memref<1x128x128xbf16, #tpu.memory_space<vmem>>, %arg8: memref<1x1x128xf32, #tpu.memory_space<vmem>>, %arg9: memref<1x1x128xf32, #tpu.memory_space<vmem>>, %arg10: memref<1x1x128xf32, #tpu.memory_space<vmem>>, %arg11: memref<1x128x512xbf16, #tpu.memory_space<vmem>>, %arg12: memref<1x1x512xf32, #tpu.memory_space<vmem>>, %arg13: memref<1x512x128xbf16, #tpu.memory_space<vmem>>, %arg14: memref<1x1x128xf32, #tpu.memory_space<vmem>>, %arg15: memref<1x1x128xf32, #tpu.memory_space<vmem>>, %arg16: memref<1x1x128xf32, #tpu.memory_space<vmem>>, %arg17: memref<128x128xbf16, #tpu.memory_space<vmem>>, %arg18: memref<1x128xf32, #tpu.memory_space<vmem>>, %arg19: memref<128x128xbf16, #tpu.memory_space<vmem>>, %arg20: memref<1x128xf32, #tpu.memory_space<vmem>>, %arg21: memref<2x128xf32, #tpu.memory_space<vmem>>, %arg22: memref<16x128xf32, #tpu.memory_space<vmem>>) attributes {dimension_semantics = [#tpu.dimension_semantics<arbitrary>], iteration_bounds = array<i64: 2>, scalar_prefetch = 0 : i64, scratch_operands = 1 : i64, tpu.core_type = #tpu.core_type<tc>, window_params = [{pipeline_mode = #tpu.pipeline_mode<synchronous>, transform_indices = @transform_0, window_bounds = array<i64: 16, 128>}, {pipeline_mode = #tpu.pipeline_mode<synchronous>, transform_indices = @transform_1, window_bounds = array<i64: 2, 8>}, {pipeline_mode = #tpu.pipeline_mode<synchronous>, transform_indices = @transform_2, window_bounds = array<i64: 1, 128>}, {pipeline_mode = #tpu.pipeline_mode<synchronous>, transform_indices = @transform_3, window_bounds = array<i64: 1, 128>}, {transform_indices = @transform_4, window_bounds = array<i64: 1, 128, 384>}, {transform_indices = @transform_5, window_bounds = array<i64: 1, 1, 384>}, {transform_indices = @transform_6, window_bounds = array<i64: 1, 128, 128>}, {transform_indices = @transform_7, window_bounds = array<i64: 1, 1, 128>}, {transform_indices = @transform_8, window_bounds = array<i64: 1, 1, 128>}, {transform_indices = @transform_9, window_bounds = array<i64: 1, 1, 128>}, {transform_indices = @transform_10, window_bounds = array<i64: 1, 128, 512>}, {transform_indices = @transform_11, window_bounds = array<i64: 1, 1, 512>}, {transform_indices = @transform_12, window_bounds = array<i64: 1, 512, 128>}, {transform_indices = @transform_13, window_bounds = array<i64: 1, 1, 128>}, {transform_indices = @transform_14, window_bounds = array<i64: 1, 1, 128>}, {transform_indices = @transform_15, window_bounds = array<i64: 1, 1, 128>}, {pipeline_mode = #tpu.pipeline_mode<synchronous>, transform_indices = @transform_16, window_bounds = array<i64: 128, 128>}, {pipeline_mode = #tpu.pipeline_mode<synchronous>, transform_indices = @transform_17, window_bounds = array<i64: 1, 128>}, {pipeline_mode = #tpu.pipeline_mode<synchronous>, transform_indices = @transform_18, window_bounds = array<i64: 128, 128>}, {pipeline_mode = #tpu.pipeline_mode<synchronous>, transform_indices = @transform_19, window_bounds = array<i64: 1, 128>}, {pipeline_mode = #tpu.pipeline_mode<synchronous>, transform_indices = @transform_20, window_bounds = array<i64: 2, 128>}]} {
    %c0_i32 = arith.constant 0 : i32
    %0 = arith.cmpi eq, %arg0, %c0_i32 : i32
    %1 = arith.extui %0 : i1 to i32
    %c0_i32_0 = arith.constant 0 : i32
    %2 = arith.cmpi ne, %1, %c0_i32_0 : i32
    scf.if %2 {
      %c0_81 = arith.constant 0 : index
      %c0_82 = arith.constant 0 : index
      %187 = vector.load %arg1[%c0_81, %c0_82] : memref<16x128xf32, #tpu.memory_space<vmem>>, vector<16x128xf32>
      %c0_83 = arith.constant 0 : index
      %c0_84 = arith.constant 0 : index
      %188 = vector.load %arg3[%c0_83, %c0_84] : memref<1x128xf32, #tpu.memory_space<vmem>>, vector<1x128xf32>
      %c0_85 = arith.constant 0 : index
      %c0_86 = arith.constant 0 : index
      %189 = vector.load %arg4[%c0_85, %c0_86] : memref<1x128xf32, #tpu.memory_space<vmem>>, vector<1x128xf32>
      %cst_87 = arith.constant dense<0.000000e+00> : vector<16xf32>
      %190 = vector.multi_reduction <add>, %187, %cst_87 [1] : vector<16x128xf32> to vector<16xf32>
      %191 = vector.shape_cast %190 : vector<16xf32> to vector<16x1xf32>
      %cst_88 = arith.constant 1.280000e+02 : f32
      %192 = vector.broadcast %cst_88 : f32 to vector<16x1xf32>
      %193 = arith.divf %191, %192 : vector<16x1xf32>
      %194 = vector.broadcast %193 : vector<16x1xf32> to vector<16x128xf32>
      %195 = arith.subf %187, %194 : vector<16x128xf32>
      %196 = arith.mulf %195, %195 : vector<16x128xf32>
      %cst_89 = arith.constant dense<0.000000e+00> : vector<16xf32>
      %197 = vector.multi_reduction <add>, %196, %cst_89 [1] : vector<16x128xf32> to vector<16xf32>
      %198 = vector.shape_cast %197 : vector<16xf32> to vector<16x1xf32>
      %cst_90 = arith.constant 1.280000e+02 : f32
      %199 = vector.broadcast %cst_90 : f32 to vector<16x1xf32>
      %200 = arith.divf %198, %199 : vector<16x1xf32>
      %cst_91 = arith.constant 9.99999996E-13 : f32
      %201 = vector.broadcast %cst_91 : f32 to vector<16x1xf32>
      %202 = arith.addf %200, %201 : vector<16x1xf32>
      %203 = math.rsqrt %202 : vector<16x1xf32>
      %204 = vector.broadcast %203 : vector<16x1xf32> to vector<16x128xf32>
      %205 = arith.mulf %195, %204 : vector<16x128xf32>
      %206 = vector.broadcast %188 : vector<1x128xf32> to vector<16x128xf32>
      %207 = arith.mulf %205, %206 : vector<16x128xf32>
      %208 = vector.broadcast %189 : vector<1x128xf32> to vector<16x128xf32>
      %209 = arith.addf %207, %208 : vector<16x128xf32>
      %c0_92 = arith.constant 0 : index
      %c0_93 = arith.constant 0 : index
      %210 = vector.load %arg22[%c0_92, %c0_93] : memref<16x128xf32, #tpu.memory_space<vmem>>, vector<16x128xf32>
      tpu.vector_store %arg22[%c0_92, %c0_93], %209 {strides = array<i32>} : memref<16x128xf32, #tpu.memory_space<vmem>>, vector<16x128xf32>,
    } else {
    }
    %c0 = arith.constant 0 : index
    %c0_1 = arith.constant 0 : index
    %3 = vector.load %arg22[%c0, %c0_1] : memref<16x128xf32, #tpu.memory_space<vmem>>, vector<16x128xf32>
    %4 = arith.truncf %3 : vector<16x128xf32> to vector<16x128xbf16>
    %c0_2 = arith.constant 0 : index
    %c0_3 = arith.constant 0 : index
    %c0_4 = arith.constant 0 : index
    %5 = vector.load %arg5[%c0_2, %c0_3, %c0_4] : memref<1x128x384xbf16, #tpu.memory_space<vmem>>, vector<1x128x384xbf16>
    %6 = vector.shape_cast %5 : vector<1x128x384xbf16> to vector<128x384xbf16>
    %cst = arith.constant dense<0.000000e+00> : vector<16x384xf32>
    %7 = tpu.matmul %4, %6, %cst {dimension_numbers = #tpu.dot_dimension_numbers<[1], [0], [0], [1], [0, 0, 1, 1], [], []>} : vector<16x128xbf16>, vector<128x384xbf16>, vector<16x384xf32> -> vector<16x384xf32>
    %c0_5 = arith.constant 0 : index
    %c0_6 = arith.constant 0 : index
    %c0_7 = arith.constant 0 : index
    %8 = vector.load %arg6[%c0_5, %c0_6, %c0_7] : memref<1x1x384xf32, #tpu.memory_space<vmem>>, vector<1x1x384xf32>
    %9 = vector.shape_cast %8 : vector<1x1x384xf32> to vector<1x384xf32>
    %10 = vector.broadcast %9 : vector<1x384xf32> to vector<16x384xf32>
    %11 = arith.addf %7, %10 : vector<16x384xf32>
    %12 = vector.extract_strided_slice %11 {offsets = [0, 0], sizes = [16, 128], strides = [1, 1]} : vector<16x384xf32> to vector<16x128xf32>
    %13 = vector.extract_strided_slice %11 {offsets = [0, 128], sizes = [16, 128], strides = [1, 1]} : vector<16x384xf32> to vector<16x128xf32>
    %14 = vector.extract_strided_slice %11 {offsets = [0, 256], sizes = [16, 128], strides = [1, 1]} : vector<16x384xf32> to vector<16x128xf32>
    %c0_8 = arith.constant 0 : index
    %c0_9 = arith.constant 0 : index
    %15 = vector.load %arg2[%c0_8, %c0_9] : memref<2x8xf32, #tpu.memory_space<vmem>>, vector<1x8xf32>
    %16 = vector.extract_strided_slice %12 {offsets = [0, 0], sizes = [8, 64], strides = [1, 1]} : vector<16x128xf32> to vector<8x64xf32>
    %17 = vector.extract_strided_slice %13 {offsets = [0, 0], sizes = [8, 64], strides = [1, 1]} : vector<16x128xf32> to vector<8x64xf32>
    %18 = vector.extract_strided_slice %14 {offsets = [0, 0], sizes = [8, 64], strides = [1, 1]} : vector<16x128xf32> to vector<8x64xf32>
    %cst_10 = arith.constant dense<0.000000e+00> : vector<8x8xf32>
    %19 = tpu.matmul %16, %17, %cst_10 {dimension_numbers = #tpu.dot_dimension_numbers<[1], [1], [0], [0], [0, 0, 1, 0], [], []>} : vector<8x64xf32>, vector<8x64xf32>, vector<8x8xf32> -> vector<8x8xf32>
    %cst_11 = arith.constant 1.250000e-01 : f32
    %20 = vector.broadcast %cst_11 : f32 to vector<8x8xf32>
    %21 = arith.mulf %19, %20 : vector<8x8xf32>
    %22 = vector.broadcast %15 : vector<1x8xf32> to vector<8x8xf32>
    %23 = arith.addf %21, %22 : vector<8x8xf32>
    %cst_12 = arith.constant dense<0xFF800000> : vector<8xf32>
    %24 = vector.multi_reduction <maximumf>, %23, %cst_12 [1] : vector<8x8xf32> to vector<8xf32>
    %25 = vector.shape_cast %24 : vector<8xf32> to vector<8x1xf32>
    %26 = vector.broadcast %25 : vector<8x1xf32> to vector<8x8xf32>
    %27 = arith.subf %23, %26 : vector<8x8xf32>
    %28 = math.exp %27 : vector<8x8xf32>
    %cst_13 = arith.constant dense<0.000000e+00> : vector<8xf32>
    %29 = vector.multi_reduction <add>, %28, %cst_13 [1] : vector<8x8xf32> to vector<8xf32>
    %30 = vector.shape_cast %29 : vector<8xf32> to vector<8x1xf32>
    %31 = tpu.reciprocal %30 {approx = true} : vector<8x1xf32> -> vector<8x1xf32>
    %32 = vector.broadcast %31 : vector<8x1xf32> to vector<8x8xf32>
    %33 = arith.mulf %28, %32 : vector<8x8xf32>
    %cst_14 = arith.constant dense<0.000000e+00> : vector<8x64xf32>
    %34 = tpu.matmul %33, %18, %cst_14 {dimension_numbers = #tpu.dot_dimension_numbers<[1], [0], [0], [1], [0, 0, 1, 1], [], []>} : vector<8x8xf32>, vector<8x64xf32>, vector<8x64xf32> -> vector<8x64xf32>
    %35 = vector.extract_strided_slice %12 {offsets = [0, 64], sizes = [8, 64], strides = [1, 1]} : vector<16x128xf32> to vector<8x64xf32>
    %36 = vector.extract_strided_slice %13 {offsets = [0, 64], sizes = [8, 64], strides = [1, 1]} : vector<16x128xf32> to vector<8x64xf32>
    %37 = vector.extract_strided_slice %14 {offsets = [0, 64], sizes = [8, 64], strides = [1, 1]} : vector<16x128xf32> to vector<8x64xf32>
    %cst_15 = arith.constant dense<0.000000e+00> : vector<8x8xf32>
    %38 = tpu.matmul %35, %36, %cst_15 {dimension_numbers = #tpu.dot_dimension_numbers<[1], [1], [0], [0], [0, 0, 1, 0], [], []>} : vector<8x64xf32>, vector<8x64xf32>, vector<8x8xf32> -> vector<8x8xf32>
    %cst_16 = arith.constant 1.250000e-01 : f32
    %39 = vector.broadcast %cst_16 : f32 to vector<8x8xf32>
    %40 = arith.mulf %38, %39 : vector<8x8xf32>
    %41 = vector.broadcast %15 : vector<1x8xf32> to vector<8x8xf32>
    %42 = arith.addf %40, %41 : vector<8x8xf32>
    %cst_17 = arith.constant dense<0xFF800000> : vector<8xf32>
    %43 = vector.multi_reduction <maximumf>, %42, %cst_17 [1] : vector<8x8xf32> to vector<8xf32>
    %44 = vector.shape_cast %43 : vector<8xf32> to vector<8x1xf32>
    %45 = vector.broadcast %44 : vector<8x1xf32> to vector<8x8xf32>
    %46 = arith.subf %42, %45 : vector<8x8xf32>
    %47 = math.exp %46 : vector<8x8xf32>
    %cst_18 = arith.constant dense<0.000000e+00> : vector<8xf32>
    %48 = vector.multi_reduction <add>, %47, %cst_18 [1] : vector<8x8xf32> to vector<8xf32>
    %49 = vector.shape_cast %48 : vector<8xf32> to vector<8x1xf32>
    %50 = tpu.reciprocal %49 {approx = true} : vector<8x1xf32> -> vector<8x1xf32>
    %51 = vector.broadcast %50 : vector<8x1xf32> to vector<8x8xf32>
    %52 = arith.mulf %47, %51 : vector<8x8xf32>
    %cst_19 = arith.constant dense<0.000000e+00> : vector<8x64xf32>
    %53 = tpu.matmul %52, %37, %cst_19 {dimension_numbers = #tpu.dot_dimension_numbers<[1], [0], [0], [1], [0, 0, 1, 1], [], []>} : vector<8x8xf32>, vector<8x64xf32>, vector<8x64xf32> -> vector<8x64xf32>
    %54 = tpu.concatenate %34, %53 in 1 : vector<8x64xf32>, vector<8x64xf32> -> vector<8x128xf32>
    %c1 = arith.constant 1 : index
    %c0_20 = arith.constant 0 : index
    %55 = vector.load %arg2[%c1, %c0_20] : memref<2x8xf32, #tpu.memory_space<vmem>>, vector<1x8xf32>
    %56 = vector.extract_strided_slice %12 {offsets = [8, 0], sizes = [8, 64], strides = [1, 1]} : vector<16x128xf32> to vector<8x64xf32>
    %57 = vector.extract_strided_slice %13 {offsets = [8, 0], sizes = [8, 64], strides = [1, 1]} : vector<16x128xf32> to vector<8x64xf32>
    %58 = vector.extract_strided_slice %14 {offsets = [8, 0], sizes = [8, 64], strides = [1, 1]} : vector<16x128xf32> to vector<8x64xf32>
    %cst_21 = arith.constant dense<0.000000e+00> : vector<8x8xf32>
    %59 = tpu.matmul %56, %57, %cst_21 {dimension_numbers = #tpu.dot_dimension_numbers<[1], [1], [0], [0], [0, 0, 1, 0], [], []>} : vector<8x64xf32>, vector<8x64xf32>, vector<8x8xf32> -> vector<8x8xf32>
    %cst_22 = arith.constant 1.250000e-01 : f32
    %60 = vector.broadcast %cst_22 : f32 to vector<8x8xf32>
    %61 = arith.mulf %59, %60 : vector<8x8xf32>
    %62 = vector.broadcast %55 : vector<1x8xf32> to vector<8x8xf32>
    %63 = arith.addf %61, %62 : vector<8x8xf32>
    %cst_23 = arith.constant dense<0xFF800000> : vector<8xf32>
    %64 = vector.multi_reduction <maximumf>, %63, %cst_23 [1] : vector<8x8xf32> to vector<8xf32>
    %65 = vector.shape_cast %64 : vector<8xf32> to vector<8x1xf32>
    %66 = vector.broadcast %65 : vector<8x1xf32> to vector<8x8xf32>
    %67 = arith.subf %63, %66 : vector<8x8xf32>
    %68 = math.exp %67 : vector<8x8xf32>
    %cst_24 = arith.constant dense<0.000000e+00> : vector<8xf32>
    %69 = vector.multi_reduction <add>, %68, %cst_24 [1] : vector<8x8xf32> to vector<8xf32>
    %70 = vector.shape_cast %69 : vector<8xf32> to vector<8x1xf32>
    %71 = tpu.reciprocal %70 {approx = true} : vector<8x1xf32> -> vector<8x1xf32>
    %72 = vector.broadcast %71 : vector<8x1xf32> to vector<8x8xf32>
    %73 = arith.mulf %68, %72 : vector<8x8xf32>
    %cst_25 = arith.constant dense<0.000000e+00> : vector<8x64xf32>
    %74 = tpu.matmul %73, %58, %cst_25 {dimension_numbers = #tpu.dot_dimension_numbers<[1], [0], [0], [1], [0, 0, 1, 1], [], []>} : vector<8x8xf32>, vector<8x64xf32>, vector<8x64xf32> -> vector<8x64xf32>
    %75 = vector.extract_strided_slice %12 {offsets = [8, 64], sizes = [8, 64], strides = [1, 1]} : vector<16x128xf32> to vector<8x64xf32>
    %76 = vector.extract_strided_slice %13 {offsets = [8, 64], sizes = [8, 64], strides = [1, 1]} : vector<16x128xf32> to vector<8x64xf32>
    %77 = vector.extract_strided_slice %14 {offsets = [8, 64], sizes = [8, 64], strides = [1, 1]} : vector<16x128xf32> to vector<8x64xf32>
    %cst_26 = arith.constant dense<0.000000e+00> : vector<8x8xf32>
    %78 = tpu.matmul %75, %76, %cst_26 {dimension_numbers = #tpu.dot_dimension_numbers<[1], [1], [0], [0], [0, 0, 1, 0], [], []>} : vector<8x64xf32>, vector<8x64xf32>, vector<8x8xf32> -> vector<8x8xf32>
    %cst_27 = arith.constant 1.250000e-01 : f32
    %79 = vector.broadcast %cst_27 : f32 to vector<8x8xf32>
    %80 = arith.mulf %78, %79 : vector<8x8xf32>
    %81 = vector.broadcast %55 : vector<1x8xf32> to vector<8x8xf32>
    %82 = arith.addf %80, %81 : vector<8x8xf32>
    %cst_28 = arith.constant dense<0xFF800000> : vector<8xf32>
    %83 = vector.multi_reduction <maximumf>, %82, %cst_28 [1] : vector<8x8xf32> to vector<8xf32>
    %84 = vector.shape_cast %83 : vector<8xf32> to vector<8x1xf32>
    %85 = vector.broadcast %84 : vector<8x1xf32> to vector<8x8xf32>
    %86 = arith.subf %82, %85 : vector<8x8xf32>
    %87 = math.exp %86 : vector<8x8xf32>
    %cst_29 = arith.constant dense<0.000000e+00> : vector<8xf32>
    %88 = vector.multi_reduction <add>, %87, %cst_29 [1] : vector<8x8xf32> to vector<8xf32>
    %89 = vector.shape_cast %88 : vector<8xf32> to vector<8x1xf32>
    %90 = tpu.reciprocal %89 {approx = true} : vector<8x1xf32> -> vector<8x1xf32>
    %91 = vector.broadcast %90 : vector<8x1xf32> to vector<8x8xf32>
    %92 = arith.mulf %87, %91 : vector<8x8xf32>
    %cst_30 = arith.constant dense<0.000000e+00> : vector<8x64xf32>
    %93 = tpu.matmul %92, %77, %cst_30 {dimension_numbers = #tpu.dot_dimension_numbers<[1], [0], [0], [1], [0, 0, 1, 1], [], []>} : vector<8x8xf32>, vector<8x64xf32>, vector<8x64xf32> -> vector<8x64xf32>
    %94 = tpu.concatenate %74, %93 in 1 : vector<8x64xf32>, vector<8x64xf32> -> vector<8x128xf32>
    %95 = tpu.concatenate %54, %94 in 0 : vector<8x128xf32>, vector<8x128xf32> -> vector<16x128xf32>
    %96 = arith.truncf %95 : vector<16x128xf32> to vector<16x128xbf16>
    %c0_31 = arith.constant 0 : index
    %c0_32 = arith.constant 0 : index
    %c0_33 = arith.constant 0 : index
    %97 = vector.load %arg7[%c0_31, %c0_32, %c0_33] : memref<1x128x128xbf16, #tpu.memory_space<vmem>>, vector<1x128x128xbf16>
    %98 = vector.shape_cast %97 : vector<1x128x128xbf16> to vector<128x128xbf16>
    %cst_34 = arith.constant dense<0.000000e+00> : vector<16x128xf32>
    %99 = tpu.matmul %96, %98, %cst_34 {dimension_numbers = #tpu.dot_dimension_numbers<[1], [0], [0], [1], [0, 0, 1, 1], [], []>} : vector<16x128xbf16>, vector<128x128xbf16>, vector<16x128xf32> -> vector<16x128xf32>
    %c0_35 = arith.constant 0 : index
    %c0_36 = arith.constant 0 : index
    %c0_37 = arith.constant 0 : index
    %100 = vector.load %arg8[%c0_35, %c0_36, %c0_37] : memref<1x1x128xf32, #tpu.memory_space<vmem>>, vector<1x1x128xf32>
    %101 = vector.shape_cast %100 : vector<1x1x128xf32> to vector<1x128xf32>
    %102 = vector.broadcast %101 : vector<1x128xf32> to vector<16x128xf32>
    %103 = arith.addf %99, %102 : vector<16x128xf32>
    %104 = arith.addf %103, %3 : vector<16x128xf32>
    %c0_38 = arith.constant 0 : index
    %c0_39 = arith.constant 0 : index
    %c0_40 = arith.constant 0 : index
    %105 = vector.load %arg9[%c0_38, %c0_39, %c0_40] : memref<1x1x128xf32, #tpu.memory_space<vmem>>, vector<1x1x128xf32>
    %106 = vector.shape_cast %105 : vector<1x1x128xf32> to vector<1x128xf32>
    %c0_41 = arith.constant 0 : index
    %c0_42 = arith.constant 0 : index
    %c0_43 = arith.constant 0 : index
    %107 = vector.load %arg10[%c0_41, %c0_42, %c0_43] : memref<1x1x128xf32, #tpu.memory_space<vmem>>, vector<1x1x128xf32>
    %108 = vector.shape_cast %107 : vector<1x1x128xf32> to vector<1x128xf32>
    %cst_44 = arith.constant dense<0.000000e+00> : vector<16xf32>
    %109 = vector.multi_reduction <add>, %104, %cst_44 [1] : vector<16x128xf32> to vector<16xf32>
    %110 = vector.shape_cast %109 : vector<16xf32> to vector<16x1xf32>
    %cst_45 = arith.constant 1.280000e+02 : f32
    %111 = vector.broadcast %cst_45 : f32 to vector<16x1xf32>
    %112 = arith.divf %110, %111 : vector<16x1xf32>
    %113 = vector.broadcast %112 : vector<16x1xf32> to vector<16x128xf32>
    %114 = arith.subf %104, %113 : vector<16x128xf32>
    %115 = arith.mulf %114, %114 : vector<16x128xf32>
    %cst_46 = arith.constant dense<0.000000e+00> : vector<16xf32>
    %116 = vector.multi_reduction <add>, %115, %cst_46 [1] : vector<16x128xf32> to vector<16xf32>
    %117 = vector.shape_cast %116 : vector<16xf32> to vector<16x1xf32>
    %cst_47 = arith.constant 1.280000e+02 : f32
    %118 = vector.broadcast %cst_47 : f32 to vector<16x1xf32>
    %119 = arith.divf %117, %118 : vector<16x1xf32>
    %cst_48 = arith.constant 9.99999996E-13 : f32
    %120 = vector.broadcast %cst_48 : f32 to vector<16x1xf32>
    %121 = arith.addf %119, %120 : vector<16x1xf32>
    %122 = math.rsqrt %121 : vector<16x1xf32>
    %123 = vector.broadcast %122 : vector<16x1xf32> to vector<16x128xf32>
    %124 = arith.mulf %114, %123 : vector<16x128xf32>
    %125 = vector.broadcast %106 : vector<1x128xf32> to vector<16x128xf32>
    %126 = arith.mulf %124, %125 : vector<16x128xf32>
    %127 = vector.broadcast %108 : vector<1x128xf32> to vector<16x128xf32>
    %128 = arith.addf %126, %127 : vector<16x128xf32>
    %129 = arith.truncf %128 : vector<16x128xf32> to vector<16x128xbf16>
    %c0_49 = arith.constant 0 : index
    %c0_50 = arith.constant 0 : index
    %c0_51 = arith.constant 0 : index
    %130 = vector.load %arg11[%c0_49, %c0_50, %c0_51] : memref<1x128x512xbf16, #tpu.memory_space<vmem>>, vector<1x128x512xbf16>
    %131 = vector.shape_cast %130 : vector<1x128x512xbf16> to vector<128x512xbf16>
    %cst_52 = arith.constant dense<0.000000e+00> : vector<16x512xf32>
    %132 = tpu.matmul %129, %131, %cst_52 {dimension_numbers = #tpu.dot_dimension_numbers<[1], [0], [0], [1], [0, 0, 1, 1], [], []>} : vector<16x128xbf16>, vector<128x512xbf16>, vector<16x512xf32> -> vector<16x512xf32>
    %c0_53 = arith.constant 0 : index
    %c0_54 = arith.constant 0 : index
    %c0_55 = arith.constant 0 : index
    %133 = vector.load %arg12[%c0_53, %c0_54, %c0_55] : memref<1x1x512xf32, #tpu.memory_space<vmem>>, vector<1x1x512xf32>
    %134 = vector.shape_cast %133 : vector<1x1x512xf32> to vector<1x512xf32>
    %135 = vector.broadcast %134 : vector<1x512xf32> to vector<16x512xf32>
    %136 = arith.addf %132, %135 : vector<16x512xf32>
    %cst_56 = arith.constant 5.000000e-01 : f32
    %137 = vector.broadcast %cst_56 : f32 to vector<16x512xf32>
    %138 = arith.mulf %137, %136 : vector<16x512xf32>
    %cst_57 = arith.constant 4.471500e-02 : f32
    %139 = vector.broadcast %cst_57 : f32 to vector<16x512xf32>
    %140 = arith.mulf %139, %136 : vector<16x512xf32>
    %141 = arith.mulf %140, %136 : vector<16x512xf32>
    %142 = arith.mulf %141, %136 : vector<16x512xf32>
    %143 = arith.addf %136, %142 : vector<16x512xf32>
    %cst_58 = arith.constant 0.797884583 : f32
    %144 = vector.broadcast %cst_58 : f32 to vector<16x512xf32>
    %145 = arith.mulf %144, %143 : vector<16x512xf32>
    %146 = math.tanh %145 : vector<16x512xf32>
    %cst_59 = arith.constant 1.000000e+00 : f32
    %147 = vector.broadcast %cst_59 : f32 to vector<16x512xf32>
    %148 = arith.addf %147, %146 : vector<16x512xf32>
    %149 = arith.mulf %138, %148 : vector<16x512xf32>
    %150 = arith.truncf %149 : vector<16x512xf32> to vector<16x512xbf16>
    %c0_60 = arith.constant 0 : index
    %c0_61 = arith.constant 0 : index
    %c0_62 = arith.constant 0 : index
    %151 = vector.load %arg13[%c0_60, %c0_61, %c0_62] : memref<1x512x128xbf16, #tpu.memory_space<vmem>>, vector<1x512x128xbf16>
    %152 = vector.shape_cast %151 : vector<1x512x128xbf16> to vector<512x128xbf16>
    %cst_63 = arith.constant dense<0.000000e+00> : vector<16x128xf32>
    %153 = tpu.matmul %150, %152, %cst_63 {dimension_numbers = #tpu.dot_dimension_numbers<[1], [0], [0], [1], [0, 0, 1, 1], [], []>} : vector<16x512xbf16>, vector<512x128xbf16>, vector<16x128xf32> -> vector<16x128xf32>
    %c0_64 = arith.constant 0 : index
    %c0_65 = arith.constant 0 : index
    %c0_66 = arith.constant 0 : index
    %154 = vector.load %arg14[%c0_64, %c0_65, %c0_66] : memref<1x1x128xf32, #tpu.memory_space<vmem>>, vector<1x1x128xf32>
    %155 = vector.shape_cast %154 : vector<1x1x128xf32> to vector<1x128xf32>
    %156 = vector.broadcast %155 : vector<1x128xf32> to vector<16x128xf32>
    %157 = arith.addf %153, %156 : vector<16x128xf32>
    %158 = arith.addf %157, %128 : vector<16x128xf32>
    %c0_67 = arith.constant 0 : index
    %c0_68 = arith.constant 0 : index
    %c0_69 = arith.constant 0 : index
    %159 = vector.load %arg15[%c0_67, %c0_68, %c0_69] : memref<1x1x128xf32, #tpu.memory_space<vmem>>, vector<1x1x128xf32>
    %160 = vector.shape_cast %159 : vector<1x1x128xf32> to vector<1x128xf32>
    %c0_70 = arith.constant 0 : index
    %c0_71 = arith.constant 0 : index
    %c0_72 = arith.constant 0 : index
    %161 = vector.load %arg16[%c0_70, %c0_71, %c0_72] : memref<1x1x128xf32, #tpu.memory_space<vmem>>, vector<1x1x128xf32>
    %162 = vector.shape_cast %161 : vector<1x1x128xf32> to vector<1x128xf32>
    %cst_73 = arith.constant dense<0.000000e+00> : vector<16xf32>
    %163 = vector.multi_reduction <add>, %158, %cst_73 [1] : vector<16x128xf32> to vector<16xf32>
    %164 = vector.shape_cast %163 : vector<16xf32> to vector<16x1xf32>
    %cst_74 = arith.constant 1.280000e+02 : f32
    %165 = vector.broadcast %cst_74 : f32 to vector<16x1xf32>
    %166 = arith.divf %164, %165 : vector<16x1xf32>
    %167 = vector.broadcast %166 : vector<16x1xf32> to vector<16x128xf32>
    %168 = arith.subf %158, %167 : vector<16x128xf32>
    %169 = arith.mulf %168, %168 : vector<16x128xf32>
    %cst_75 = arith.constant dense<0.000000e+00> : vector<16xf32>
    %170 = vector.multi_reduction <add>, %169, %cst_75 [1] : vector<16x128xf32> to vector<16xf32>
    %171 = vector.shape_cast %170 : vector<16xf32> to vector<16x1xf32>
    %cst_76 = arith.constant 1.280000e+02 : f32
    %172 = vector.broadcast %cst_76 : f32 to vector<16x1xf32>
    %173 = arith.divf %171, %172 : vector<16x1xf32>
    %cst_77 = arith.constant 9.99999996E-13 : f32
    %174 = vector.broadcast %cst_77 : f32 to vector<16x1xf32>
    %175 = arith.addf %173, %174 : vector<16x1xf32>
    %176 = math.rsqrt %175 : vector<16x1xf32>
    %177 = vector.broadcast %176 : vector<16x1xf32> to vector<16x128xf32>
    %178 = arith.mulf %168, %177 : vector<16x128xf32>
    %179 = vector.broadcast %160 : vector<1x128xf32> to vector<16x128xf32>
    %180 = arith.mulf %178, %179 : vector<16x128xf32>
    %181 = vector.broadcast %162 : vector<1x128xf32> to vector<16x128xf32>
    %182 = arith.addf %180, %181 : vector<16x128xf32>
    %c0_78 = arith.constant 0 : index
    %c0_79 = arith.constant 0 : index
    %183 = vector.load %arg22[%c0_78, %c0_79] : memref<16x128xf32, #tpu.memory_space<vmem>>, vector<16x128xf32>
    tpu.vector_store %arg22[%c0_78, %c0_79], %182 {strides = array<i32>} : memref<16x128xf32, #tpu.memory_space<vmem>>, vector<16x128xf32>,
    %c1_i32 = arith.constant 1 : i32
    %184 = arith.cmpi eq, %arg0, %c1_i32 : i32
    %185 = arith.extui %184 : i1 to i32
    %c0_i32_80 = arith.constant 0 : i32
    %186 = arith.cmpi ne, %185, %c0_i32_80 : i32
    scf.if %186 {
      %187 = vector.extract_strided_slice %182 {offsets = [0, 0], sizes = [1, 128], strides = [1, 1]} : vector<16x128xf32> to vector<1x128xf32>
      %188 = vector.extract_strided_slice %182 {offsets = [8, 0], sizes = [1, 128], strides = [1, 1]} : vector<16x128xf32> to vector<1x128xf32>
      %189 = tpu.concatenate %187, %188 in 0 : vector<1x128xf32>, vector<1x128xf32> -> vector<2x128xf32>
      %190 = arith.truncf %189 : vector<2x128xf32> to vector<2x128xbf16>
      %c0_81 = arith.constant 0 : index
      %c0_82 = arith.constant 0 : index
      %191 = vector.load %arg17[%c0_81, %c0_82] : memref<128x128xbf16, #tpu.memory_space<vmem>>, vector<128x128xbf16>
      %cst_83 = arith.constant dense<0.000000e+00> : vector<2x128xf32>
      %192 = tpu.matmul %190, %191, %cst_83 {dimension_numbers = #tpu.dot_dimension_numbers<[1], [0], [0], [1], [0, 0, 1, 1], [], []>} : vector<2x128xbf16>, vector<128x128xbf16>, vector<2x128xf32> -> vector<2x128xf32>
      %c0_84 = arith.constant 0 : index
      %c0_85 = arith.constant 0 : index
      %193 = vector.load %arg18[%c0_84, %c0_85] : memref<1x128xf32, #tpu.memory_space<vmem>>, vector<1x128xf32>
      %194 = vector.broadcast %193 : vector<1x128xf32> to vector<2x128xf32>
      %195 = arith.addf %192, %194 : vector<2x128xf32>
      %196 = math.tanh %195 : vector<2x128xf32>
      %197 = arith.truncf %196 : vector<2x128xf32> to vector<2x128xbf16>
      %c0_86 = arith.constant 0 : index
      %c0_87 = arith.constant 0 : index
      %198 = vector.load %arg19[%c0_86, %c0_87] : memref<128x128xbf16, #tpu.memory_space<vmem>>, vector<128x128xbf16>
      %cst_88 = arith.constant dense<0.000000e+00> : vector<2x128xf32>
      %199 = tpu.matmul %197, %198, %cst_88 {dimension_numbers = #tpu.dot_dimension_numbers<[1], [0], [0], [1], [0, 0, 1, 1], [], []>} : vector<2x128xbf16>, vector<128x128xbf16>, vector<2x128xf32> -> vector<2x128xf32>
      %c0_89 = arith.constant 0 : index
      %c0_90 = arith.constant 0 : index
      %200 = vector.load %arg20[%c0_89, %c0_90] : memref<1x128xf32, #tpu.memory_space<vmem>>, vector<1x128xf32>
      %201 = vector.broadcast %200 : vector<1x128xf32> to vector<2x128xf32>
      %202 = arith.addf %199, %201 : vector<2x128xf32>
      %c0_91 = arith.constant 0 : index
      %c0_92 = arith.constant 0 : index
      %203 = vector.load %arg21[%c0_91, %c0_92] : memref<2x128xf32, #tpu.memory_space<vmem>>, vector<2x128xf32>
      tpu.vector_store %arg21[%c0_91, %c0_92], %202 {strides = array<i32>} : memref<2x128xf32, #tpu.memory_space<vmem>>, vector<2x128xf32>,
    } else {
    }
    return
  }
  func.func @transform_0(%arg0: i32) -> (i32, i32) {
    %c0_i32 = arith.constant 0 : i32
    %c0_i32_0 = arith.constant 0 : i32
    %c0_i32_1 = arith.constant 0 : i32
    return %c0_i32, %c0_i32_0 : i32, i32
  }
  func.func @transform_1(%arg0: i32) -> (i32, i32) {
    %c0_i32 = arith.constant 0 : i32
    %c0_i32_0 = arith.constant 0 : i32
    %c0_i32_1 = arith.constant 0 : i32
    return %c0_i32, %c0_i32_0 : i32, i32
  }
  func.func @transform_2(%arg0: i32) -> (i32, i32) {
    %c0_i32 = arith.constant 0 : i32
    %c0_i32_0 = arith.constant 0 : i32
    %c0_i32_1 = arith.constant 0 : i32
    return %c0_i32, %c0_i32_0 : i32, i32
  }
  func.func @transform_3(%arg0: i32) -> (i32, i32) {
    %c0_i32 = arith.constant 0 : i32
    %c0_i32_0 = arith.constant 0 : i32
    %c0_i32_1 = arith.constant 0 : i32
    return %c0_i32, %c0_i32_0 : i32, i32
  }
  func.func @transform_4(%arg0: i32) -> (i32, i32, i32) {
    %c0_i32 = arith.constant 0 : i32
    %c0_i32_0 = arith.constant 0 : i32
    %c0_i32_1 = arith.constant 0 : i32
    return %arg0, %c0_i32, %c0_i32_0 : i32, i32, i32
  }
  func.func @transform_5(%arg0: i32) -> (i32, i32, i32) {
    %c0_i32 = arith.constant 0 : i32
    %c0_i32_0 = arith.constant 0 : i32
    %c0_i32_1 = arith.constant 0 : i32
    return %arg0, %c0_i32, %c0_i32_0 : i32, i32, i32
  }
  func.func @transform_6(%arg0: i32) -> (i32, i32, i32) {
    %c0_i32 = arith.constant 0 : i32
    %c0_i32_0 = arith.constant 0 : i32
    %c0_i32_1 = arith.constant 0 : i32
    return %arg0, %c0_i32, %c0_i32_0 : i32, i32, i32
  }
  func.func @transform_7(%arg0: i32) -> (i32, i32, i32) {
    %c0_i32 = arith.constant 0 : i32
    %c0_i32_0 = arith.constant 0 : i32
    %c0_i32_1 = arith.constant 0 : i32
    return %arg0, %c0_i32, %c0_i32_0 : i32, i32, i32
  }
  func.func @transform_8(%arg0: i32) -> (i32, i32, i32) {
    %c0_i32 = arith.constant 0 : i32
    %c0_i32_0 = arith.constant 0 : i32
    %c0_i32_1 = arith.constant 0 : i32
    return %arg0, %c0_i32, %c0_i32_0 : i32, i32, i32
  }
  func.func @transform_9(%arg0: i32) -> (i32, i32, i32) {
    %c0_i32 = arith.constant 0 : i32
    %c0_i32_0 = arith.constant 0 : i32
    %c0_i32_1 = arith.constant 0 : i32
    return %arg0, %c0_i32, %c0_i32_0 : i32, i32, i32
  }
  func.func @transform_10(%arg0: i32) -> (i32, i32, i32) {
    %c0_i32 = arith.constant 0 : i32
    %c0_i32_0 = arith.constant 0 : i32
    %c0_i32_1 = arith.constant 0 : i32
    return %arg0, %c0_i32, %c0_i32_0 : i32, i32, i32
  }
  func.func @transform_11(%arg0: i32) -> (i32, i32, i32) {
    %c0_i32 = arith.constant 0 : i32
    %c0_i32_0 = arith.constant 0 : i32
    %c0_i32_1 = arith.constant 0 : i32
    return %arg0, %c0_i32, %c0_i32_0 : i32, i32, i32
  }
  func.func @transform_12(%arg0: i32) -> (i32, i32, i32) {
    %c0_i32 = arith.constant 0 : i32
    %c0_i32_0 = arith.constant 0 : i32
    %c0_i32_1 = arith.constant 0 : i32
    return %arg0, %c0_i32, %c0_i32_0 : i32, i32, i32
  }
  func.func @transform_13(%arg0: i32) -> (i32, i32, i32) {
    %c0_i32 = arith.constant 0 : i32
    %c0_i32_0 = arith.constant 0 : i32
    %c0_i32_1 = arith.constant 0 : i32
    return %arg0, %c0_i32, %c0_i32_0 : i32, i32, i32
  }
  func.func @transform_14(%arg0: i32) -> (i32, i32, i32) {
    %c0_i32 = arith.constant 0 : i32
    %c0_i32_0 = arith.constant 0 : i32
    %c0_i32_1 = arith.constant 0 : i32
    return %arg0, %c0_i32, %c0_i32_0 : i32, i32, i32
  }
  func.func @transform_15(%arg0: i32) -> (i32, i32, i32) {
    %c0_i32 = arith.constant 0 : i32
    %c0_i32_0 = arith.constant 0 : i32
    %c0_i32_1 = arith.constant 0 : i32
    return %arg0, %c0_i32, %c0_i32_0 : i32, i32, i32
  }
  func.func @transform_16(%arg0: i32) -> (i32, i32) {
    %c0_i32 = arith.constant 0 : i32
    %c0_i32_0 = arith.constant 0 : i32
    %c0_i32_1 = arith.constant 0 : i32
    return %c0_i32, %c0_i32_0 : i32, i32
  }
  func.func @transform_17(%arg0: i32) -> (i32, i32) {
    %c0_i32 = arith.constant 0 : i32
    %c0_i32_0 = arith.constant 0 : i32
    %c0_i32_1 = arith.constant 0 : i32
    return %c0_i32, %c0_i32_0 : i32, i32
  }
  func.func @transform_18(%arg0: i32) -> (i32, i32) {
    %c0_i32 = arith.constant 0 : i32
    %c0_i32_0 = arith.constant 0 : i32
    %c0_i32_1 = arith.constant 0 : i32
    return %c0_i32, %c0_i32_0 : i32, i32
  }
  func.func @transform_19(%arg0: i32) -> (i32, i32) {
    %c0_i32 = arith.constant 0 : i32
    %c0_i32_0 = arith.constant 0 : i32
    %c0_i32_1 = arith.constant 0 : i32
    return %c0_i32, %c0_i32_0 : i32, i32
  }
  func.func @transform_20(%arg0: i32) -> (i32, i32) {
    %c0_i32 = arith.constant 0 : i32
    %c0_i32_0 = arith.constant 0 : i32
    %c0_i32_1 = arith.constant 0 : i32
    return %c0_i32, %c0_i32_0 : i32, i32
  }
}

</mosaic_0001>

<llo_original>
// kernel: bert_class_forward.1
$region0: #{bert_class_forward.1}
  #allocation0 [shape = 'u32[]', space=smem, size = 0x4, offset = 0x4, fixed_abs, tag = 'smem constant byte address 0x4 - core index']
  #allocation1 [shape = 'u32[144,128]{1,0:T(1,128)}', space=vmem, size = 0x12000, scoped, tag = 'internal scratch']
  #allocation2 [shape = 'f32[16,128]{1,0:T(8,128)}', space=vmem, size = 0x2000, scoped, tag = 'scratch operand']
  %s0 = inlined_call_operand.vmem [shape: f32[16,128], index: 0, kind: input, shape index: {}]
  %s1 = inlined_call_operand.vmem [shape: f32[2,8], index: 1, kind: input, shape index: {}]
  %s2 = inlined_call_operand.vmem [shape: f32[1,128], index: 2, kind: input, shape index: {}]
  %s3 = inlined_call_operand.vmem [shape: f32[1,128], index: 3, kind: input, shape index: {}]
  %s4 = inlined_call_operand.hbm [shape: bf16[2,128,384], index: 4, kind: input, shape index: {}]
  %s5 = inlined_call_operand.vmem [shape: f32[2,1,384], index: 5, kind: input, shape index: {}]
  %s6 = inlined_call_operand.vmem [shape: bf16[2,128,128], index: 6, kind: input, shape index: {}]
  %s7 = inlined_call_operand.vmem [shape: f32[2,1,128], index: 7, kind: input, shape index: {}]
  %s8 = inlined_call_operand.vmem [shape: f32[2,1,128], index: 8, kind: input, shape index: {}]
  %s9 = inlined_call_operand.vmem [shape: f32[2,1,128], index: 9, kind: input, shape index: {}]
  %s10 = inlined_call_operand.hbm [shape: bf16[2,128,512], index: 10, kind: input, shape index: {}]
  %s11 = inlined_call_operand.vmem [shape: f32[2,1,512], index: 11, kind: input, shape index: {}]
  %s12 = inlined_call_operand.hbm [shape: bf16[2,512,128], index: 12, kind: input, shape index: {}]
  %s13 = inlined_call_operand.vmem [shape: f32[2,1,128], index: 13, kind: input, shape index: {}]
  %s14 = inlined_call_operand.vmem [shape: f32[2,1,128], index: 14, kind: input, shape index: {}]
  %s15 = inlined_call_operand.vmem [shape: f32[2,1,128], index: 15, kind: input, shape index: {}]
  %s16 = inlined_call_operand.vmem [shape: bf16[128,128], index: 16, kind: input, shape index: {}]
  %s17 = inlined_call_operand.vmem [shape: f32[1,128], index: 17, kind: input, shape index: {}]
  %s18 = inlined_call_operand.vmem [shape: bf16[128,128], index: 18, kind: input, shape index: {}]
  %s19 = inlined_call_operand.vmem [shape: f32[1,128], index: 19, kind: input, shape index: {}]
  %s20 = inlined_call_operand.hbm [shape: f32[2,128], index: 20, kind: output, shape index: {}]
  %s21 = sld [smem:[#allocation0]]
  $region133: #{bert_class_forward.1} parent=0
    _
  %s23 = ssub.s32 1, %s21
  %s24 = scalar_select 0, %s23, %s21
  $region1: #{bert_class_forward.1} parent=0
    #allocation3 [shape = 'u8[196608]{0}', space=vmem, size = 0x30000, scoped, tag = 'input window, operand 4']
    #allocation4 [shape = 's32[2]{0}', space=sflag, size = 0x8, scoped, tag = 'scoped memory for bert_class_forward.1']
    #allocation5 [shape = 's32[2]{0}', space=sflag, size = 0x8, scoped, tag = 'scoped memory for bert_class_forward.1']
    #allocation6 [shape = 'u8[262144]{0}', space=vmem, size = 0x40000, scoped, tag = 'input window, operand 10']
    #allocation7 [shape = 's32[2]{0}', space=sflag, size = 0x8, scoped, tag = 'scoped memory for bert_class_forward.1']
    #allocation8 [shape = 'u8[262144]{0}', space=vmem, size = 0x40000, scoped, tag = 'input window, operand 12']
    #allocation9 [shape = 'u8[1024]{0}', space=vmem, size = 0x400, scoped, tag = 'output window, operand 0, single buffered']
    %25 = vsyncpa [#allocation4], 0
    %s26 = scalar_lea.sflag [#allocation4], 1
    %27 = vsyncpa %s26, 0
    %28 = vsyncpa [#allocation7], 0
    %s29 = scalar_lea.sflag [#allocation7], 1
    %30 = vsyncpa %s29, 0
    %31 = vsyncpa [#allocation5], 0
    loop: start=0, step=1, limit=4
    $region2: #{bert_class_forward.1} parent=1 // loop_pre_header
      _
    $region3: #{bert_class_forward.1} parent=1 // loop_header
      %s33 = sphi 0, %s37
      %p34 = scmp.ge.s32.totalorder %s33, 4
      %s41 = sphi 0, %s41
      %s43 = sphi 0, %s41
      %s44 = sphi 0, %s43
      %s58 = sphi 0, %s44
      %s62 = sphi 0, %s62
      %s64 = sphi 0, %s62
      %s65 = sphi 0, %s64
      %s79 = sphi 0, %s65
      %s83 = sphi 0, %s83
      %s85 = sphi 0, %s83
      %s86 = sphi 0, %s85
      %s100 = sphi 0, %s86
      %s104 = sphi 0, %s104
      %s106 = sphi 0, %s104
      %s107 = sphi 0, %s106
      %s121 = sphi 0, %s107
      %s127 = sphi 0, %s129
      %s130 = sphi 0, %s127
      %s131 = sphi 0, %s130
      %s147 = sphi 0, %s131
      %s153 = sphi 0, %s155
      %s156 = sphi 0, %s153
      %s157 = sphi 0, %s156
      %s173 = sphi 0, %s157
      %s179 = sphi 0, %s181
      %s182 = sphi 0, %s179
      %s183 = sphi 0, %s182
      %s199 = sphi 0, %s183
      %s205 = sphi 0, %s207
      %s208 = sphi 0, %s205
      %s209 = sphi 0, %s208
      %s225 = sphi 0, %s209
      %s231 = sphi 0, %s233
      %s234 = sphi 0, %s231
      %s235 = sphi 0, %s234
      %s251 = sphi 0, %s235
      %s257 = sphi 0, %s259
      %s260 = sphi 0, %s257
      %s261 = sphi 0, %s260
      %s277 = sphi 0, %s261
      %s283 = sphi 0, %s285
      %s286 = sphi 0, %s283
      %s287 = sphi 0, %s286
      %s303 = sphi 0, %s287
      %s309 = sphi 0, %s311
      %s312 = sphi 0, %s309
      %s313 = sphi 0, %s312
      %s329 = sphi 0, %s313
      %s335 = sphi 0, %s337
      %s338 = sphi 0, %s335
      %s339 = sphi 0, %s338
      %s355 = sphi 0, %s339
      %s361 = sphi 0, %s363
      %s364 = sphi 0, %s361
      %s365 = sphi 0, %s364
      %s381 = sphi 0, %s365
      %s387 = sphi 0, %s389
      %s390 = sphi 0, %s387
      %s391 = sphi 0, %s390
      %s407 = sphi 0, %s391
      %s413 = sphi 0, %s415
      %s416 = sphi 0, %s413
      %s417 = sphi 0, %s416
      %s433 = sphi 0, %s417
      %s437 = sphi 0, %s437
      %s439 = sphi 0, %s437
      %s440 = sphi 0, %s439
      %s454 = sphi 0, %s440
      %s458 = sphi 0, %s458
      %s460 = sphi 0, %s458
      %s461 = sphi 0, %s460
      %s475 = sphi 0, %s461
      %s479 = sphi 0, %s479
      %s481 = sphi 0, %s479
      %s482 = sphi 0, %s481
      %s496 = sphi 0, %s482
      %s500 = sphi 0, %s500
      %s502 = sphi 0, %s500
      %s503 = sphi 0, %s502
      %s517 = sphi 0, %s503
      %s521 = sphi 0, %s521
      %s523 = sphi 0, %s521
      %s524 = sphi 0, %s523
      %s538 = sphi 0, %s524
    $region4: #{bert_class_forward.1} parent=1 // loop_header_branch
      %36 = sbr.rel (%p34) target = $region8
    $region5: #{bert_class_forward.1} parent=1 // loop_body
      %s38 = ssub.s32 %s33, 1
      %s39 = ssub.s32 %s33, 2
      %s40 = sadd.s32 %s33, 1
      %s42 = sadd.s32 %s41, 1
      %p45 = scmp.eq.s32.totalorder %s33, 1
      %p46 = scmp.ne.s32.totalorder %s41, %s43
      %p47 = scmp.eq.s32.totalorder %s33, 0
      %p48 = por %p46, %p47
      %p49 = scmp.ne.s32.totalorder %s41, %s43
      %p50 = scmp.eq.s32.totalorder %s38, 1
      %p51 = por %p49, %p50
      %p52 = scmp.ne.s32.totalorder %s43, %s44
      %p53 = scmp.eq.s32.totalorder %s38, 0
      %p54 = por %p52, %p53
      %p55 = scmp.ne.s32.totalorder %s43, %s44
      %p56 = scmp.eq.s32.totalorder %s39, 1
      %p57 = por %p55, %p56
      %p59 = scmp.ne.s32.totalorder %s44, %s58
      %p60 = scmp.eq.s32.totalorder %s39, 0
      %p61 = por %p59, %p60
      %s63 = sadd.s32 %s62, 1
      %p66 = scmp.eq.s32.totalorder %s33, 1
      %p67 = scmp.ne.s32.totalorder %s62, %s64
      %p68 = scmp.eq.s32.totalorder %s33, 0
      %p69 = por %p67, %p68
      %p70 = scmp.ne.s32.totalorder %s62, %s64
      %p71 = scmp.eq.s32.totalorder %s38, 1
      %p72 = por %p70, %p71
      %p73 = scmp.ne.s32.totalorder %s64, %s65
      %p74 = scmp.eq.s32.totalorder %s38, 0
      %p75 = por %p73, %p74
      %p76 = scmp.ne.s32.totalorder %s64, %s65
      %p77 = scmp.eq.s32.totalorder %s39, 1
      %p78 = por %p76, %p77
      %p80 = scmp.ne.s32.totalorder %s65, %s79
      %p81 = scmp.eq.s32.totalorder %s39, 0
      %p82 = por %p80, %p81
      %s84 = sadd.s32 %s83, 1
      %p87 = scmp.eq.s32.totalorder %s33, 1
      %p88 = scmp.ne.s32.totalorder %s83, %s85
      %p89 = scmp.eq.s32.totalorder %s33, 0
      %p90 = por %p88, %p89
      %p91 = scmp.ne.s32.totalorder %s83, %s85
      %p92 = scmp.eq.s32.totalorder %s38, 1
      %p93 = por %p91, %p92
      %p94 = scmp.ne.s32.totalorder %s85, %s86
      %p95 = scmp.eq.s32.totalorder %s38, 0
      %p96 = por %p94, %p95
      %p97 = scmp.ne.s32.totalorder %s85, %s86
      %p98 = scmp.eq.s32.totalorder %s39, 1
      %p99 = por %p97, %p98
      %p101 = scmp.ne.s32.totalorder %s86, %s100
      %p102 = scmp.eq.s32.totalorder %s39, 0
      %p103 = por %p101, %p102
      %s105 = sadd.s32 %s104, 1
      %p108 = scmp.eq.s32.totalorder %s33, 1
      %p109 = scmp.ne.s32.totalorder %s104, %s106
      %p110 = scmp.eq.s32.totalorder %s33, 0
      %p111 = por %p109, %p110
      %p112 = scmp.ne.s32.totalorder %s104, %s106
      %p113 = scmp.eq.s32.totalorder %s38, 1
      %p114 = por %p112, %p113
      %p115 = scmp.ne.s32.totalorder %s106, %s107
      %p116 = scmp.eq.s32.totalorder %s38, 0
      %p117 = por %p115, %p116
      %p118 = scmp.ne.s32.totalorder %s106, %s107
      %p119 = scmp.eq.s32.totalorder %s39, 1
      %p120 = por %p118, %p119
      %p122 = scmp.ne.s32.totalorder %s107, %s121
      %p123 = scmp.eq.s32.totalorder %s39, 0
      %p124 = por %p122, %p123
      %s125 = ssub.s32 %s33, %s40
      %p126 = scmp.eq.s32.totalorder %s125, 0
      %s128 = sadd.s32 %s127, 1
      %s129 = scalar_select %p126, %s127, %s128
      %p132 = pneg %p126
      %p133 = scmp.eq.s32.totalorder %s33, 1
      %p134 = por %p132, %p133
      %p135 = scmp.ne.s32.totalorder %s127, %s130
      %p136 = scmp.eq.s32.totalorder %s33, 0
      %p137 = por %p135, %p136
      %p138 = scmp.ne.s32.totalorder %s127, %s130
      %p139 = scmp.eq.s32.totalorder %s38, 1
      %p140 = por %p138, %p139
      %p141 = scmp.ne.s32.totalorder %s130, %s131
      %p142 = scmp.eq.s32.totalorder %s38, 0
      %p143 = por %p141, %p142
      %p144 = scmp.ne.s32.totalorder %s130, %s131
      %p145 = scmp.eq.s32.totalorder %s39, 1
      %p146 = por %p144, %p145
      %p148 = scmp.ne.s32.totalorder %s131, %s147
      %p149 = scmp.eq.s32.totalorder %s39, 0
      %p150 = por %p148, %p149
      %s151 = ssub.s32 %s33, %s40
      %p152 = scmp.eq.s32.totalorder %s151, 0
      %s154 = sadd.s32 %s153, 1
      %s155 = scalar_select %p152, %s153, %s154
      %p158 = pneg %p152
      %p159 = scmp.eq.s32.totalorder %s33, 1
      %p160 = por %p158, %p159
      %p161 = scmp.ne.s32.totalorder %s153, %s156
      %p162 = scmp.eq.s32.totalorder %s33, 0
      %p163 = por %p161, %p162
      %p164 = scmp.ne.s32.totalorder %s153, %s156
      %p165 = scmp.eq.s32.totalorder %s38, 1
      %p166 = por %p164, %p165
      %p167 = scmp.ne.s32.totalorder %s156, %s157
      %p168 = scmp.eq.s32.totalorder %s38, 0
      %p169 = por %p167, %p168
      %p170 = scmp.ne.s32.totalorder %s156, %s157
      %p171 = scmp.eq.s32.totalorder %s39, 1
      %p172 = por %p170, %p171
      %p174 = scmp.ne.s32.totalorder %s157, %s173
      %p175 = scmp.eq.s32.totalorder %s39, 0
      %p176 = por %p174, %p175
      %s177 = ssub.s32 %s33, %s40
      %p178 = scmp.eq.s32.totalorder %s177, 0
      %s180 = sadd.s32 %s179, 1
      %s181 = scalar_select %p178, %s179, %s180
      %p184 = pneg %p178
      %p185 = scmp.eq.s32.totalorder %s33, 1
      %p186 = por %p184, %p185
      %p187 = scmp.ne.s32.totalorder %s179, %s182
      %p188 = scmp.eq.s32.totalorder %s33, 0
      %p189 = por %p187, %p188
      %p190 = scmp.ne.s32.totalorder %s179, %s182
      %p191 = scmp.eq.s32.totalorder %s38, 1
      %p192 = por %p190, %p191
      %p193 = scmp.ne.s32.totalorder %s182, %s183
      %p194 = scmp.eq.s32.totalorder %s38, 0
      %p195 = por %p193, %p194
      %p196 = scmp.ne.s32.totalorder %s182, %s183
      %p197 = scmp.eq.s32.totalorder %s39, 1
      %p198 = por %p196, %p197
      %p200 = scmp.ne.s32.totalorder %s183, %s199
      %p201 = scmp.eq.s32.totalorder %s39, 0
      %p202 = por %p200, %p201
      %s203 = ssub.s32 %s33, %s40
      %p204 = scmp.eq.s32.totalorder %s203, 0
      %s206 = sadd.s32 %s205, 1
      %s207 = scalar_select %p204, %s205, %s206
      %p210 = pneg %p204
      %p211 = scmp.eq.s32.totalorder %s33, 1
      %p212 = por %p210, %p211
      %p213 = scmp.ne.s32.totalorder %s205, %s208
      %p214 = scmp.eq.s32.totalorder %s33, 0
      %p215 = por %p213, %p214
      %p216 = scmp.ne.s32.totalorder %s205, %s208
      %p217 = scmp.eq.s32.totalorder %s38, 1
      %p218 = por %p216, %p217
      %p219 = scmp.ne.s32.totalorder %s208, %s209
      %p220 = scmp.eq.s32.totalorder %s38, 0
      %p221 = por %p219, %p220
      %p222 = scmp.ne.s32.totalorder %s208, %s209
      %p223 = scmp.eq.s32.totalorder %s39, 1
      %p224 = por %p222, %p223
      %p226 = scmp.ne.s32.totalorder %s209, %s225
      %p227 = scmp.eq.s32.totalorder %s39, 0
      %p228 = por %p226, %p227
      %s229 = ssub.s32 %s33, %s40
      %p230 = scmp.eq.s32.totalorder %s229, 0
      %s232 = sadd.s32 %s231, 1
      %s233 = scalar_select %p230, %s231, %s232
      %p236 = pneg %p230
      %p237 = scmp.eq.s32.totalorder %s33, 1
      %p238 = por %p236, %p237
      %p239 = scmp.ne.s32.totalorder %s231, %s234
      %p240 = scmp.eq.s32.totalorder %s33, 0
      %p241 = por %p239, %p240
      %p242 = scmp.ne.s32.totalorder %s231, %s234
      %p243 = scmp.eq.s32.totalorder %s38, 1
      %p244 = por %p242, %p243
      %p245 = scmp.ne.s32.totalorder %s234, %s235
      %p246 = scmp.eq.s32.totalorder %s38, 0
      %p247 = por %p245, %p246
      %p248 = scmp.ne.s32.totalorder %s234, %s235
      %p249 = scmp.eq.s32.totalorder %s39, 1
      %p250 = por %p248, %p249
      %p252 = scmp.ne.s32.totalorder %s235, %s251
      %p253 = scmp.eq.s32.totalorder %s39, 0
      %p254 = por %p252, %p253
      %s255 = ssub.s32 %s33, %s40
      %p256 = scmp.eq.s32.totalorder %s255, 0
      %s258 = sadd.s32 %s257, 1
      %s259 = scalar_select %p256, %s257, %s258
      %p262 = pneg %p256
      %p263 = scmp.eq.s32.totalorder %s33, 1
      %p264 = por %p262, %p263
      %p265 = scmp.ne.s32.totalorder %s257, %s260
      %p266 = scmp.eq.s32.totalorder %s33, 0
      %p267 = por %p265, %p266
      %p268 = scmp.ne.s32.totalorder %s257, %s260
      %p269 = scmp.eq.s32.totalorder %s38, 1
      %p270 = por %p268, %p269
      %p271 = scmp.ne.s32.totalorder %s260, %s261
      %p272 = scmp.eq.s32.totalorder %s38, 0
      %p273 = por %p271, %p272
      %p274 = scmp.ne.s32.totalorder %s260, %s261
      %p275 = scmp.eq.s32.totalorder %s39, 1
      %p276 = por %p274, %p275
      %p278 = scmp.ne.s32.totalorder %s261, %s277
      %p279 = scmp.eq.s32.totalorder %s39, 0
      %p280 = por %p278, %p279
      %s281 = ssub.s32 %s33, %s40
      %p282 = scmp.eq.s32.totalorder %s281, 0
      %s284 = sadd.s32 %s283, 1
      %s285 = scalar_select %p282, %s283, %s284
      %p288 = pneg %p282
      %p289 = scmp.eq.s32.totalorder %s33, 1
      %p290 = por %p288, %p289
      %p291 = scmp.ne.s32.totalorder %s283, %s286
      %p292 = scmp.eq.s32.totalorder %s33, 0
      %p293 = por %p291, %p292
      %p294 = scmp.ne.s32.totalorder %s283, %s286
      %p295 = scmp.eq.s32.totalorder %s38, 1
      %p296 = por %p294, %p295
      %p297 = scmp.ne.s32.totalorder %s286, %s287
      %p298 = scmp.eq.s32.totalorder %s38, 0
      %p299 = por %p297, %p298
      %p300 = scmp.ne.s32.totalorder %s286, %s287
      %p301 = scmp.eq.s32.totalorder %s39, 1
      %p302 = por %p300, %p301
      %p304 = scmp.ne.s32.totalorder %s287, %s303
      %p305 = scmp.eq.s32.totalorder %s39, 0
      %p306 = por %p304, %p305
      %s307 = ssub.s32 %s33, %s40
      %p308 = scmp.eq.s32.totalorder %s307, 0
      %s310 = sadd.s32 %s309, 1
      %s311 = scalar_select %p308, %s309, %s310
      %p314 = pneg %p308
      %p315 = scmp.eq.s32.totalorder %s33, 1
      %p316 = por %p314, %p315
      %p317 = scmp.ne.s32.totalorder %s309, %s312
      %p318 = scmp.eq.s32.totalorder %s33, 0
      %p319 = por %p317, %p318
      %p320 = scmp.ne.s32.totalorder %s309, %s312
      %p321 = scmp.eq.s32.totalorder %s38, 1
      %p322 = por %p320, %p321
      %p323 = scmp.ne.s32.totalorder %s312, %s313
      %p324 = scmp.eq.s32.totalorder %s38, 0
      %p325 = por %p323, %p324
      %p326 = scmp.ne.s32.totalorder %s312, %s313
      %p327 = scmp.eq.s32.totalorder %s39, 1
      %p328 = por %p326, %p327
      %p330 = scmp.ne.s32.totalorder %s313, %s329
      %p331 = scmp.eq.s32.totalorder %s39, 0
      %p332 = por %p330, %p331
      %s333 = ssub.s32 %s33, %s40
      %p334 = scmp.eq.s32.totalorder %s333, 0
      %s336 = sadd.s32 %s335, 1
      %s337 = scalar_select %p334, %s335, %s336
      %p340 = pneg %p334
      %p341 = scmp.eq.s32.totalorder %s33, 1
      %p342 = por %p340, %p341
      %p343 = scmp.ne.s32.totalorder %s335, %s338
      %p344 = scmp.eq.s32.totalorder %s33, 0
      %p345 = por %p343, %p344
      %p346 = scmp.ne.s32.totalorder %s335, %s338
      %p347 = scmp.eq.s32.totalorder %s38, 1
      %p348 = por %p346, %p347
      %p349 = scmp.ne.s32.totalorder %s338, %s339
      %p350 = scmp.eq.s32.totalorder %s38, 0
      %p351 = por %p349, %p350
      %p352 = scmp.ne.s32.totalorder %s338, %s339
      %p353 = scmp.eq.s32.totalorder %s39, 1
      %p354 = por %p352, %p353
      %p356 = scmp.ne.s32.totalorder %s339, %s355
      %p357 = scmp.eq.s32.totalorder %s39, 0
      %p358 = por %p356, %p357
      %s359 = ssub.s32 %s33, %s40
      %p360 = scmp.eq.s32.totalorder %s359, 0
      %s362 = sadd.s32 %s361, 1
      %s363 = scalar_select %p360, %s361, %s362
      %p366 = pneg %p360
      %p367 = scmp.eq.s32.totalorder %s33, 1
      %p368 = por %p366, %p367
      %p369 = scmp.ne.s32.totalorder %s361, %s364
      %p370 = scmp.eq.s32.totalorder %s33, 0
      %p371 = por %p369, %p370
      %p372 = scmp.ne.s32.totalorder %s361, %s364
      %p373 = scmp.eq.s32.totalorder %s38, 1
      %p374 = por %p372, %p373
      %p375 = scmp.ne.s32.totalorder %s364, %s365
      %p376 = scmp.eq.s32.totalorder %s38, 0
      %p377 = por %p375, %p376
      %p378 = scmp.ne.s32.totalorder %s364, %s365
      %p379 = scmp.eq.s32.totalorder %s39, 1
      %p380 = por %p378, %p379
      %p382 = scmp.ne.s32.totalorder %s365, %s381
      %p383 = scmp.eq.s32.totalorder %s39, 0
      %p384 = por %p382, %p383
      %s385 = ssub.s32 %s33, %s40
      %p386 = scmp.eq.s32.totalorder %s385, 0
      %s388 = sadd.s32 %s387, 1
      %s389 = scalar_select %p386, %s387, %s388
      %p392 = pneg %p386
      %p393 = scmp.eq.s32.totalorder %s33, 1
      %p394 = por %p392, %p393
      %p395 = scmp.ne.s32.totalorder %s387, %s390
      %p396 = scmp.eq.s32.totalorder %s33, 0
      %p397 = por %p395, %p396
      %p398 = scmp.ne.s32.totalorder %s387, %s390
      %p399 = scmp.eq.s32.totalorder %s38, 1
      %p400 = por %p398, %p399
      %p401 = scmp.ne.s32.totalorder %s390, %s391
      %p402 = scmp.eq.s32.totalorder %s38, 0
      %p403 = por %p401, %p402
      %p404 = scmp.ne.s32.totalorder %s390, %s391
      %p405 = scmp.eq.s32.totalorder %s39, 1
      %p406 = por %p404, %p405
      %p408 = scmp.ne.s32.totalorder %s391, %s407
      %p409 = scmp.eq.s32.totalorder %s39, 0
      %p410 = por %p408, %p409
      %s411 = ssub.s32 %s33, %s40
      %p412 = scmp.eq.s32.totalorder %s411, 0
      %s414 = sadd.s32 %s413, 1
      %s415 = scalar_select %p412, %s413, %s414
      %p418 = pneg %p412
      %p419 = scmp.eq.s32.totalorder %s33, 1
      %p420 = por %p418, %p419
      %p421 = scmp.ne.s32.totalorder %s413, %s416
      %p422 = scmp.eq.s32.totalorder %s33, 0
      %p423 = por %p421, %p422
      %p424 = scmp.ne.s32.totalorder %s413, %s416
      %p425 = scmp.eq.s32.totalorder %s38, 1
      %p426 = por %p424, %p425
      %p427 = scmp.ne.s32.totalorder %s416, %s417
      %p428 = scmp.eq.s32.totalorder %s38, 0
      %p429 = por %p427, %p428
      %p430 = scmp.ne.s32.totalorder %s416, %s417
      %p431 = scmp.eq.s32.totalorder %s39, 1
      %p432 = por %p430, %p431
      %p434 = scmp.ne.s32.totalorder %s417, %s433
      %p435 = scmp.eq.s32.totalorder %s39, 0
      %p436 = por %p434, %p435
      %s438 = sadd.s32 %s437, 1
      %p441 = scmp.eq.s32.totalorder %s33, 1
      %p442 = scmp.ne.s32.totalorder %s437, %s439
      %p443 = scmp.eq.s32.totalorder %s33, 0
      %p444 = por %p442, %p443
      %p445 = scmp.ne.s32.totalorder %s437, %s439
      %p446 = scmp.eq.s32.totalorder %s38, 1
      %p447 = por %p445, %p446
      %p448 = scmp.ne.s32.totalorder %s439, %s440
      %p449 = scmp.eq.s32.totalorder %s38, 0
      %p450 = por %p448, %p449
      %p451 = scmp.ne.s32.totalorder %s439, %s440
      %p452 = scmp.eq.s32.totalorder %s39, 1
      %p453 = por %p451, %p452
      %p455 = scmp.ne.s32.totalorder %s440, %s454
      %p456 = scmp.eq.s32.totalorder %s39, 0
      %p457 = por %p455, %p456
      %s459 = sadd.s32 %s458, 1
      %p462 = scmp.eq.s32.totalorder %s33, 1
      %p463 = scmp.ne.s32.totalorder %s458, %s460
      %p464 = scmp.eq.s32.totalorder %s33, 0
      %p465 = por %p463, %p464
      %p466 = scmp.ne.s32.totalorder %s458, %s460
      %p467 = scmp.eq.s32.totalorder %s38, 1
      %p468 = por %p466, %p467
      %p469 = scmp.ne.s32.totalorder %s460, %s461
      %p470 = scmp.eq.s32.totalorder %s38, 0
      %p471 = por %p469, %p470
      %p472 = scmp.ne.s32.totalorder %s460, %s461
      %p473 = scmp.eq.s32.totalorder %s39, 1
      %p474 = por %p472, %p473
      %p476 = scmp.ne.s32.totalorder %s461, %s475
      %p477 = scmp.eq.s32.totalorder %s39, 0
      %p478 = por %p476, %p477
      %s480 = sadd.s32 %s479, 1
      %p483 = scmp.eq.s32.totalorder %s33, 1
      %p484 = scmp.ne.s32.totalorder %s479, %s481
      %p485 = scmp.eq.s32.totalorder %s33, 0
      %p486 = por %p484, %p485
      %p487 = scmp.ne.s32.totalorder %s479, %s481
      %p488 = scmp.eq.s32.totalorder %s38, 1
      %p489 = por %p487, %p488
      %p490 = scmp.ne.s32.totalorder %s481, %s482
      %p491 = scmp.eq.s32.totalorder %s38, 0
      %p492 = por %p490, %p491
      %p493 = scmp.ne.s32.totalorder %s481, %s482
      %p494 = scmp.eq.s32.totalorder %s39, 1
      %p495 = por %p493, %p494
      %p497 = scmp.ne.s32.totalorder %s482, %s496
      %p498 = scmp.eq.s32.totalorder %s39, 0
      %p499 = por %p497, %p498
      %s501 = sadd.s32 %s500, 1
      %p504 = scmp.eq.s32.totalorder %s33, 1
      %p505 = scmp.ne.s32.totalorder %s500, %s502
      %p506 = scmp.eq.s32.totalorder %s33, 0
      %p507 = por %p505, %p506
      %p508 = scmp.ne.s32.totalorder %s500, %s502
      %p509 = scmp.eq.s32.totalorder %s38, 1
      %p510 = por %p508, %p509
      %p511 = scmp.ne.s32.totalorder %s502, %s503
      %p512 = scmp.eq.s32.totalorder %s38, 0
      %p513 = por %p511, %p512
      %p514 = scmp.ne.s32.totalorder %s502, %s503
      %p515 = scmp.eq.s32.totalorder %s39, 1
      %p516 = por %p514, %p515
      %p518 = scmp.ne.s32.totalorder %s503, %s517
      %p519 = scmp.eq.s32.totalorder %s39, 0
      %p520 = por %p518, %p519
      %s522 = sadd.s32 %s521, 1
      %p525 = scmp.eq.s32.totalorder %s33, 1
      %p526 = scmp.ne.s32.totalorder %s521, %s523
      %p527 = scmp.eq.s32.totalorder %s33, 0
      %p528 = por %p526, %p527
      %p529 = scmp.ne.s32.totalorder %s521, %s523
      %p530 = scmp.eq.s32.totalorder %s38, 1
      %p531 = por %p529, %p530
      %p532 = scmp.ne.s32.totalorder %s523, %s524
      %p533 = scmp.eq.s32.totalorder %s38, 0
      %p534 = por %p532, %p533
      %p535 = scmp.ne.s32.totalorder %s523, %s524
      %p536 = scmp.eq.s32.totalorder %s39, 1
      %p537 = por %p535, %p536
      %p539 = scmp.ne.s32.totalorder %s524, %s538
      %p540 = scmp.eq.s32.totalorder %s39, 0
      %p541 = por %p539, %p540
      %p542 = scmp.le.s32.totalorder 1, %s33
      %p543 = scmp.lt.s32.totalorder %s33, 3
      %p544 = pnand %p542, %p543
      %p545 = pneg %p544
      // Predicated region
      $region9: #{bert_class_forward.1} parent=5 // pred_check
        _
      $region10: #{bert_class_forward.1} parent=5 // pred_check_branch
        %547 = sbr.rel (%p544) target = $region12
      $region11: #{bert_class_forward.1} parent=5 // pred_region
        %s548 = ssub.s32 %s33, 1
        // Predicated region
        $region13: #{bert_class_forward.1} parent=11 // pred_check
          %p549 = pneg %p54
        $region14: #{bert_class_forward.1} parent=11 // pred_check_branch
          %551 = sbr.rel (%p549) target = $region16
        $region15: #{bert_class_forward.1} parent=11 // pred_region
          _
        $region16: #{bert_class_forward.1} parent=11 // pred_fallthru
          _
        // Predicated region
        $region17: #{bert_class_forward.1} parent=11 // pred_check
          %p552 = pneg %p75
        $region18: #{bert_class_forward.1} parent=11 // pred_check_branch
          %554 = sbr.rel (%p552) target = $region20
        $region19: #{bert_class_forward.1} parent=11 // pred_region
          _
        $region20: #{bert_class_forward.1} parent=11 // pred_fallthru
          _
        // Predicated region
        $region21: #{bert_class_forward.1} parent=11 // pred_check
          %p555 = pneg %p96
        $region22: #{bert_class_forward.1} parent=11 // pred_check_branch
          %557 = sbr.rel (%p555) target = $region24
        $region23: #{bert_class_forward.1} parent=11 // pred_region
          _
        $region24: #{bert_class_forward.1} parent=11 // pred_fallthru
          _
        // Predicated region
        $region25: #{bert_class_forward.1} parent=11 // pred_check
          %p558 = pneg %p117
        $region26: #{bert_class_forward.1} parent=11 // pred_check_branch
          %560 = sbr.rel (%p558) target = $region28
        $region27: #{bert_class_forward.1} parent=11 // pred_region
          _
        $region28: #{bert_class_forward.1} parent=11 // pred_fallthru
          _
        // Predicated region
        $region29: #{bert_class_forward.1} parent=11 // pred_check
          %p561 = pneg %p450
        $region30: #{bert_class_forward.1} parent=11 // pred_check_branch
          %563 = sbr.rel (%p561) target = $region32
        $region31: #{bert_class_forward.1} parent=11 // pred_region
          _
        $region32: #{bert_class_forward.1} parent=11 // pred_fallthru
          _
        // Predicated region
        $region33: #{bert_class_forward.1} parent=11 // pred_check
          %p564 = pneg %p471
        $region34: #{bert_class_forward.1} parent=11 // pred_check_branch
          %566 = sbr.rel (%p564) target = $region36
        $region35: #{bert_class_forward.1} parent=11 // pred_region
          _
        $region36: #{bert_class_forward.1} parent=11 // pred_fallthru
          _
        // Predicated region
        $region37: #{bert_class_forward.1} parent=11 // pred_check
          %p567 = pneg %p492
        $region38: #{bert_class_forward.1} parent=11 // pred_check_branch
          %569 = sbr.rel (%p567) target = $region40
        $region39: #{bert_class_forward.1} parent=11 // pred_region
          _
        $region40: #{bert_class_forward.1} parent=11 // pred_fallthru
          _
        // Predicated region
        $region41: #{bert_class_forward.1} parent=11 // pred_check
          %p570 = pneg %p513
        $region42: #{bert_class_forward.1} parent=11 // pred_check_branch
          %572 = sbr.rel (%p570) target = $region44
        $region43: #{bert_class_forward.1} parent=11 // pred_region
          _
        $region44: #{bert_class_forward.1} parent=11 // pred_fallthru
          _
      $region12: #{bert_class_forward.1} parent=5 // pred_fallthru
        _
      %p573 = scmp.lt.s32.totalorder %s33, 2
      // Predicated region
      $region45: #{bert_class_forward.1} parent=5 // pred_check
        %p574 = pneg %p573
      $region46: #{bert_class_forward.1} parent=5 // pred_check_branch
        %576 = sbr.rel (%p574) target = $region48
      $region47: #{bert_class_forward.1} parent=5 // pred_region
        // Predicated region
        $region49: #{bert_class_forward.1} parent=47 // pred_check
          %p577 = pneg %p137
        $region50: #{bert_class_forward.1} parent=47 // pred_check_branch
          %579 = sbr.rel (%p577) target = $region52
        $region51: #{bert_class_forward.1} parent=47 // pred_region
          %s580 = sand.u32 %s127, 1
          %s581 = scalar_lea.sflag [#allocation4], %s580
          %s582 = sand.u32 %s127, 1
          %s583 = smul.addr %s582, 192
          %s584 = scalar_lea.vmem [#allocation3], %s583
          %s586 = ssub.s32 3072, 3072
          %587 = vsyncadd %s581, %s586
          %s588 = smul.addr %s33, 48
          %s589 = smul.addr %s588, 64
          %s590 = scalar_lea.hbm %s4, %s589
          %s591 = sshll.u32 %s584, 4
          %s592 = int_to_ptr.vmem [resolvable:$true] %s591
          %597 = dma.hbm_to_vmem [thread:$0]  %s590, 3072, %s592, %s581, 192, 192, 12
        $region52: #{bert_class_forward.1} parent=47 // pred_fallthru
          _
        // Predicated region
        $region53: #{bert_class_forward.1} parent=47 // pred_check
          %p598 = pneg %p163
        $region54: #{bert_class_forward.1} parent=47 // pred_check_branch
          %600 = sbr.rel (%p598) target = $region56
        $region55: #{bert_class_forward.1} parent=47 // pred_region
          %p601 = scmp.lt.s32.totalorder %s33, 1
          %s602 = scalar_select %p601, %s33, 1
          %s603 = smul.addr %s602, 3
          %s604 = scalar_lea.vmem %s5, %s603
        $region56: #{bert_class_forward.1} parent=47 // pred_fallthru
          _
        // Predicated region
        $region57: #{bert_class_forward.1} parent=47 // pred_check
          %p605 = pneg %p189
        $region58: #{bert_class_forward.1} parent=47 // pred_check_branch
          %607 = sbr.rel (%p605) target = $region60
        $region59: #{bert_class_forward.1} parent=47 // pred_region
          %p608 = scmp.lt.s32.totalorder %s33, 1
          %s609 = scalar_select %p608, %s33, 1
          %s610 = smul.addr %s609, 16
          %s611 = smul.addr %s610, 4
          %s612 = scalar_lea.vmem %s6, %s611
        $region60: #{bert_class_forward.1} parent=47 // pred_fallthru
          _
        // Predicated region
        $region61: #{bert_class_forward.1} parent=47 // pred_check
          %p613 = pneg %p215
        $region62: #{bert_class_forward.1} parent=47 // pred_check_branch
          %615 = sbr.rel (%p613) target = $region64
        $region63: #{bert_class_forward.1} parent=47 // pred_region
          %p616 = scmp.lt.s32.totalorder %s33, 1
          %s617 = scalar_select %p616, %s33, 1
          %s618 = scalar_lea.vmem %s7, %s617
        $region64: #{bert_class_forward.1} parent=47 // pred_fallthru
          _
        // Predicated region
        $region65: #{bert_class_forward.1} parent=47 // pred_check
          %p619 = pneg %p241
        $region66: #{bert_class_forward.1} parent=47 // pred_check_branch
          %621 = sbr.rel (%p619) target = $region68
        $region67: #{bert_class_forward.1} parent=47 // pred_region
          %p622 = scmp.lt.s32.totalorder %s33, 1
          %s623 = scalar_select %p622, %s33, 1
          %s624 = scalar_lea.vmem %s8, %s623
        $region68: #{bert_class_forward.1} parent=47 // pred_fallthru
          _
        // Predicated region
        $region69: #{bert_class_forward.1} parent=47 // pred_check
          %p625 = pneg %p267
        $region70: #{bert_class_forward.1} parent=47 // pred_check_branch
          %627 = sbr.rel (%p625) target = $region72
        $region71: #{bert_class_forward.1} parent=47 // pred_region
          %p628 = scmp.lt.s32.totalorder %s33, 1
          %s629 = scalar_select %p628, %s33, 1
          %s630 = scalar_lea.vmem %s9, %s629
        $region72: #{bert_class_forward.1} parent=47 // pred_fallthru
          _
        // Predicated region
        $region73: #{bert_class_forward.1} parent=47 // pred_check
          %p631 = pneg %p293
        $region74: #{bert_class_forward.1} parent=47 // pred_check_branch
          %633 = sbr.rel (%p631) target = $region76
        $region75: #{bert_class_forward.1} parent=47 // pred_region
          %s634 = sand.u32 %s33, 1
          %s635 = scalar_lea.sflag [#allocation7], %s634
          %s636 = sand.u32 %s283, 1
          %s637 = smul.addr %s636, 256
          %s638 = scalar_lea.vmem [#allocation6], %s637
          %s640 = ssub.s32 4096, 4096
          %641 = vsyncadd %s635, %s640
          %s642 = smul.addr %s33, 64
          %s643 = smul.addr %s642, 64
          %s644 = scalar_lea.hbm %s10, %s643
          %s645 = sshll.u32 %s638, 4
          %s646 = int_to_ptr.vmem [resolvable:$true] %s645
          %651 = dma.hbm_to_vmem [thread:$0]  %s644, 4096, %s646, %s635, 256, 256, 16
        $region76: #{bert_class_forward.1} parent=47 // pred_fallthru
          _
        // Predicated region
        $region77: #{bert_class_forward.1} parent=47 // pred_check
          %p652 = pneg %p319
        $region78: #{bert_class_forward.1} parent=47 // pred_check_branch
          %654 = sbr.rel (%p652) target = $region80
        $region79: #{bert_class_forward.1} parent=47 // pred_region
          %p655 = scmp.lt.s32.totalorder %s33, 1
          %s656 = scalar_select %p655, %s33, 1
          %s657 = smul.addr %s656, 4
          %s658 = scalar_lea.vmem %s11, %s657
        $region80: #{bert_class_forward.1} parent=47 // pred_fallthru
          _
        // Predicated region
        $region81: #{bert_class_forward.1} parent=47 // pred_check
          %p659 = pneg %p345
        $region82: #{bert_class_forward.1} parent=47 // pred_check_branch
          %661 = sbr.rel (%p659) target = $region84
        $region83: #{bert_class_forward.1} parent=47 // pred_region
          %s662 = sand.u32 %s33, 1
          %s663 = scalar_lea.sflag [#allocation7], %s662
          %s664 = sand.u32 %s335, 1
          %s665 = smul.addr %s664, 256
          %s666 = scalar_lea.vmem [#allocation8], %s665
          %s668 = ssub.s32 4096, 4096
          %669 = vsyncadd %s663, %s668
          %s670 = smul.addr %s33, 64
          %s671 = smul.addr %s670, 64
          %s672 = scalar_lea.hbm %s12, %s671
          %s673 = sshll.u32 %s666, 4
          %s674 = int_to_ptr.vmem [resolvable:$true] %s673
          %679 = dma.hbm_to_vmem [thread:$0]  %s672, 4096, %s674, %s663, 64, 64, 4
        $region84: #{bert_class_forward.1} parent=47 // pred_fallthru
          _
        // Predicated region
        $region85: #{bert_class_forward.1} parent=47 // pred_check
          %p680 = pneg %p371
        $region86: #{bert_class_forward.1} parent=47 // pred_check_branch
          %682 = sbr.rel (%p680) target = $region88
        $region87: #{bert_class_forward.1} parent=47 // pred_region
          %p683 = scmp.lt.s32.totalorder %s33, 1
          %s684 = scalar_select %p683, %s33, 1
          %s685 = scalar_lea.vmem %s13, %s684
        $region88: #{bert_class_forward.1} parent=47 // pred_fallthru
          _
        // Predicated region
        $region89: #{bert_class_forward.1} parent=47 // pred_check
          %p686 = pneg %p397
        $region90: #{bert_class_forward.1} parent=47 // pred_check_branch
          %688 = sbr.rel (%p686) target = $region92
        $region91: #{bert_class_forward.1} parent=47 // pred_region
          %p689 = scmp.lt.s32.totalorder %s33, 1
          %s690 = scalar_select %p689, %s33, 1
          %s691 = scalar_lea.vmem %s14, %s690
        $region92: #{bert_class_forward.1} parent=47 // pred_fallthru
          _
        // Predicated region
        $region93: #{bert_class_forward.1} parent=47 // pred_check
          %p692 = pneg %p423
        $region94: #{bert_class_forward.1} parent=47 // pred_check_branch
          %694 = sbr.rel (%p692) target = $region96
        $region95: #{bert_class_forward.1} parent=47 // pred_region
          %p695 = scmp.lt.s32.totalorder %s33, 1
          %s696 = scalar_select %p695, %s33, 1
          %s697 = scalar_lea.vmem %s15, %s696
        $region96: #{bert_class_forward.1} parent=47 // pred_fallthru
          _
      $region48: #{bert_class_forward.1} parent=5 // pred_fallthru
        _
      %p698 = scmp.le.s32.totalorder 1, %s33
      %p699 = scmp.lt.s32.totalorder %s33, 3
      %p700 = pnand %p698, %p699
      %p701 = pneg %p700
      // Predicated region
      $region97: #{bert_class_forward.1} parent=5 // pred_check
        _
      $region98: #{bert_class_forward.1} parent=5 // pred_check_branch
        %703 = sbr.rel (%p700) target = $region100
      $region99: #{bert_class_forward.1} parent=5 // pred_region
        %s704 = ssub.s32 %s33, 1
        %s705 = sand.u32 %s130, 1
        %s706 = scalar_lea.sflag [#allocation4], %s705
        %s707 = sand.u32 %s130, 1
        %s708 = smul.addr %s707, 192
        %s709 = scalar_lea.vmem [#allocation3], %s708
        // Predicated region
        $region101: #{bert_class_forward.1} parent=99 // pred_check
          %p710 = pneg %p143
        $region102: #{bert_class_forward.1} parent=99 // pred_check_branch
          %712 = sbr.rel (%p710) target = $region104
        $region103: #{bert_class_forward.1} parent=99 // pred_region
          %713 = dma.done %s706, 3072
        $region104: #{bert_class_forward.1} parent=99 // pred_fallthru
          _
        %s714 = sand.u32 %s38, 1
        %s715 = scalar_lea.sflag [#allocation7], %s714
        %s716 = sand.u32 %s286, 1
        %s717 = smul.addr %s716, 256
        %s718 = scalar_lea.vmem [#allocation6], %s717
        // Predicated region
        $region105: #{bert_class_forward.1} parent=99 // pred_check
          %p719 = pneg %p299
        $region106: #{bert_class_forward.1} parent=99 // pred_check_branch
          %721 = sbr.rel (%p719) target = $region108
        $region107: #{bert_class_forward.1} parent=99 // pred_region
          %722 = dma.done %s715, 4096
        $region108: #{bert_class_forward.1} parent=99 // pred_fallthru
          _
        %s723 = sand.u32 %s38, 1
        %s724 = scalar_lea.sflag [#allocation7], %s723
        %s725 = sand.u32 %s338, 1
        %s726 = smul.addr %s725, 256
        %s727 = scalar_lea.vmem [#allocation8], %s726
        // Predicated region
        $region109: #{bert_class_forward.1} parent=99 // pred_check
          %p728 = pneg %p351
        $region110: #{bert_class_forward.1} parent=99 // pred_check_branch
          %730 = sbr.rel (%p728) target = $region112
        $region111: #{bert_class_forward.1} parent=99 // pred_region
          %731 = dma.done %s724, 4096
        $region112: #{bert_class_forward.1} parent=99 // pred_fallthru
          _
        %p732 = pneg %p54
        %p733 = pneg %p51
        %p734 = pneg %p75
        %p735 = pneg %p72
        %p736 = pneg %p96
        %p737 = pneg %p93
        %p738 = pneg %p117
        %p739 = pneg %p114
        %s740 = sand.u32 %s130, 1
        %s741 = scalar_lea.sflag [#allocation4], %s740
        %s742 = sand.u32 %s130, 1
        %s743 = smul.addr %s742, 192
        %s744 = scalar_lea.vmem [#allocation3], %s743
        %p745 = pneg %p143
        %p746 = pneg %p140
        %p747 = scmp.lt.s32.totalorder %s38, 1
        %s748 = scalar_select %p747, %s38, 1
        %s749 = smul.addr %s748, 3
        %s750 = scalar_lea.vmem %s5, %s749
        %p751 = pneg %p169
        %p752 = pneg %p166
        %p753 = scmp.lt.s32.totalorder %s38, 1
        %s754 = scalar_select %p753, %s38, 1
        %s755 = smul.addr %s754, 16
        %s756 = smul.addr %s755, 4
        %s757 = scalar_lea.vmem %s6, %s756
        %p758 = pneg %p195
        %p759 = pneg %p192
        %p760 = scmp.lt.s32.totalorder %s38, 1
        %s761 = scalar_select %p760, %s38, 1
        %s762 = scalar_lea.vmem %s7, %s761
        %p763 = pneg %p221
        %p764 = pneg %p218
        %p765 = scmp.lt.s32.totalorder %s38, 1
        %s766 = scalar_select %p765, %s38, 1
        %s767 = scalar_lea.vmem %s8, %s766
        %p768 = pneg %p247
        %p769 = pneg %p244
        %p770 = scmp.lt.s32.totalorder %s38, 1
        %s771 = scalar_select %p770, %s38, 1
        %s772 = scalar_lea.vmem %s9, %s771
        %p773 = pneg %p273
        %p774 = pneg %p270
        %s775 = sand.u32 %s38, 1
        %s776 = scalar_lea.sflag [#allocation7], %s775
        %s777 = sand.u32 %s286, 1
        %s778 = smul.addr %s777, 256
        %s779 = scalar_lea.vmem [#allocation6], %s778
        %p780 = pneg %p299
        %p781 = pneg %p296
        %p782 = scmp.lt.s32.totalorder %s38, 1
        %s783 = scalar_select %p782, %s38, 1
        %s784 = smul.addr %s783, 4
        %s785 = scalar_lea.vmem %s11, %s784
        %p786 = pneg %p325
        %p787 = pneg %p322
        %s788 = sand.u32 %s38, 1
        %s789 = scalar_lea.sflag [#allocation7], %s788
        %s790 = sand.u32 %s338, 1
        %s791 = smul.addr %s790, 256
        %s792 = scalar_lea.vmem [#allocation8], %s791
        %p793 = pneg %p351
        %p794 = pneg %p348
        %p795 = scmp.lt.s32.totalorder %s38, 1
        %s796 = scalar_select %p795, %s38, 1
        %s797 = scalar_lea.vmem %s13, %s796
        %p798 = pneg %p377
        %p799 = pneg %p374
        %p800 = scmp.lt.s32.totalorder %s38, 1
        %s801 = scalar_select %p800, %s38, 1
        %s802 = scalar_lea.vmem %s14, %s801
        %p803 = pneg %p403
        %p804 = pneg %p400
        %p805 = scmp.lt.s32.totalorder %s38, 1
        %s806 = scalar_select %p805, %s38, 1
        %s807 = scalar_lea.vmem %s15, %s806
        %p808 = pneg %p429
        %p809 = pneg %p426
        %p810 = pneg %p450
        %p811 = pneg %p447
        %p812 = pneg %p471
        %p813 = pneg %p468
        %p814 = pneg %p492
        %p815 = pneg %p489
        %p816 = pneg %p513
        %p817 = pneg %p510
        %p818 = pneg %p534
        %p819 = pneg %p531
        %p820 = scmp.lt.s32.totalorder %s38, 1
        %s821 = scalar_select %p820, %s38, 1
        %s822 = smul.addr %s821, 3
        %s823 = scalar_lea.vmem %s5, %s822
        %p824 = scmp.lt.s32.totalorder %s38, 1
        %s825 = scalar_select %p824, %s38, 1
        %s826 = smul.addr %s825, 16
        %s827 = smul.addr %s826, 4
        %s828 = scalar_lea.vmem %s6, %s827
        %p829 = scmp.lt.s32.totalorder %s38, 1
        %s830 = scalar_select %p829, %s38, 1
        %s831 = scalar_lea.vmem %s7, %s830
        %p832 = scmp.lt.s32.totalorder %s38, 1
        %s833 = scalar_select %p832, %s38, 1
        %s834 = scalar_lea.vmem %s8, %s833
        %p835 = scmp.lt.s32.totalorder %s38, 1
        %s836 = scalar_select %p835, %s38, 1
        %s837 = scalar_lea.vmem %s9, %s836
        %p838 = scmp.lt.s32.totalorder %s38, 1
        %s839 = scalar_select %p838, %s38, 1
        %s840 = smul.addr %s839, 4
        %s841 = scalar_lea.vmem %s11, %s840
        %p842 = scmp.lt.s32.totalorder %s38, 1
        %s843 = scalar_select %p842, %s38, 1
        %s844 = scalar_lea.vmem %s13, %s843
        %p845 = scmp.lt.s32.totalorder %s38, 1
        %s846 = scalar_select %p845, %s38, 1
        %s847 = scalar_lea.vmem %s14, %s846
        %p848 = scmp.lt.s32.totalorder %s38, 1
        %s849 = scalar_select %p848, %s38, 1
        %s850 = scalar_lea.vmem %s15, %s849
        %p852 = scmp.eq.s32.totalorder %s38, 0
        // Predicated region
        $region113: #{bert_class_forward.1} parent=99 // pred_check
          %p853 = pneg %p852
        $region114: #{bert_class_forward.1} parent=99 // pred_check_branch
          %855 = sbr.rel (%p853) target = $region116
        $region115: #{bert_class_forward.1} parent=99 // pred_region
          %v856 = vld [vmem:[%s0] sm:$0xff]
          %v857 = vld [vmem:[%s0 + $0x8] sm:$0xff]
          %v858 = vld [vmem:[%s2] sm:$0x1]
          %v859 = vld [vmem:[%s3] sm:$0x1]
          %860 = vadd.xlane.f32.xlu0 %v856
          %v861 = vpop.xlane.xlu0 %860
          %862 = vadd.xlane.f32.xlu0 %v857
          %v863 = vpop.xlane.xlu0 %862
          %v864 = vrcp.pop 128.0
          %v865 = vmul.f32 %v861, %v864
          %v866 = vmul.f32 %v863, %v864
          %v867 = vsub.f32 %v856, %v865
          %v868 = vsub.f32 %v857, %v866
          %v869 = vmul.f32 %v867, %v867
          %v870 = vmul.f32 %v868, %v868
          %871 = vadd.xlane.f32.xlu0 %v869
          %v872 = vpop.xlane.xlu0 %871
          %873 = vadd.xlane.f32.xlu0 %v870
          %v874 = vpop.xlane.xlu0 %873
          %v875 = vmul.f32 %v872, %v864
          %v876 = vmul.f32 %v874, %v864
          %v877 = vadd.f32 %v875, 1e-12
          %v878 = vadd.f32 %v876, 1e-12
          %v879 = vrsqrt.pop %v877
          %v880 = vrsqrt.pop %v878
          %v881 = vmul.f32 %v867, %v879
          %v882 = vmul.f32 %v868, %v880
          %v884 = vlaneseq
          %v885 = vshrl.u32 %v884, 7
          %v886 = vsub.s32 0, %v885
          %v887 = vrot.slane %v858, %v886
          %v889 = vmul.f32 %v881, %v887
          %v890 = vmul.f32 %v882, %v887
          %v892 = vlaneseq
          %v893 = vshrl.u32 %v892, 7
          %v894 = vsub.s32 0, %v893
          %v895 = vrot.slane %v859, %v894
          %v897 = vadd.f32 %v889, %v895
          %v898 = vadd.f32 %v890, %v895
          %899 = vst [vmem:[#allocation2] sm:$0xff] %v897
          %900 = vst [vmem:[#allocation2 + $0x8] sm:$0xff] %v898
        $region116: #{bert_class_forward.1} parent=99 // pred_fallthru
          _
        %v901 = vld [vmem:[#allocation2] sm:$0xff]
        %v902 = vld [vmem:[#allocation2 + $0x8] sm:$0xff]
        %v903 = vpack.c.bf16 %v902, %v901
        %v904 = vld [vmem:[%s709] sm:$0xff]
        %v905 = vld [vmem:[%s709 + $0x8] sm:$0xf]
        %v906 = vld [vmem:[%s709 + $0xc] sm:$0xff]
        %v907 = vld [vmem:[%s709 + $0x14] sm:$0xf]
        %v908 = vld [vmem:[%s709 + $0x18] sm:$0xff]
        %v909 = vld [vmem:[%s709 + $0x20] sm:$0xf]
        %v910 = vld [vmem:[%s709 + $0x24] sm:$0xff]
        %v911 = vld [vmem:[%s709 + $0x2c] sm:$0xf]
        %v912 = vld [vmem:[%s709 + $0x30] sm:$0xff]
        %v913 = vld [vmem:[%s709 + $0x38] sm:$0xf]
        %v914 = vld [vmem:[%s709 + $0x3c] sm:$0xff]
        %v915 = vld [vmem:[%s709 + $0x44] sm:$0xf]
        %v916 = vld [vmem:[%s709 + $0x48] sm:$0xff]
        %v917 = vld [vmem:[%s709 + $0x50] sm:$0xf]
        %v918 = vld [vmem:[%s709 + $0x54] sm:$0xff]
        %v919 = vld [vmem:[%s709 + $0x5c] sm:$0xf]
        %v920 = vld [vmem:[%s709 + $0x60] sm:$0xff]
        %v921 = vld [vmem:[%s709 + $0x68] sm:$0xf]
        %v922 = vld [vmem:[%s709 + $0x6c] sm:$0xff]
        %v923 = vld [vmem:[%s709 + $0x74] sm:$0xf]
        %v924 = vld [vmem:[%s709 + $0x78] sm:$0xff]
        %v925 = vld [vmem:[%s709 + $0x80] sm:$0xf]
        %v926 = vld [vmem:[%s709 + $0x84] sm:$0xff]
        %v927 = vld [vmem:[%s709 + $0x8c] sm:$0xf]
        %v928 = vld [vmem:[%s709 + $0x90] sm:$0xff]
        %v929 = vld [vmem:[%s709 + $0x98] sm:$0xf]
        %v930 = vld [vmem:[%s709 + $0x9c] sm:$0xff]
        %v931 = vld [vmem:[%s709 + $0xa4] sm:$0xf]
        %v932 = vld [vmem:[%s709 + $0xa8] sm:$0xff]
        %v933 = vld [vmem:[%s709 + $0xb0] sm:$0xf]
        %v934 = vld [vmem:[%s709 + $0xb4] sm:$0xff]
        %v935 = vld [vmem:[%s709 + $0xbc] sm:$0xf]
        %v936 = vld [vmem:[%s823] sm:$0x7]
        %v938 = vlaneseq
        %v939 = vshrl.u32 %v938, 7
        %v940 = vsub.s32 0, %v939
        %v941 = vrot.slane %v936, %v940
        %v942 = vlaneseq
        %v943 = vshrl.u32 %v942, 7
        %v944 = vsub.s32 1, %v943
        %v945 = vrot.slane %v936, %v944
        %v946 = vlaneseq
        %v947 = vshrl.u32 %v946, 7
        %v948 = vsub.s32 2, %v947
        %v949 = vrot.slane %v936, %v948
        %v985 = vunpack.c.l.b16 %v904
        %v986 = vunpack.c.h.b16 %v904
        %v987 = vunpack.c.l.b16 %v905
        %v988 = vunpack.c.l.b16 %v906
        %v989 = vunpack.c.h.b16 %v906
        %v990 = vunpack.c.l.b16 %v907
        %v991 = vunpack.c.l.b16 %v908
        %v992 = vunpack.c.h.b16 %v908
        %v993 = vunpack.c.l.b16 %v909
        %v994 = vunpack.c.l.b16 %v910
        %v995 = vunpack.c.h.b16 %v910
        %v996 = vunpack.c.l.b16 %v911
        %v997 = vunpack.c.l.b16 %v912
        %v998 = vunpack.c.h.b16 %v912
        %v999 = vunpack.c.l.b16 %v913
        %v1000 = vunpack.c.l.b16 %v914
        %v1001 = vunpack.c.h.b16 %v914
        %v1002 = vunpack.c.l.b16 %v915
        %v1003 = vunpack.c.l.b16 %v916
        %v1004 = vunpack.c.h.b16 %v916
        %v1005 = vunpack.c.l.b16 %v917
        %v1006 = vunpack.c.l.b16 %v918
        %v1007 = vunpack.c.h.b16 %v918
        %v1008 = vunpack.c.l.b16 %v919
        %v1009 = vunpack.c.l.b16 %v920
        %v1010 = vunpack.c.h.b16 %v920
        %v1011 = vunpack.c.l.b16 %v921
        %v1012 = vunpack.c.l.b16 %v922
        %v1013 = vunpack.c.h.b16 %v922
        %v1014 = vunpack.c.l.b16 %v923
        %v1015 = vunpack.c.l.b16 %v924
        %v1016 = vunpack.c.h.b16 %v924
        %v1017 = vunpack.c.l.b16 %v925
        %v1018 = vunpack.c.l.b16 %v926
        %v1019 = vunpack.c.h.b16 %v926
        %v1020 = vunpack.c.l.b16 %v927
        %v1021 = vunpack.c.l.b16 %v928
        %v1022 = vunpack.c.h.b16 %v928
        %v1023 = vunpack.c.l.b16 %v929
        %v1024 = vunpack.c.l.b16 %v930
        %v1025 = vunpack.c.h.b16 %v930
        %v1026 = vunpack.c.l.b16 %v931
        %v1027 = vunpack.c.l.b16 %v932
        %v1028 = vunpack.c.h.b16 %v932
        %v1029 = vunpack.c.l.b16 %v933
        %v1030 = vunpack.c.l.b16 %v934
        %v1031 = vunpack.c.h.b16 %v934
        %v1032 = vunpack.c.l.b16 %v935
        %v1033 = vpack.c.b16 %v988, %v985
        %v1034 = vpack.c.b16 %v989, %v986
        %v1035 = vpack.c.b16 %v990, %v987
        %v1036 = vpack.c.b16 %v994, %v991
        %v1037 = vpack.c.b16 %v995, %v992
        %v1038 = vpack.c.b16 %v996, %v993
        %v1039 = vpack.c.b16 %v1000, %v997
        %v1040 = vpack.c.b16 %v1001, %v998
        %v1041 = vpack.c.b16 %v1002, %v999
        %v1042 = vpack.c.b16 %v1006, %v1003
        %v1043 = vpack.c.b16 %v1007, %v1004
        %v1044 = vpack.c.b16 %v1008, %v1005
        %v1045 = vpack.c.b16 %v1012, %v1009
        %v1046 = vpack.c.b16 %v1013, %v1010
        %v1047 = vpack.c.b16 %v1014, %v1011
        %v1048 = vpack.c.b16 %v1018, %v1015
        %v1049 = vpack.c.b16 %v1019, %v1016
        %v1050 = vpack.c.b16 %v1020, %v1017
        %v1051 = vpack.c.b16 %v1024, %v1021
        %v1052 = vpack.c.b16 %v1025, %v1022
        %v1053 = vpack.c.b16 %v1026, %v1023
        %v1054 = vpack.c.b16 %v1030, %v1027
        %v1055 = vpack.c.b16 %v1031, %v1028
        %v1056 = vpack.c.b16 %v1032, %v1029
        %1081 = vmatprep.subr.bf16.mxu0 %v1055
        %1082 = vmatpush1.bf16.msra.mxu0 %v1054
        %1083 = vmatprep.subr.bf16.mxu0 %v1052
        %1084 = vmatpush1.bf16.msra.mxu0 %v1051
        %1085 = vmatprep.subr.bf16.mxu0 %v1049
        %1086 = vmatpush1.bf16.msra.mxu0 %v1048
        %1087 = vmatprep.subr.bf16.mxu0 %v1046
        %1088 = vmatpush1.bf16.msra.mxu0 %v1045
        %1089 = vmatprep.subr.bf16.mxu0 %v1043
        %1090 = vmatpush1.bf16.msra.mxu0 %v1042
        %1091 = vmatprep.subr.bf16.mxu0 %v1040
        %1092 = vmatpush1.bf16.msra.mxu0 %v1039
        %1093 = vmatprep.subr.bf16.mxu0 %v1037
        %1094 = vmatpush1.bf16.msra.mxu0 %v1036
        %1095 = vmatprep.subr.bf16.mxu0 %v1034
        %1096 = vmatpush1.bf16.msra.mxu0 %v1033
        %1097 = vmatprep.subr.bf16.mxu0 0
        %1098 = vmatpush2.bf16.msra.mxu0 0
        %1099 = vmatprep.subr.bf16.mxu0 0
        %1100 = vmatpush2.bf16.msra.mxu0 0
        %1101 = vmatprep.subr.bf16.mxu0 0
        %1102 = vmatpush2.bf16.msra.mxu0 0
        %1103 = vmatprep.subr.bf16.mxu0 0
        %1104 = vmatpush2.bf16.msra.mxu0 0
        %1105 = vmatprep.subr.bf16.mxu0 0
        %1106 = vmatpush2.bf16.msra.mxu0 0
        %1107 = vmatprep.subr.bf16.mxu0 0
        %1108 = vmatpush2.bf16.msra.mxu0 0
        %1109 = vmatprep.subr.bf16.mxu0 0
        %1110 = vmatpush2.bf16.msra.mxu0 0
        %1111 = vmatprep.subr.bf16.mxu0 0
        %1112 = vmatpush2.bf16.msra.mxu0 0
        %1113 = vmatprep.mubr.bf16.mxu0 0
        %1114 = vmatmul.mubr.bf16.gmra.mxu0 %v903
        %v1115 = vpop.f32.mrf.mxu0
        %v1116 = vadd.f32 %v941, %v1115
        %v1117 = vpop.f32.mrf.mxu0
        %v1118 = vadd.f32 %v945, %v1117
        %v1119 = vpop.f32.mrf.mxu0
        %v1120 = vadd.f32 %v941, %v1119
        %v1121 = vpop.f32.mrf.mxu0
        %v1122 = vadd.f32 %v945, %v1121
        %1123 = vdwg.mxu0
        %1124 = vmatprep.subr.bf16.mxu0 0
        %1125 = vmatpush1.bf16.msra.mxu0 %v1056
        %1126 = vmatprep.subr.bf16.mxu0 0
        %1127 = vmatpush1.bf16.msra.mxu0 %v1053
        %1128 = vmatprep.subr.bf16.mxu0 0
        %1129 = vmatpush1.bf16.msra.mxu0 %v1050
        %1130 = vmatprep.subr.bf16.mxu0 0
        %1131 = vmatpush1.bf16.msra.mxu0 %v1047
        %1132 = vmatprep.subr.bf16.mxu0 0
        %1133 = vmatpush1.bf16.msra.mxu0 %v1044
        %1134 = vmatprep.subr.bf16.mxu0 0
        %1135 = vmatpush1.bf16.msra.mxu0 %v1041
        %1136 = vmatprep.subr.bf16.mxu0 0
        %1137 = vmatpush1.bf16.msra.mxu0 %v1038
        %1138 = vmatprep.subr.bf16.mxu0 0
        %1139 = vmatpush1.bf16.msra.mxu0 %v1035
        %1140 = vmatprep.subr.bf16.mxu0 0
        %1141 = vmatpush2.bf16.msra.mxu0 0
        %1142 = vmatprep.subr.bf16.mxu0 0
        %1143 = vmatpush2.bf16.msra.mxu0 0
        %1144 = vmatprep.subr.bf16.mxu0 0
        %1145 = vmatpush2.bf16.msra.mxu0 0
        %1146 = vmatprep.subr.bf16.mxu0 0
        %1147 = vmatpush2.bf16.msra.mxu0 0
        %1148 = vmatprep.subr.bf16.mxu0 0
        %1149 = vmatpush2.bf16.msra.mxu0 0
        %1150 = vmatprep.subr.bf16.mxu0 0
        %1151 = vmatpush2.bf16.msra.mxu0 0
        %1152 = vmatprep.subr.bf16.mxu0 0
        %1153 = vmatpush2.bf16.msra.mxu0 0
        %1154 = vmatprep.subr.bf16.mxu0 0
        %1155 = vmatpush2.bf16.msra.mxu0 0
        %1156 = vmatprep.mubr.bf16.mxu0 0
        %1157 = vmatmul.mubr.bf16.gmra.mxu0 %v903
        %v1158 = vpop.f32.mrf.mxu0
        %v1159 = vadd.f32 %v949, %v1158
        %v1160 = vpop.f32.mrf.mxu0
        %v1161 = vpop.f32.mrf.mxu0
        %v1162 = vadd.f32 %v949, %v1161
        %v1163 = vpop.f32.mrf.mxu0
        %1164 = vdwg.mxu0
        %v1165 = vld [vmem:[%s1] sm:$0x1]
        %vm1166 = vcmask 523264
        %v1168 = vsel %vm1166, %v1116, 0
        %v1171 = vsel %vm1166, %v1118, 0
        %1173 = vmatprep.subr.mxu0 0.0
        %1174 = vmatpush1.xpose.msra.mxu0 0.0
        %1175 = vmatprep.subr.mxu0 0.0
        %1176 = vmatpush1.xpose.msra.mxu0 0.0
        %1177 = vmatprep.subr.mxu0 0.0
        %1178 = vmatpush1.xpose.msra.mxu0 0.0
        %1179 = vmatprep.subr.mxu0 0.0
        %1180 = vmatpush1.xpose.msra.mxu0 0.0
        %1181 = vmatprep.subr.mxu0 0.0
        %1182 = vmatpush1.xpose.msra.mxu0 0.0
        %1183 = vmatprep.subr.mxu0 0.0
        %1184 = vmatpush1.xpose.msra.mxu0 0.0
        %1185 = vmatprep.subr.mxu0 0.0
        %1186 = vmatpush1.xpose.msra.mxu0 0.0
        %1187 = vmatprep.subr.mxu0 0.0
        %1188 = vmatpush1.xpose.msra.mxu0 0.0
        %1189 = vmatprep.subr.mxu0 0.0
        %1190 = vmatpush1.xpose.msra.mxu0 0.0
        %1191 = vmatprep.subr.mxu0 0.0
        %1192 = vmatpush1.xpose.msra.mxu0 0.0
        %1193 = vmatprep.subr.mxu0 0.0
        %1194 = vmatpush1.xpose.msra.mxu0 0.0
        %1195 = vmatprep.subr.mxu0 0.0
        %1196 = vmatpush1.xpose.msra.mxu0 0.0
        %1197 = vmatprep.subr.mxu0 0.0
        %1198 = vmatpush1.xpose.msra.mxu0 0.0
        %1199 = vmatprep.subr.mxu0 0.0
        %1200 = vmatpush1.xpose.msra.mxu0 0.0
        %1201 = vmatprep.subr.mxu0 0.0
        %1202 = vmatpush1.xpose.msra.mxu0 0.0
        %1203 = vmatprep.subr.mxu0 0.0
        %1204 = vmatpush1.xpose.msra.mxu0 %v1171
        %1205 = vmatprep.subr.mxu0 0.0
        %1206 = vmatpush2.xpose.msra.mxu0 0.0
        %1207 = vmatprep.subr.mxu0 0.0
        %1208 = vmatpush2.xpose.msra.mxu0 0.0
        %1209 = vmatprep.subr.mxu0 0.0
        %1210 = vmatpush2.xpose.msra.mxu0 0.0
        %1211 = vmatprep.subr.mxu0 0.0
        %1212 = vmatpush2.xpose.msra.mxu0 0.0
        %1213 = vmatprep.subr.mxu0 0.0
        %1214 = vmatpush2.xpose.msra.mxu0 0.0
        %1215 = vmatprep.subr.mxu0 0.0
        %1216 = vmatpush2.xpose.msra.mxu0 0.0
        %1217 = vmatprep.subr.mxu0 0.0
        %1218 = vmatpush2.xpose.msra.mxu0 0.0
        %1219 = vmatprep.subr.mxu0 0.0
        %1220 = vmatpush2.xpose.msra.mxu0 0.0
        %1221 = vmatprep.subr.mxu0 0.0
        %1222 = vmatpush2.xpose.msra.mxu0 0.0
        %1223 = vmatprep.subr.mxu0 0.0
        %1224 = vmatpush2.xpose.msra.mxu0 0.0
        %1225 = vmatprep.subr.mxu0 0.0
        %1226 = vmatpush2.xpose.msra.mxu0 0.0
        %1227 = vmatprep.subr.mxu0 0.0
        %1228 = vmatpush2.xpose.msra.mxu0 0.0
        %1229 = vmatprep.subr.mxu0 0.0
        %1230 = vmatpush2.xpose.msra.mxu0 0.0
        %1231 = vmatprep.subr.mxu0 0.0
        %1232 = vmatpush2.xpose.msra.mxu0 0.0
        %1233 = vmatprep.subr.mxu0 0.0
        %1234 = vmatpush2.xpose.msra.mxu0 0.0
        %1235 = vmatprep.subr.mxu0 0.0
        %1236 = vmatpush2.xpose.msra.mxu0 0.0
        %1237 = vmatprep.mubr.f32.mxu0 0.0
        %1238 = vmatmul.mubr.f32.gmra.mxu0 %v1168
        %v1239 = vpop.f32.mrf.mxu0
        %v1240 = vadd.f32 0.0, %v1239
        %v1241 = vpop.f32.mrf.mxu0
        %1242 = vdwg.mxu0
        %v1243 = vmul.f32 %v1240, 0.125
        %v1244 = vlaneseq
        %v1245 = vshrl.u32 %v1244, 7
        %v1246 = vsub.s32 0, %v1245
        %v1247 = vrot.slane %v1165, %v1246
        %v1248 = vadd.f32 %v1243, %v1247
        %vm1249 = vcmask 64512
        %v1250 = vsel %vm1249, %v1248, -inf
        %1251 = vmax.xlane.f32.xlu0 %v1250
        %v1252 = vpop.xlane.xlu0 %1251
        %v1253 = vsub.f32 %v1248, %v1252
        %v1254 = vmul.f32 %v1253, 1.442695
        %v1255 = vpow.pop %v1254
        %v1256 = vsel %vm1249, %v1255, 0.0
        %1257 = vadd.xlane.f32.xlu0 %v1256
        %v1258 = vpop.xlane.xlu0 %1257
        %v1259 = vrcp.pop %v1258
        %v1260 = vmul.f32 %v1255, %v1259
        %v1262 = vsel %vm1249, %v1260, 0
        %1264 = vmatprep.subr.mxu0 0.0
        %1265 = vmatpush1.msra.mxu0 0.0
        %1266 = vmatprep.subr.mxu0 0.0
        %1267 = vmatpush1.msra.mxu0 0.0
        %1268 = vmatprep.subr.mxu0 0.0
        %1269 = vmatpush1.msra.mxu0 0.0
        %1270 = vmatprep.subr.mxu0 0.0
        %1271 = vmatpush1.msra.mxu0 0.0
        %1272 = vmatprep.subr.mxu0 0.0
        %1273 = vmatpush1.msra.mxu0 0.0
        %1274 = vmatprep.subr.mxu0 0.0
        %1275 = vmatpush1.msra.mxu0 0.0
        %1276 = vmatprep.subr.mxu0 0.0
        %1277 = vmatpush1.msra.mxu0 0.0
        %1278 = vmatprep.subr.mxu0 0.0
        %1279 = vmatpush1.msra.mxu0 0.0
        %1280 = vmatprep.subr.mxu0 0.0
        %1281 = vmatpush1.msra.mxu0 0.0
        %1282 = vmatprep.subr.mxu0 0.0
        %1283 = vmatpush1.msra.mxu0 0.0
        %1284 = vmatprep.subr.mxu0 0.0
        %1285 = vmatpush1.msra.mxu0 0.0
        %1286 = vmatprep.subr.mxu0 0.0
        %1287 = vmatpush1.msra.mxu0 0.0
        %1288 = vmatprep.subr.mxu0 0.0
        %1289 = vmatpush1.msra.mxu0 0.0
        %1290 = vmatprep.subr.mxu0 0.0
        %1291 = vmatpush1.msra.mxu0 0.0
        %1292 = vmatprep.subr.mxu0 0.0
        %1293 = vmatpush1.msra.mxu0 0.0
        %1294 = vmatprep.subr.mxu0 0.0
        %1295 = vmatpush1.msra.mxu0 %v1159
        %1296 = vmatprep.subr.mxu0 0.0
        %1297 = vmatpush2.msra.mxu0 0.0
        %1298 = vmatprep.subr.mxu0 0.0
        %1299 = vmatpush2.msra.mxu0 0.0
        %1300 = vmatprep.subr.mxu0 0.0
        %1301 = vmatpush2.msra.mxu0 0.0
        %1302 = vmatprep.subr.mxu0 0.0
        %1303 = vmatpush2.msra.mxu0 0.0
        %1304 = vmatprep.subr.mxu0 0.0
        %1305 = vmatpush2.msra.mxu0 0.0
        %1306 = vmatprep.subr.mxu0 0.0
        %1307 = vmatpush2.msra.mxu0 0.0
        %1308 = vmatprep.subr.mxu0 0.0
        %1309 = vmatpush2.msra.mxu0 0.0
        %1310 = vmatprep.subr.mxu0 0.0
        %1311 = vmatpush2.msra.mxu0 0.0
        %1312 = vmatprep.subr.mxu0 0.0
        %1313 = vmatpush2.msra.mxu0 0.0
        %1314 = vmatprep.subr.mxu0 0.0
        %1315 = vmatpush2.msra.mxu0 0.0
        %1316 = vmatprep.subr.mxu0 0.0
        %1317 = vmatpush2.msra.mxu0 0.0
        %1318 = vmatprep.subr.mxu0 0.0
        %1319 = vmatpush2.msra.mxu0 0.0
        %1320 = vmatprep.subr.mxu0 0.0
        %1321 = vmatpush2.msra.mxu0 0.0
        %1322 = vmatprep.subr.mxu0 0.0
        %1323 = vmatpush2.msra.mxu0 0.0
        %1324 = vmatprep.subr.mxu0 0.0
        %1325 = vmatpush2.msra.mxu0 0.0
        %1326 = vmatprep.subr.mxu0 0.0
        %1327 = vmatpush2.msra.mxu0 0.0
        %1328 = vmatprep.mubr.f32.mxu0 0.0
        %1329 = vmatmul.mubr.f32.gmra.mxu0 %v1262
        %v1330 = vpop.f32.mrf.mxu0
        %v1331 = vadd.f32 0.0, %v1330
        %v1332 = vpop.f32.mrf.mxu0
        %1333 = vdwg.mxu0
        %1334 = vrot.lane.b32.xlu0 %v1116, 64
        %v1335 = vpop.permute.xlu0 %1334
        %1336 = vrot.lane.b32.xlu0 %v1118, 64
        %v1337 = vpop.permute.xlu0 %1336
        %v1338 = vsel %vm1166, %v1335, 0
        %v1340 = vsel %vm1166, %v1337, 0
        %1342 = vmatprep.subr.mxu0 0.0
        %1343 = vmatpush1.xpose.msra.mxu0 0.0
        %1344 = vmatprep.subr.mxu0 0.0
        %1345 = vmatpush1.xpose.msra.mxu0 0.0
        %1346 = vmatprep.subr.mxu0 0.0
        %1347 = vmatpush1.xpose.msra.mxu0 0.0
        %1348 = vmatprep.subr.mxu0 0.0
        %1349 = vmatpush1.xpose.msra.mxu0 0.0
        %1350 = vmatprep.subr.mxu0 0.0
        %1351 = vmatpush1.xpose.msra.mxu0 0.0
        %1352 = vmatprep.subr.mxu0 0.0
        %1353 = vmatpush1.xpose.msra.mxu0 0.0
        %1354 = vmatprep.subr.mxu0 0.0
        %1355 = vmatpush1.xpose.msra.mxu0 0.0
        %1356 = vmatprep.subr.mxu0 0.0
        %1357 = vmatpush1.xpose.msra.mxu0 0.0
        %1358 = vmatprep.subr.mxu0 0.0
        %1359 = vmatpush1.xpose.msra.mxu0 0.0
        %1360 = vmatprep.subr.mxu0 0.0
        %1361 = vmatpush1.xpose.msra.mxu0 0.0
        %1362 = vmatprep.subr.mxu0 0.0
        %1363 = vmatpush1.xpose.msra.mxu0 0.0
        %1364 = vmatprep.subr.mxu0 0.0
        %1365 = vmatpush1.xpose.msra.mxu0 0.0
        %1366 = vmatprep.subr.mxu0 0.0
        %1367 = vmatpush1.xpose.msra.mxu0 0.0
        %1368 = vmatprep.subr.mxu0 0.0
        %1369 = vmatpush1.xpose.msra.mxu0 0.0
        %1370 = vmatprep.subr.mxu0 0.0
        %1371 = vmatpush1.xpose.msra.mxu0 0.0
        %1372 = vmatprep.subr.mxu0 0.0
        %1373 = vmatpush1.xpose.msra.mxu0 %v1340
        %1374 = vmatprep.subr.mxu0 0.0
        %1375 = vmatpush2.xpose.msra.mxu0 0.0
        %1376 = vmatprep.subr.mxu0 0.0
        %1377 = vmatpush2.xpose.msra.mxu0 0.0
        %1378 = vmatprep.subr.mxu0 0.0
        %1379 = vmatpush2.xpose.msra.mxu0 0.0
        %1380 = vmatprep.subr.mxu0 0.0
        %1381 = vmatpush2.xpose.msra.mxu0 0.0
        %1382 = vmatprep.subr.mxu0 0.0
        %1383 = vmatpush2.xpose.msra.mxu0 0.0
        %1384 = vmatprep.subr.mxu0 0.0
        %1385 = vmatpush2.xpose.msra.mxu0 0.0
        %1386 = vmatprep.subr.mxu0 0.0
        %1387 = vmatpush2.xpose.msra.mxu0 0.0
        %1388 = vmatprep.subr.mxu0 0.0
        %1389 = vmatpush2.xpose.msra.mxu0 0.0
        %1390 = vmatprep.subr.mxu0 0.0
        %1391 = vmatpush2.xpose.msra.mxu0 0.0
        %1392 = vmatprep.subr.mxu0 0.0
        %1393 = vmatpush2.xpose.msra.mxu0 0.0
        %1394 = vmatprep.subr.mxu0 0.0
        %1395 = vmatpush2.xpose.msra.mxu0 0.0
        %1396 = vmatprep.subr.mxu0 0.0
        %1397 = vmatpush2.xpose.msra.mxu0 0.0
        %1398 = vmatprep.subr.mxu0 0.0
        %1399 = vmatpush2.xpose.msra.mxu0 0.0
        %1400 = vmatprep.subr.mxu0 0.0
        %1401 = vmatpush2.xpose.msra.mxu0 0.0
        %1402 = vmatprep.subr.mxu0 0.0
        %1403 = vmatpush2.xpose.msra.mxu0 0.0
        %1404 = vmatprep.subr.mxu0 0.0
        %1405 = vmatpush2.xpose.msra.mxu0 0.0
        %1406 = vmatprep.mubr.f32.mxu0 0.0
        %1407 = vmatmul.mubr.f32.gmra.mxu0 %v1338
        %v1408 = vpop.f32.mrf.mxu0
        %v1409 = vadd.f32 0.0, %v1408
        %v1410 = vpop.f32.mrf.mxu0
        %1411 = vdwg.mxu0
        %v1412 = vmul.f32 %v1409, 0.125
        %v1413 = vadd.f32 %v1412, %v1247
        %v1414 = vsel %vm1249, %v1413, -inf
        %1415 = vmax.xlane.f32.xlu0 %v1414
        %v1416 = vpop.xlane.xlu0 %1415
        %v1417 = vsub.f32 %v1413, %v1416
        %v1418 = vmul.f32 %v1417, 1.442695
        %v1419 = vpow.pop %v1418
        %v1420 = vsel %vm1249, %v1419, 0.0
        %1421 = vadd.xlane.f32.xlu0 %v1420
        %v1422 = vpop.xlane.xlu0 %1421
        %v1423 = vrcp.pop %v1422
        %v1424 = vmul.f32 %v1419, %v1423
        %1426 = vrot.lane.b32.xlu0 %v1159, 64
        %v1427 = vpop.permute.xlu0 %1426
        %v1430 = vsel %vm1249, %v1424, 0
        %1432 = vmatprep.subr.mxu0 0.0
        %1433 = vmatpush1.msra.mxu0 0.0
        %1434 = vmatprep.subr.mxu0 0.0
        %1435 = vmatpush1.msra.mxu0 0.0
        %1436 = vmatprep.subr.mxu0 0.0
        %1437 = vmatpush1.msra.mxu0 0.0
        %1438 = vmatprep.subr.mxu0 0.0
        %1439 = vmatpush1.msra.mxu0 0.0
        %1440 = vmatprep.subr.mxu0 0.0
        %1441 = vmatpush1.msra.mxu0 0.0
        %1442 = vmatprep.subr.mxu0 0.0
        %1443 = vmatpush1.msra.mxu0 0.0
        %1444 = vmatprep.subr.mxu0 0.0
        %1445 = vmatpush1.msra.mxu0 0.0
        %1446 = vmatprep.subr.mxu0 0.0
        %1447 = vmatpush1.msra.mxu0 0.0
        %1448 = vmatprep.subr.mxu0 0.0
        %1449 = vmatpush1.msra.mxu0 0.0
        %1450 = vmatprep.subr.mxu0 0.0
        %1451 = vmatpush1.msra.mxu0 0.0
        %1452 = vmatprep.subr.mxu0 0.0
        %1453 = vmatpush1.msra.mxu0 0.0
        %1454 = vmatprep.subr.mxu0 0.0
        %1455 = vmatpush1.msra.mxu0 0.0
        %1456 = vmatprep.subr.mxu0 0.0
        %1457 = vmatpush1.msra.mxu0 0.0
        %1458 = vmatprep.subr.mxu0 0.0
        %1459 = vmatpush1.msra.mxu0 0.0
        %1460 = vmatprep.subr.mxu0 0.0
        %1461 = vmatpush1.msra.mxu0 0.0
        %1462 = vmatprep.subr.mxu0 0.0
        %1463 = vmatpush1.msra.mxu0 %v1427
        %1464 = vmatprep.subr.mxu0 0.0
        %1465 = vmatpush2.msra.mxu0 0.0
        %1466 = vmatprep.subr.mxu0 0.0
        %1467 = vmatpush2.msra.mxu0 0.0
        %1468 = vmatprep.subr.mxu0 0.0
        %1469 = vmatpush2.msra.mxu0 0.0
        %1470 = vmatprep.subr.mxu0 0.0
        %1471 = vmatpush2.msra.mxu0 0.0
        %1472 = vmatprep.subr.mxu0 0.0
        %1473 = vmatpush2.msra.mxu0 0.0
        %1474 = vmatprep.subr.mxu0 0.0
        %1475 = vmatpush2.msra.mxu0 0.0
        %1476 = vmatprep.subr.mxu0 0.0
        %1477 = vmatpush2.msra.mxu0 0.0
        %1478 = vmatprep.subr.mxu0 0.0
        %1479 = vmatpush2.msra.mxu0 0.0
        %1480 = vmatprep.subr.mxu0 0.0
        %1481 = vmatpush2.msra.mxu0 0.0
        %1482 = vmatprep.subr.mxu0 0.0
        %1483 = vmatpush2.msra.mxu0 0.0
        %1484 = vmatprep.subr.mxu0 0.0
        %1485 = vmatpush2.msra.mxu0 0.0
        %1486 = vmatprep.subr.mxu0 0.0
        %1487 = vmatpush2.msra.mxu0 0.0
        %1488 = vmatprep.subr.mxu0 0.0
        %1489 = vmatpush2.msra.mxu0 0.0
        %1490 = vmatprep.subr.mxu0 0.0
        %1491 = vmatpush2.msra.mxu0 0.0
        %1492 = vmatprep.subr.mxu0 0.0
        %1493 = vmatpush2.msra.mxu0 0.0
        %1494 = vmatprep.subr.mxu0 0.0
        %1495 = vmatpush2.msra.mxu0 0.0
        %1496 = vmatprep.mubr.f32.mxu0 0.0
        %1497 = vmatmul.mubr.f32.gmra.mxu0 %v1430
        %v1498 = vpop.f32.mrf.mxu0
        %v1499 = vadd.f32 0.0, %v1498
        %v1500 = vpop.f32.mrf.mxu0
        %1501 = vdwg.mxu0
        %1503 = vrot.lane.b32.xlu0 %v1499, 64
        %v1504 = vpop.permute.xlu0 %1503
        %v1506 = vsel %vm1166, %v1331, %v1504
        %v1507 = vld [vmem:[%s1 + $0x1] sm:$0x1]
        %v1509 = vsel %vm1166, %v1120, 0
        %v1512 = vsel %vm1166, %v1122, 0
        %1514 = vmatprep.subr.mxu0 0.0
        %1515 = vmatpush1.xpose.msra.mxu0 0.0
        %1516 = vmatprep.subr.mxu0 0.0
        %1517 = vmatpush1.xpose.msra.mxu0 0.0
        %1518 = vmatprep.subr.mxu0 0.0
        %1519 = vmatpush1.xpose.msra.mxu0 0.0
        %1520 = vmatprep.subr.mxu0 0.0
        %1521 = vmatpush1.xpose.msra.mxu0 0.0
        %1522 = vmatprep.subr.mxu0 0.0
        %1523 = vmatpush1.xpose.msra.mxu0 0.0
        %1524 = vmatprep.subr.mxu0 0.0
        %1525 = vmatpush1.xpose.msra.mxu0 0.0
        %1526 = vmatprep.subr.mxu0 0.0
        %1527 = vmatpush1.xpose.msra.mxu0 0.0
        %1528 = vmatprep.subr.mxu0 0.0
        %1529 = vmatpush1.xpose.msra.mxu0 0.0
        %1530 = vmatprep.subr.mxu0 0.0
        %1531 = vmatpush1.xpose.msra.mxu0 0.0
        %1532 = vmatprep.subr.mxu0 0.0
        %1533 = vmatpush1.xpose.msra.mxu0 0.0
        %1534 = vmatprep.subr.mxu0 0.0
        %1535 = vmatpush1.xpose.msra.mxu0 0.0
        %1536 = vmatprep.subr.mxu0 0.0
        %1537 = vmatpush1.xpose.msra.mxu0 0.0
        %1538 = vmatprep.subr.mxu0 0.0
        %1539 = vmatpush1.xpose.msra.mxu0 0.0
        %1540 = vmatprep.subr.mxu0 0.0
        %1541 = vmatpush1.xpose.msra.mxu0 0.0
        %1542 = vmatprep.subr.mxu0 0.0
        %1543 = vmatpush1.xpose.msra.mxu0 0.0
        %1544 = vmatprep.subr.mxu0 0.0
        %1545 = vmatpush1.xpose.msra.mxu0 %v1512
        %1546 = vmatprep.subr.mxu0 0.0
        %1547 = vmatpush2.xpose.msra.mxu0 0.0
        %1548 = vmatprep.subr.mxu0 0.0
        %1549 = vmatpush2.xpose.msra.mxu0 0.0
        %1550 = vmatprep.subr.mxu0 0.0
        %1551 = vmatpush2.xpose.msra.mxu0 0.0
        %1552 = vmatprep.subr.mxu0 0.0
        %1553 = vmatpush2.xpose.msra.mxu0 0.0
        %1554 = vmatprep.subr.mxu0 0.0
        %1555 = vmatpush2.xpose.msra.mxu0 0.0
        %1556 = vmatprep.subr.mxu0 0.0
        %1557 = vmatpush2.xpose.msra.mxu0 0.0
        %1558 = vmatprep.subr.mxu0 0.0
        %1559 = vmatpush2.xpose.msra.mxu0 0.0
        %1560 = vmatprep.subr.mxu0 0.0
        %1561 = vmatpush2.xpose.msra.mxu0 0.0
        %1562 = vmatprep.subr.mxu0 0.0
        %1563 = vmatpush2.xpose.msra.mxu0 0.0
        %1564 = vmatprep.subr.mxu0 0.0
        %1565 = vmatpush2.xpose.msra.mxu0 0.0
        %1566 = vmatprep.subr.mxu0 0.0
        %1567 = vmatpush2.xpose.msra.mxu0 0.0
        %1568 = vmatprep.subr.mxu0 0.0
        %1569 = vmatpush2.xpose.msra.mxu0 0.0
        %1570 = vmatprep.subr.mxu0 0.0
        %1571 = vmatpush2.xpose.msra.mxu0 0.0
        %1572 = vmatprep.subr.mxu0 0.0
        %1573 = vmatpush2.xpose.msra.mxu0 0.0
        %1574 = vmatprep.subr.mxu0 0.0
        %1575 = vmatpush2.xpose.msra.mxu0 0.0
        %1576 = vmatprep.subr.mxu0 0.0
        %1577 = vmatpush2.xpose.msra.mxu0 0.0
        %1578 = vmatprep.mubr.f32.mxu0 0.0
        %1579 = vmatmul.mubr.f32.gmra.mxu0 %v1509
        %v1580 = vpop.f32.mrf.mxu0
        %v1581 = vadd.f32 0.0, %v1580
        %v1582 = vpop.f32.mrf.mxu0
        %1583 = vdwg.mxu0
        %v1584 = vmul.f32 %v1581, 0.125
        %v1585 = vlaneseq
        %v1586 = vshrl.u32 %v1585, 7
        %v1587 = vsub.s32 0, %v1586
        %v1588 = vrot.slane %v1507, %v1587
        %v1589 = vadd.f32 %v1584, %v1588
        %v1590 = vsel %vm1249, %v1589, -inf
        %1591 = vmax.xlane.f32.xlu0 %v1590
        %v1592 = vpop.xlane.xlu0 %1591
        %v1593 = vsub.f32 %v1589, %v1592
        %v1594 = vmul.f32 %v1593, 1.442695
        %v1595 = vpow.pop %v1594
        %v1596 = vsel %vm1249, %v1595, 0.0
        %1597 = vadd.xlane.f32.xlu0 %v1596
        %v1598 = vpop.xlane.xlu0 %1597
        %v1599 = vrcp.pop %v1598
        %v1600 = vmul.f32 %v1595, %v1599
        %v1602 = vsel %vm1249, %v1600, 0
        %1604 = vmatprep.subr.mxu0 0.0
        %1605 = vmatpush1.msra.mxu0 0.0
        %1606 = vmatprep.subr.mxu0 0.0
        %1607 = vmatpush1.msra.mxu0 0.0
        %1608 = vmatprep.subr.mxu0 0.0
        %1609 = vmatpush1.msra.mxu0 0.0
        %1610 = vmatprep.subr.mxu0 0.0
        %1611 = vmatpush1.msra.mxu0 0.0
        %1612 = vmatprep.subr.mxu0 0.0
        %1613 = vmatpush1.msra.mxu0 0.0
        %1614 = vmatprep.subr.mxu0 0.0
        %1615 = vmatpush1.msra.mxu0 0.0
        %1616 = vmatprep.subr.mxu0 0.0
        %1617 = vmatpush1.msra.mxu0 0.0
        %1618 = vmatprep.subr.mxu0 0.0
        %1619 = vmatpush1.msra.mxu0 0.0
        %1620 = vmatprep.subr.mxu0 0.0
        %1621 = vmatpush1.msra.mxu0 0.0
        %1622 = vmatprep.subr.mxu0 0.0
        %1623 = vmatpush1.msra.mxu0 0.0
        %1624 = vmatprep.subr.mxu0 0.0
        %1625 = vmatpush1.msra.mxu0 0.0
        %1626 = vmatprep.subr.mxu0 0.0
        %1627 = vmatpush1.msra.mxu0 0.0
        %1628 = vmatprep.subr.mxu0 0.0
        %1629 = vmatpush1.msra.mxu0 0.0
        %1630 = vmatprep.subr.mxu0 0.0
        %1631 = vmatpush1.msra.mxu0 0.0
        %1632 = vmatprep.subr.mxu0 0.0
        %1633 = vmatpush1.msra.mxu0 0.0
        %1634 = vmatprep.subr.mxu0 0.0
        %1635 = vmatpush1.msra.mxu0 %v1162
        %1636 = vmatprep.subr.mxu0 0.0
        %1637 = vmatpush2.msra.mxu0 0.0
        %1638 = vmatprep.subr.mxu0 0.0
        %1639 = vmatpush2.msra.mxu0 0.0
        %1640 = vmatprep.subr.mxu0 0.0
        %1641 = vmatpush2.msra.mxu0 0.0
        %1642 = vmatprep.subr.mxu0 0.0
        %1643 = vmatpush2.msra.mxu0 0.0
        %1644 = vmatprep.subr.mxu0 0.0
        %1645 = vmatpush2.msra.mxu0 0.0
        %1646 = vmatprep.subr.mxu0 0.0
        %1647 = vmatpush2.msra.mxu0 0.0
        %1648 = vmatprep.subr.mxu0 0.0
        %1649 = vmatpush2.msra.mxu0 0.0
        %1650 = vmatprep.subr.mxu0 0.0
        %1651 = vmatpush2.msra.mxu0 0.0
        %1652 = vmatprep.subr.mxu0 0.0
        %1653 = vmatpush2.msra.mxu0 0.0
        %1654 = vmatprep.subr.mxu0 0.0
        %1655 = vmatpush2.msra.mxu0 0.0
        %1656 = vmatprep.subr.mxu0 0.0
        %1657 = vmatpush2.msra.mxu0 0.0
        %1658 = vmatprep.subr.mxu0 0.0
        %1659 = vmatpush2.msra.mxu0 0.0
        %1660 = vmatprep.subr.mxu0 0.0
        %1661 = vmatpush2.msra.mxu0 0.0
        %1662 = vmatprep.subr.mxu0 0.0
        %1663 = vmatpush2.msra.mxu0 0.0
        %1664 = vmatprep.subr.mxu0 0.0
        %1665 = vmatpush2.msra.mxu0 0.0
        %1666 = vmatprep.subr.mxu0 0.0
        %1667 = vmatpush2.msra.mxu0 0.0
        %1668 = vmatprep.mubr.f32.mxu0 0.0
        %1669 = vmatmul.mubr.f32.gmra.mxu0 %v1602
        %v1670 = vpop.f32.mrf.mxu0
        %v1671 = vadd.f32 0.0, %v1670
        %v1672 = vpop.f32.mrf.mxu0
        %1673 = vdwg.mxu0
        %1674 = vrot.lane.b32.xlu0 %v1120, 64
        %v1675 = vpop.permute.xlu0 %1674
        %1676 = vrot.lane.b32.xlu0 %v1122, 64
        %v1677 = vpop.permute.xlu0 %1676
        %v1678 = vsel %vm1166, %v1675, 0
        %v1680 = vsel %vm1166, %v1677, 0
        %1682 = vmatprep.subr.mxu0 0.0
        %1683 = vmatpush1.xpose.msra.mxu0 0.0
        %1684 = vmatprep.subr.mxu0 0.0
        %1685 = vmatpush1.xpose.msra.mxu0 0.0
        %1686 = vmatprep.subr.mxu0 0.0
        %1687 = vmatpush1.xpose.msra.mxu0 0.0
        %1688 = vmatprep.subr.mxu0 0.0
        %1689 = vmatpush1.xpose.msra.mxu0 0.0
        %1690 = vmatprep.subr.mxu0 0.0
        %1691 = vmatpush1.xpose.msra.mxu0 0.0
        %1692 = vmatprep.subr.mxu0 0.0
        %1693 = vmatpush1.xpose.msra.mxu0 0.0
        %1694 = vmatprep.subr.mxu0 0.0
        %1695 = vmatpush1.xpose.msra.mxu0 0.0
        %1696 = vmatprep.subr.mxu0 0.0
        %1697 = vmatpush1.xpose.msra.mxu0 0.0
        %1698 = vmatprep.subr.mxu0 0.0
        %1699 = vmatpush1.xpose.msra.mxu0 0.0
        %1700 = vmatprep.subr.mxu0 0.0
        %1701 = vmatpush1.xpose.msra.mxu0 0.0
        %1702 = vmatprep.subr.mxu0 0.0
        %1703 = vmatpush1.xpose.msra.mxu0 0.0
        %1704 = vmatprep.subr.mxu0 0.0
        %1705 = vmatpush1.xpose.msra.mxu0 0.0
        %1706 = vmatprep.subr.mxu0 0.0
        %1707 = vmatpush1.xpose.msra.mxu0 0.0
        %1708 = vmatprep.subr.mxu0 0.0
        %1709 = vmatpush1.xpose.msra.mxu0 0.0
        %1710 = vmatprep.subr.mxu0 0.0
        %1711 = vmatpush1.xpose.msra.mxu0 0.0
        %1712 = vmatprep.subr.mxu0 0.0
        %1713 = vmatpush1.xpose.msra.mxu0 %v1680
        %1714 = vmatprep.subr.mxu0 0.0
        %1715 = vmatpush2.xpose.msra.mxu0 0.0
        %1716 = vmatprep.subr.mxu0 0.0
        %1717 = vmatpush2.xpose.msra.mxu0 0.0
        %1718 = vmatprep.subr.mxu0 0.0
        %1719 = vmatpush2.xpose.msra.mxu0 0.0
        %1720 = vmatprep.subr.mxu0 0.0
        %1721 = vmatpush2.xpose.msra.mxu0 0.0
        %1722 = vmatprep.subr.mxu0 0.0
        %1723 = vmatpush2.xpose.msra.mxu0 0.0
        %1724 = vmatprep.subr.mxu0 0.0
        %1725 = vmatpush2.xpose.msra.mxu0 0.0
        %1726 = vmatprep.subr.mxu0 0.0
        %1727 = vmatpush2.xpose.msra.mxu0 0.0
        %1728 = vmatprep.subr.mxu0 0.0
        %1729 = vmatpush2.xpose.msra.mxu0 0.0
        %1730 = vmatprep.subr.mxu0 0.0
        %1731 = vmatpush2.xpose.msra.mxu0 0.0
        %1732 = vmatprep.subr.mxu0 0.0
        %1733 = vmatpush2.xpose.msra.mxu0 0.0
        %1734 = vmatprep.subr.mxu0 0.0
        %1735 = vmatpush2.xpose.msra.mxu0 0.0
        %1736 = vmatprep.subr.mxu0 0.0
        %1737 = vmatpush2.xpose.msra.mxu0 0.0
        %1738 = vmatprep.subr.mxu0 0.0
        %1739 = vmatpush2.xpose.msra.mxu0 0.0
        %1740 = vmatprep.subr.mxu0 0.0
        %1741 = vmatpush2.xpose.msra.mxu0 0.0
        %1742 = vmatprep.subr.mxu0 0.0
        %1743 = vmatpush2.xpose.msra.mxu0 0.0
        %1744 = vmatprep.subr.mxu0 0.0
        %1745 = vmatpush2.xpose.msra.mxu0 0.0
        %1746 = vmatprep.mubr.f32.mxu0 0.0
        %1747 = vmatmul.mubr.f32.gmra.mxu0 %v1678
        %v1748 = vpop.f32.mrf.mxu0
        %v1749 = vadd.f32 0.0, %v1748
        %v1750 = vpop.f32.mrf.mxu0
        %1751 = vdwg.mxu0
        %v1752 = vmul.f32 %v1749, 0.125
        %v1753 = vadd.f32 %v1752, %v1588
        %v1754 = vsel %vm1249, %v1753, -inf
        %1755 = vmax.xlane.f32.xlu0 %v1754
        %v1756 = vpop.xlane.xlu0 %1755
        %v1757 = vsub.f32 %v1753, %v1756
        %v1758 = vmul.f32 %v1757, 1.442695
        %v1759 = vpow.pop %v1758
        %v1760 = vsel %vm1249, %v1759, 0.0
        %1761 = vadd.xlane.f32.xlu0 %v1760
        %v1762 = vpop.xlane.xlu0 %1761
        %v1763 = vrcp.pop %v1762
        %v1764 = vmul.f32 %v1759, %v1763
        %1766 = vrot.lane.b32.xlu0 %v1162, 64
        %v1767 = vpop.permute.xlu0 %1766
        %v1770 = vsel %vm1249, %v1764, 0
        %1772 = vmatprep.subr.mxu0 0.0
        %1773 = vmatpush1.msra.mxu0 0.0
        %1774 = vmatprep.subr.mxu0 0.0
        %1775 = vmatpush1.msra.mxu0 0.0
        %1776 = vmatprep.subr.mxu0 0.0
        %1777 = vmatpush1.msra.mxu0 0.0
        %1778 = vmatprep.subr.mxu0 0.0
        %1779 = vmatpush1.msra.mxu0 0.0
        %1780 = vmatprep.subr.mxu0 0.0
        %1781 = vmatpush1.msra.mxu0 0.0
        %1782 = vmatprep.subr.mxu0 0.0
        %1783 = vmatpush1.msra.mxu0 0.0
        %1784 = vmatprep.subr.mxu0 0.0
        %1785 = vmatpush1.msra.mxu0 0.0
        %1786 = vmatprep.subr.mxu0 0.0
        %1787 = vmatpush1.msra.mxu0 0.0
        %1788 = vmatprep.subr.mxu0 0.0
        %1789 = vmatpush1.msra.mxu0 0.0
        %1790 = vmatprep.subr.mxu0 0.0
        %1791 = vmatpush1.msra.mxu0 0.0
        %1792 = vmatprep.subr.mxu0 0.0
        %1793 = vmatpush1.msra.mxu0 0.0
        %1794 = vmatprep.subr.mxu0 0.0
        %1795 = vmatpush1.msra.mxu0 0.0
        %1796 = vmatprep.subr.mxu0 0.0
        %1797 = vmatpush1.msra.mxu0 0.0
        %1798 = vmatprep.subr.mxu0 0.0
        %1799 = vmatpush1.msra.mxu0 0.0
        %1800 = vmatprep.subr.mxu0 0.0
        %1801 = vmatpush1.msra.mxu0 0.0
        %1802 = vmatprep.subr.mxu0 0.0
        %1803 = vmatpush1.msra.mxu0 %v1767
        %1804 = vmatprep.subr.mxu0 0.0
        %1805 = vmatpush2.msra.mxu0 0.0
        %1806 = vmatprep.subr.mxu0 0.0
        %1807 = vmatpush2.msra.mxu0 0.0
        %1808 = vmatprep.subr.mxu0 0.0
        %1809 = vmatpush2.msra.mxu0 0.0
        %1810 = vmatprep.subr.mxu0 0.0
        %1811 = vmatpush2.msra.mxu0 0.0
        %1812 = vmatprep.subr.mxu0 0.0
        %1813 = vmatpush2.msra.mxu0 0.0
        %1814 = vmatprep.subr.mxu0 0.0
        %1815 = vmatpush2.msra.mxu0 0.0
        %1816 = vmatprep.subr.mxu0 0.0
        %1817 = vmatpush2.msra.mxu0 0.0
        %1818 = vmatprep.subr.mxu0 0.0
        %1819 = vmatpush2.msra.mxu0 0.0
        %1820 = vmatprep.subr.mxu0 0.0
        %1821 = vmatpush2.msra.mxu0 0.0
        %1822 = vmatprep.subr.mxu0 0.0
        %1823 = vmatpush2.msra.mxu0 0.0
        %1824 = vmatprep.subr.mxu0 0.0
        %1825 = vmatpush2.msra.mxu0 0.0
        %1826 = vmatprep.subr.mxu0 0.0
        %1827 = vmatpush2.msra.mxu0 0.0
        %1828 = vmatprep.subr.mxu0 0.0
        %1829 = vmatpush2.msra.mxu0 0.0
        %1830 = vmatprep.subr.mxu0 0.0
        %1831 = vmatpush2.msra.mxu0 0.0
        %1832 = vmatprep.subr.mxu0 0.0
        %1833 = vmatpush2.msra.mxu0 0.0
        %1834 = vmatprep.subr.mxu0 0.0
        %1835 = vmatpush2.msra.mxu0 0.0
        %1836 = vmatprep.mubr.f32.mxu0 0.0
        %1837 = vmatmul.mubr.f32.gmra.mxu0 %v1770
        %v1838 = vpop.f32.mrf.mxu0
        %v1839 = vadd.f32 0.0, %v1838
        %v1840 = vpop.f32.mrf.mxu0
        %1841 = vdwg.mxu0
        %1843 = vrot.lane.b32.xlu0 %v1839, 64
        %v1844 = vpop.permute.xlu0 %1843
        %v1846 = vsel %vm1166, %v1671, %v1844
        %v1847 = vpack.c.bf16 %v1846, %v1506
        %v1848 = vld [vmem:[%s828] sm:$0xf]
        %v1849 = vld [vmem:[%s828 + $0x4] sm:$0xf]
        %v1850 = vld [vmem:[%s828 + $0x8] sm:$0xf]
        %v1851 = vld [vmem:[%s828 + $0xc] sm:$0xf]
        %v1852 = vld [vmem:[%s828 + $0x10] sm:$0xf]
        %v1853 = vld [vmem:[%s828 + $0x14] sm:$0xf]
        %v1854 = vld [vmem:[%s828 + $0x18] sm:$0xf]
        %v1855 = vld [vmem:[%s828 + $0x1c] sm:$0xf]
        %v1856 = vld [vmem:[%s828 + $0x20] sm:$0xf]
        %v1857 = vld [vmem:[%s828 + $0x24] sm:$0xf]
        %v1858 = vld [vmem:[%s828 + $0x28] sm:$0xf]
        %v1859 = vld [vmem:[%s828 + $0x2c] sm:$0xf]
        %v1860 = vld [vmem:[%s828 + $0x30] sm:$0xf]
        %v1861 = vld [vmem:[%s828 + $0x34] sm:$0xf]
        %v1862 = vld [vmem:[%s828 + $0x38] sm:$0xf]
        %v1863 = vld [vmem:[%s828 + $0x3c] sm:$0xf]
        %v1864 = vld [vmem:[%s831] sm:$0x1]
        %v1866 = vlaneseq
        %v1867 = vshrl.u32 %v1866, 7
        %v1868 = vsub.s32 0, %v1867
        %v1869 = vrot.slane %v1864, %v1868
        %v1887 = vunpack.c.l.b16 %v1848
        %v1888 = vunpack.c.l.b16 %v1849
        %v1889 = vunpack.c.l.b16 %v1850
        %v1890 = vunpack.c.l.b16 %v1851
        %v1891 = vunpack.c.l.b16 %v1852
        %v1892 = vunpack.c.l.b16 %v1853
        %v1893 = vunpack.c.l.b16 %v1854
        %v1894 = vunpack.c.l.b16 %v1855
        %v1895 = vunpack.c.l.b16 %v1856
        %v1896 = vunpack.c.l.b16 %v1857
        %v1897 = vunpack.c.l.b16 %v1858
        %v1898 = vunpack.c.l.b16 %v1859
        %v1899 = vunpack.c.l.b16 %v1860
        %v1900 = vunpack.c.l.b16 %v1861
        %v1901 = vunpack.c.l.b16 %v1862
        %v1902 = vunpack.c.l.b16 %v1863
        %v1903 = vpack.c.b16 %v1888, %v1887
        %v1904 = vpack.c.b16 %v1890, %v1889
        %v1905 = vpack.c.b16 %v1892, %v1891
        %v1906 = vpack.c.b16 %v1894, %v1893
        %v1907 = vpack.c.b16 %v1896, %v1895
        %v1908 = vpack.c.b16 %v1898, %v1897
        %v1909 = vpack.c.b16 %v1900, %v1899
        %v1910 = vpack.c.b16 %v1902, %v1901
        %1919 = vmatprep.subr.bf16.mxu0 0
        %1920 = vmatpush1.bf16.msra.mxu0 %v1910
        %1921 = vmatprep.subr.bf16.mxu0 0
        %1922 = vmatpush1.bf16.msra.mxu0 %v1909
        %1923 = vmatprep.subr.bf16.mxu0 0
        %1924 = vmatpush1.bf16.msra.mxu0 %v1908
        %1925 = vmatprep.subr.bf16.mxu0 0
        %1926 = vmatpush1.bf16.msra.mxu0 %v1907
        %1927 = vmatprep.subr.bf16.mxu0 0
        %1928 = vmatpush1.bf16.msra.mxu0 %v1906
        %1929 = vmatprep.subr.bf16.mxu0 0
        %1930 = vmatpush1.bf16.msra.mxu0 %v1905
        %1931 = vmatprep.subr.bf16.mxu0 0
        %1932 = vmatpush1.bf16.msra.mxu0 %v1904
        %1933 = vmatprep.subr.bf16.mxu0 0
        %1934 = vmatpush1.bf16.msra.mxu0 %v1903
        %1935 = vmatprep.subr.bf16.mxu0 0
        %1936 = vmatpush2.bf16.msra.mxu0 0
        %1937 = vmatprep.subr.bf16.mxu0 0
        %1938 = vmatpush2.bf16.msra.mxu0 0
        %1939 = vmatprep.subr.bf16.mxu0 0
        %1940 = vmatpush2.bf16.msra.mxu0 0
        %1941 = vmatprep.subr.bf16.mxu0 0
        %1942 = vmatpush2.bf16.msra.mxu0 0
        %1943 = vmatprep.subr.bf16.mxu0 0
        %1944 = vmatpush2.bf16.msra.mxu0 0
        %1945 = vmatprep.subr.bf16.mxu0 0
        %1946 = vmatpush2.bf16.msra.mxu0 0
        %1947 = vmatprep.subr.bf16.mxu0 0
        %1948 = vmatpush2.bf16.msra.mxu0 0
        %1949 = vmatprep.subr.bf16.mxu0 0
        %1950 = vmatpush2.bf16.msra.mxu0 0
        %1951 = vmatprep.mubr.bf16.mxu0 0
        %1952 = vmatmul.mubr.bf16.gmra.mxu0 %v1847
        %v1953 = vpop.f32.mrf.mxu0
        %v1954 = vadd.f32 %v1869, %v1953
        %v1955 = vpop.f32.mrf.mxu0
        %v1956 = vpop.f32.mrf.mxu0
        %v1957 = vadd.f32 %v1869, %v1956
        %v1958 = vpop.f32.mrf.mxu0
        %1959 = vdwg.mxu0
        %v1960 = vadd.f32 %v1954, %v901
        %v1961 = vadd.f32 %v1957, %v902
        %v1962 = vld [vmem:[%s834] sm:$0x1]
        %v1963 = vld [vmem:[%s837] sm:$0x1]
        %1964 = vadd.xlane.f32.xlu0 %v1960
        %v1965 = vpop.xlane.xlu0 %1964
        %1966 = vadd.xlane.f32.xlu0 %v1961
        %v1967 = vpop.xlane.xlu0 %1966
        %v1968 = vrcp.pop 128.0
        %v1969 = vmul.f32 %v1965, %v1968
        %v1970 = vmul.f32 %v1967, %v1968
        %v1971 = vsub.f32 %v1960, %v1969
        %v1972 = vsub.f32 %v1961, %v1970
        %v1973 = vmul.f32 %v1971, %v1971
        %v1974 = vmul.f32 %v1972, %v1972
        %1975 = vadd.xlane.f32.xlu0 %v1973
        %v1976 = vpop.xlane.xlu0 %1975
        %1977 = vadd.xlane.f32.xlu0 %v1974
        %v1978 = vpop.xlane.xlu0 %1977
        %v1979 = vmul.f32 %v1976, %v1968
        %v1980 = vmul.f32 %v1978, %v1968
        %v1981 = vadd.f32 %v1979, 1e-12
        %v1982 = vadd.f32 %v1980, 1e-12
        %v1983 = vrsqrt.pop %v1981
        %v1984 = vrsqrt.pop %v1982
        %v1985 = vmul.f32 %v1971, %v1983
        %v1986 = vmul.f32 %v1972, %v1984
        %v1988 = vlaneseq
        %v1989 = vshrl.u32 %v1988, 7
        %v1990 = vsub.s32 0, %v1989
        %v1991 = vrot.slane %v1962, %v1990
        %v1993 = vmul.f32 %v1985, %v1991
        %v1994 = vmul.f32 %v1986, %v1991
        %v1996 = vlaneseq
        %v1997 = vshrl.u32 %v1996, 7
        %v1998 = vsub.s32 0, %v1997
        %v1999 = vrot.slane %v1963, %v1998
        %v2001 = vadd.f32 %v1993, %v1999
        %v2002 = vadd.f32 %v1994, %v1999
        %v2003 = vpack.c.bf16 %v2002, %v2001
        %v2004 = vld [vmem:[%s718] sm:$0xff]
        %v2005 = vld [vmem:[%s718 + $0x8] sm:$0xff]
        %v2006 = vld [vmem:[%s718 + $0x10] sm:$0xff]
        %v2007 = vld [vmem:[%s718 + $0x18] sm:$0xff]
        %v2008 = vld [vmem:[%s718 + $0x20] sm:$0xff]
        %v2009 = vld [vmem:[%s718 + $0x28] sm:$0xff]
        %v2010 = vld [vmem:[%s718 + $0x30] sm:$0xff]
        %v2011 = vld [vmem:[%s718 + $0x38] sm:$0xff]
        %v2012 = vld [vmem:[%s718 + $0x40] sm:$0xff]
        %v2013 = vld [vmem:[%s718 + $0x48] sm:$0xff]
        %v2014 = vld [vmem:[%s718 + $0x50] sm:$0xff]
        %v2015 = vld [vmem:[%s718 + $0x58] sm:$0xff]
        %v2016 = vld [vmem:[%s718 + $0x60] sm:$0xff]
        %v2017 = vld [vmem:[%s718 + $0x68] sm:$0xff]
        %v2018 = vld [vmem:[%s718 + $0x70] sm:$0xff]
        %v2019 = vld [vmem:[%s718 + $0x78] sm:$0xff]
        %v2020 = vld [vmem:[%s718 + $0x80] sm:$0xff]
        %v2021 = vld [vmem:[%s718 + $0x88] sm:$0xff]
        %v2022 = vld [vmem:[%s718 + $0x90] sm:$0xff]
        %v2023 = vld [vmem:[%s718 + $0x98] sm:$0xff]
        %v2024 = vld [vmem:[%s718 + $0xa0] sm:$0xff]
        %v2025 = vld [vmem:[%s718 + $0xa8] sm:$0xff]
        %v2026 = vld [vmem:[%s718 + $0xb0] sm:$0xff]
        %v2027 = vld [vmem:[%s718 + $0xb8] sm:$0xff]
        %v2028 = vld [vmem:[%s718 + $0xc0] sm:$0xff]
        %v2029 = vld [vmem:[%s718 + $0xc8] sm:$0xff]
        %v2030 = vld [vmem:[%s718 + $0xd0] sm:$0xff]
        %v2031 = vld [vmem:[%s718 + $0xd8] sm:$0xff]
        %v2032 = vld [vmem:[%s718 + $0xe0] sm:$0xff]
        %v2033 = vld [vmem:[%s718 + $0xe8] sm:$0xff]
        %v2034 = vld [vmem:[%s718 + $0xf0] sm:$0xff]
        %v2035 = vld [vmem:[%s718 + $0xf8] sm:$0xff]
        %v2036 = vld [vmem:[%s841] sm:$0xf]
        %v2038 = vlaneseq
        %v2039 = vshrl.u32 %v2038, 7
        %v2040 = vsub.s32 0, %v2039
        %v2041 = vrot.slane %v2036, %v2040
        %v2042 = vlaneseq
        %v2043 = vshrl.u32 %v2042, 7
        %v2044 = vsub.s32 1, %v2043
        %v2045 = vrot.slane %v2036, %v2044
        %v2046 = vlaneseq
        %v2047 = vshrl.u32 %v2046, 7
        %v2048 = vsub.s32 2, %v2047
        %v2049 = vrot.slane %v2036, %v2048
        %v2050 = vlaneseq
        %v2051 = vshrl.u32 %v2050, 7
        %v2052 = vsub.s32 3, %v2051
        %v2053 = vrot.slane %v2036, %v2052
        %v2090 = vunpack.c.l.b16 %v2004
        %v2091 = vunpack.c.h.b16 %v2004
        %v2092 = vunpack.c.l.b16 %v2005
        %v2093 = vunpack.c.h.b16 %v2005
        %v2094 = vunpack.c.l.b16 %v2006
        %v2095 = vunpack.c.h.b16 %v2006
        %v2096 = vunpack.c.l.b16 %v2007
        %v2097 = vunpack.c.h.b16 %v2007
        %v2098 = vunpack.c.l.b16 %v2008
        %v2099 = vunpack.c.h.b16 %v2008
        %v2100 = vunpack.c.l.b16 %v2009
        %v2101 = vunpack.c.h.b16 %v2009
        %v2102 = vunpack.c.l.b16 %v2010
        %v2103 = vunpack.c.h.b16 %v2010
        %v2104 = vunpack.c.l.b16 %v2011
        %v2105 = vunpack.c.h.b16 %v2011
        %v2106 = vunpack.c.l.b16 %v2012
        %v2107 = vunpack.c.h.b16 %v2012
        %v2108 = vunpack.c.l.b16 %v2013
        %v2109 = vunpack.c.h.b16 %v2013
        %v2110 = vunpack.c.l.b16 %v2014
        %v2111 = vunpack.c.h.b16 %v2014
        %v2112 = vunpack.c.l.b16 %v2015
        %v2113 = vunpack.c.h.b16 %v2015
        %v2114 = vunpack.c.l.b16 %v2016
        %v2115 = vunpack.c.h.b16 %v2016
        %v2116 = vunpack.c.l.b16 %v2017
        %v2117 = vunpack.c.h.b16 %v2017
        %v2118 = vunpack.c.l.b16 %v2018
        %v2119 = vunpack.c.h.b16 %v2018
        %v2120 = vunpack.c.l.b16 %v2019
        %v2121 = vunpack.c.h.b16 %v2019
        %v2122 = vunpack.c.l.b16 %v2020
        %v2123 = vunpack.c.h.b16 %v2020
        %v2124 = vunpack.c.l.b16 %v2021
        %v2125 = vunpack.c.h.b16 %v2021
        %v2126 = vunpack.c.l.b16 %v2022
        %v2127 = vunpack.c.h.b16 %v2022
        %v2128 = vunpack.c.l.b16 %v2023
        %v2129 = vunpack.c.h.b16 %v2023
        %v2130 = vunpack.c.l.b16 %v2024
        %v2131 = vunpack.c.h.b16 %v2024
        %v2132 = vunpack.c.l.b16 %v2025
        %v2133 = vunpack.c.h.b16 %v2025
        %v2134 = vunpack.c.l.b16 %v2026
        %v2135 = vunpack.c.h.b16 %v2026
        %v2136 = vunpack.c.l.b16 %v2027
        %v2137 = vunpack.c.h.b16 %v2027
        %v2138 = vunpack.c.l.b16 %v2028
        %v2139 = vunpack.c.h.b16 %v2028
        %v2140 = vunpack.c.l.b16 %v2029
        %v2141 = vunpack.c.h.b16 %v2029
        %v2142 = vunpack.c.l.b16 %v2030
        %v2143 = vunpack.c.h.b16 %v2030
        %v2144 = vunpack.c.l.b16 %v2031
        %v2145 = vunpack.c.h.b16 %v2031
        %v2146 = vunpack.c.l.b16 %v2032
        %v2147 = vunpack.c.h.b16 %v2032
        %v2148 = vunpack.c.l.b16 %v2033
        %v2149 = vunpack.c.h.b16 %v2033
        %v2150 = vunpack.c.l.b16 %v2034
        %v2151 = vunpack.c.h.b16 %v2034
        %v2152 = vunpack.c.l.b16 %v2035
        %v2153 = vunpack.c.h.b16 %v2035
        %v2154 = vpack.c.b16 %v2094, %v2090
        %v2155 = vpack.c.b16 %v2095, %v2091
        %v2156 = vpack.c.b16 %v2096, %v2092
        %v2157 = vpack.c.b16 %v2097, %v2093
        %v2158 = vpack.c.b16 %v2102, %v2098
        %v2159 = vpack.c.b16 %v2103, %v2099
        %v2160 = vpack.c.b16 %v2104, %v2100
        %v2161 = vpack.c.b16 %v2105, %v2101
        %v2162 = vpack.c.b16 %v2110, %v2106
        %v2163 = vpack.c.b16 %v2111, %v2107
        %v2164 = vpack.c.b16 %v2112, %v2108
        %v2165 = vpack.c.b16 %v2113, %v2109
        %v2166 = vpack.c.b16 %v2118, %v2114
        %v2167 = vpack.c.b16 %v2119, %v2115
        %v2168 = vpack.c.b16 %v2120, %v2116
        %v2169 = vpack.c.b16 %v2121, %v2117
        %v2170 = vpack.c.b16 %v2126, %v2122
        %v2171 = vpack.c.b16 %v2127, %v2123
        %v2172 = vpack.c.b16 %v2128, %v2124
        %v2173 = vpack.c.b16 %v2129, %v2125
        %v2174 = vpack.c.b16 %v2134, %v2130
        %v2175 = vpack.c.b16 %v2135, %v2131
        %v2176 = vpack.c.b16 %v2136, %v2132
        %v2177 = vpack.c.b16 %v2137, %v2133
        %v2178 = vpack.c.b16 %v2142, %v2138
        %v2179 = vpack.c.b16 %v2143, %v2139
        %v2180 = vpack.c.b16 %v2144, %v2140
        %v2181 = vpack.c.b16 %v2145, %v2141
        %v2182 = vpack.c.b16 %v2150, %v2146
        %v2183 = vpack.c.b16 %v2151, %v2147
        %v2184 = vpack.c.b16 %v2152, %v2148
        %v2185 = vpack.c.b16 %v2153, %v2149
        %2218 = vmatprep.subr.bf16.mxu0 %v2183
        %2219 = vmatpush1.bf16.msra.mxu0 %v2182
        %2220 = vmatprep.subr.bf16.mxu0 %v2179
        %2221 = vmatpush1.bf16.msra.mxu0 %v2178
        %2222 = vmatprep.subr.bf16.mxu0 %v2175
        %2223 = vmatpush1.bf16.msra.mxu0 %v2174
        %2224 = vmatprep.subr.bf16.mxu0 %v2171
        %2225 = vmatpush1.bf16.msra.mxu0 %v2170
        %2226 = vmatprep.subr.bf16.mxu0 %v2167
        %2227 = vmatpush1.bf16.msra.mxu0 %v2166
        %2228 = vmatprep.subr.bf16.mxu0 %v2163
        %2229 = vmatpush1.bf16.msra.mxu0 %v2162
        %2230 = vmatprep.subr.bf16.mxu0 %v2159
        %2231 = vmatpush1.bf16.msra.mxu0 %v2158
        %2232 = vmatprep.subr.bf16.mxu0 %v2155
        %2233 = vmatpush1.bf16.msra.mxu0 %v2154
        %2234 = vmatprep.subr.bf16.mxu0 0
        %2235 = vmatpush2.bf16.msra.mxu0 0
        %2236 = vmatprep.subr.bf16.mxu0 0
        %2237 = vmatpush2.bf16.msra.mxu0 0
        %2238 = vmatprep.subr.bf16.mxu0 0
        %2239 = vmatpush2.bf16.msra.mxu0 0
        %2240 = vmatprep.subr.bf16.mxu0 0
        %2241 = vmatpush2.bf16.msra.mxu0 0
        %2242 = vmatprep.subr.bf16.mxu0 0
        %2243 = vmatpush2.bf16.msra.mxu0 0
        %2244 = vmatprep.subr.bf16.mxu0 0
        %2245 = vmatpush2.bf16.msra.mxu0 0
        %2246 = vmatprep.subr.bf16.mxu0 0
        %2247 = vmatpush2.bf16.msra.mxu0 0
        %2248 = vmatprep.subr.bf16.mxu0 0
        %2249 = vmatpush2.bf16.msra.mxu0 0
        %2250 = vmatprep.mubr.bf16.mxu0 0
        %2251 = vmatmul.mubr.bf16.gmra.mxu0 %v2003
        %v2252 = vpop.f32.mrf.mxu0
        %v2253 = vadd.f32 %v2041, %v2252
        %v2254 = vpop.f32.mrf.mxu0
        %v2255 = vadd.f32 %v2045, %v2254
        %v2256 = vpop.f32.mrf.mxu0
        %v2257 = vadd.f32 %v2041, %v2256
        %v2258 = vpop.f32.mrf.mxu0
        %v2259 = vadd.f32 %v2045, %v2258
        %2260 = vdwg.mxu0
        %2261 = vmatprep.subr.bf16.mxu0 %v2185
        %2262 = vmatpush1.bf16.msra.mxu0 %v2184
        %2263 = vmatprep.subr.bf16.mxu0 %v2181
        %2264 = vmatpush1.bf16.msra.mxu0 %v2180
        %2265 = vmatprep.subr.bf16.mxu0 %v2177
        %2266 = vmatpush1.bf16.msra.mxu0 %v2176
        %2267 = vmatprep.subr.bf16.mxu0 %v2173
        %2268 = vmatpush1.bf16.msra.mxu0 %v2172
        %2269 = vmatprep.subr.bf16.mxu0 %v2169
        %2270 = vmatpush1.bf16.msra.mxu0 %v2168
        %2271 = vmatprep.subr.bf16.mxu0 %v2165
        %2272 = vmatpush1.bf16.msra.mxu0 %v2164
        %2273 = vmatprep.subr.bf16.mxu0 %v2161
        %2274 = vmatpush1.bf16.msra.mxu0 %v2160
        %2275 = vmatprep.subr.bf16.mxu0 %v2157
        %2276 = vmatpush1.bf16.msra.mxu0 %v2156
        %2277 = vmatprep.subr.bf16.mxu0 0
        %2278 = vmatpush2.bf16.msra.mxu0 0
        %2279 = vmatprep.subr.bf16.mxu0 0
        %2280 = vmatpush2.bf16.msra.mxu0 0
        %2281 = vmatprep.subr.bf16.mxu0 0
        %2282 = vmatpush2.bf16.msra.mxu0 0
        %2283 = vmatprep.subr.bf16.mxu0 0
        %2284 = vmatpush2.bf16.msra.mxu0 0
        %2285 = vmatprep.subr.bf16.mxu0 0
        %2286 = vmatpush2.bf16.msra.mxu0 0
        %2287 = vmatprep.subr.bf16.mxu0 0
        %2288 = vmatpush2.bf16.msra.mxu0 0
        %2289 = vmatprep.subr.bf16.mxu0 0
        %2290 = vmatpush2.bf16.msra.mxu0 0
        %2291 = vmatprep.subr.bf16.mxu0 0
        %2292 = vmatpush2.bf16.msra.mxu0 0
        %2293 = vmatprep.mubr.bf16.mxu0 0
        %2294 = vmatmul.mubr.bf16.gmra.mxu0 %v2003
        %v2295 = vpop.f32.mrf.mxu0
        %v2296 = vadd.f32 %v2049, %v2295
        %v2297 = vpop.f32.mrf.mxu0
        %v2298 = vadd.f32 %v2053, %v2297
        %v2299 = vpop.f32.mrf.mxu0
        %v2300 = vadd.f32 %v2049, %v2299
        %v2301 = vpop.f32.mrf.mxu0
        %v2302 = vadd.f32 %v2053, %v2301
        %2303 = vdwg.mxu0
        %v2304 = vmul.f32 %v2253, 0.5
        %v2305 = vmul.f32 %v2255, 0.5
        %v2306 = vmul.f32 %v2296, 0.5
        %v2307 = vmul.f32 %v2298, 0.5
        %v2308 = vmul.f32 %v2257, 0.5
        %v2309 = vmul.f32 %v2259, 0.5
        %v2310 = vmul.f32 %v2300, 0.5
        %v2311 = vmul.f32 %v2302, 0.5
        %v2312 = vmul.f32 %v2253, 0.044715
        %v2313 = vmul.f32 %v2255, 0.044715
        %v2314 = vmul.f32 %v2296, 0.044715
        %v2315 = vmul.f32 %v2298, 0.044715
        %v2316 = vmul.f32 %v2257, 0.044715
        %v2317 = vmul.f32 %v2259, 0.044715
        %v2318 = vmul.f32 %v2300, 0.044715
        %v2319 = vmul.f32 %v2302, 0.044715
        %v2320 = vmul.f32 %v2312, %v2253
        %v2321 = vmul.f32 %v2313, %v2255
        %v2322 = vmul.f32 %v2314, %v2296
        %v2323 = vmul.f32 %v2315, %v2298
        %v2324 = vmul.f32 %v2316, %v2257
        %v2325 = vmul.f32 %v2317, %v2259
        %v2326 = vmul.f32 %v2318, %v2300
        %v2327 = vmul.f32 %v2319, %v2302
        %v2328 = vmul.f32 %v2320, %v2253
        %v2329 = vmul.f32 %v2321, %v2255
        %v2330 = vmul.f32 %v2322, %v2296
        %v2331 = vmul.f32 %v2323, %v2298
        %v2332 = vmul.f32 %v2324, %v2257
        %v2333 = vmul.f32 %v2325, %v2259
        %v2334 = vmul.f32 %v2326, %v2300
        %v2335 = vmul.f32 %v2327, %v2302
        %v2336 = vadd.f32 %v2253, %v2328
        %v2337 = vadd.f32 %v2255, %v2329
        %v2338 = vadd.f32 %v2296, %v2330
        %v2339 = vadd.f32 %v2298, %v2331
        %v2340 = vadd.f32 %v2257, %v2332
        %v2341 = vadd.f32 %v2259, %v2333
        %v2342 = vadd.f32 %v2300, %v2334
        %v2343 = vadd.f32 %v2302, %v2335
        %v2344 = vmul.f32 %v2336, 0.7978846
        %v2345 = vmul.f32 %v2337, 0.7978846
        %v2346 = vmul.f32 %v2338, 0.7978846
        %v2347 = vmul.f32 %v2339, 0.7978846
        %v2348 = vmul.f32 %v2340, 0.7978846
        %v2349 = vmul.f32 %v2341, 0.7978846
        %v2350 = vmul.f32 %v2342, 0.7978846
        %v2351 = vmul.f32 %v2343, 0.7978846
        %v2352 = vtanh.pop %v2344
        %v2353 = vtanh.pop %v2345
        %v2354 = vtanh.pop %v2346
        %v2355 = vtanh.pop %v2347
        %v2356 = vtanh.pop %v2348
        %v2357 = vtanh.pop %v2349
        %v2358 = vtanh.pop %v2350
        %v2359 = vtanh.pop %v2351
        %v2360 = vadd.f32 %v2352, 1.0
        %v2361 = vadd.f32 %v2353, 1.0
        %v2362 = vadd.f32 %v2354, 1.0
        %v2363 = vadd.f32 %v2355, 1.0
        %v2364 = vadd.f32 %v2356, 1.0
        %v2365 = vadd.f32 %v2357, 1.0
        %v2366 = vadd.f32 %v2358, 1.0
        %v2367 = vadd.f32 %v2359, 1.0
        %v2368 = vmul.f32 %v2304, %v2360
        %v2369 = vmul.f32 %v2305, %v2361
        %v2370 = vmul.f32 %v2306, %v2362
        %v2371 = vmul.f32 %v2307, %v2363
        %v2372 = vmul.f32 %v2308, %v2364
        %v2373 = vmul.f32 %v2309, %v2365
        %v2374 = vmul.f32 %v2310, %v2366
        %v2375 = vmul.f32 %v2311, %v2367
        %v2376 = vpack.c.bf16 %v2372, %v2368
        %v2377 = vpack.c.bf16 %v2373, %v2369
        %v2378 = vpack.c.bf16 %v2374, %v2370
        %v2379 = vpack.c.bf16 %v2375, %v2371
        %v2380 = vld [vmem:[%s727] sm:$0xf]
        %v2381 = vld [vmem:[%s727 + $0x4] sm:$0xf]
        %v2382 = vld [vmem:[%s727 + $0x8] sm:$0xf]
        %v2383 = vld [vmem:[%s727 + $0xc] sm:$0xf]
        %v2384 = vld [vmem:[%s727 + $0x10] sm:$0xf]
        %v2385 = vld [vmem:[%s727 + $0x14] sm:$0xf]
        %v2386 = vld [vmem:[%s727 + $0x18] sm:$0xf]
        %v2387 = vld [vmem:[%s727 + $0x1c] sm:$0xf]
        %v2388 = vld [vmem:[%s727 + $0x20] sm:$0xf]
        %v2389 = vld [vmem:[%s727 + $0x24] sm:$0xf]
        %v2390 = vld [vmem:[%s727 + $0x28] sm:$0xf]
        %v2391 = vld [vmem:[%s727 + $0x2c] sm:$0xf]
        %v2392 = vld [vmem:[%s727 + $0x30] sm:$0xf]
        %v2393 = vld [vmem:[%s727 + $0x34] sm:$0xf]
        %v2394 = vld [vmem:[%s727 + $0x38] sm:$0xf]
        %v2395 = vld [vmem:[%s727 + $0x3c] sm:$0xf]
        %v2396 = vld [vmem:[%s727 + $0x40] sm:$0xf]
        %v2397 = vld [vmem:[%s727 + $0x44] sm:$0xf]
        %v2398 = vld [vmem:[%s727 + $0x48] sm:$0xf]
        %v2399 = vld [vmem:[%s727 + $0x4c] sm:$0xf]
        %v2400 = vld [vmem:[%s727 + $0x50] sm:$0xf]
        %v2401 = vld [vmem:[%s727 + $0x54] sm:$0xf]
        %v2402 = vld [vmem:[%s727 + $0x58] sm:$0xf]
        %v2403 = vld [vmem:[%s727 + $0x5c] sm:$0xf]
        %v2404 = vld [vmem:[%s727 + $0x60] sm:$0xf]
        %v2405 = vld [vmem:[%s727 + $0x64] sm:$0xf]
        %v2406 = vld [vmem:[%s727 + $0x68] sm:$0xf]
        %v2407 = vld [vmem:[%s727 + $0x6c] sm:$0xf]
        %v2408 = vld [vmem:[%s727 + $0x70] sm:$0xf]
        %v2409 = vld [vmem:[%s727 + $0x74] sm:$0xf]
        %v2410 = vld [vmem:[%s727 + $0x78] sm:$0xf]
        %v2411 = vld [vmem:[%s727 + $0x7c] sm:$0xf]
        %v2412 = vld [vmem:[%s727 + $0x80] sm:$0xf]
        %v2413 = vld [vmem:[%s727 + $0x84] sm:$0xf]
        %v2414 = vld [vmem:[%s727 + $0x88] sm:$0xf]
        %v2415 = vld [vmem:[%s727 + $0x8c] sm:$0xf]
        %v2416 = vld [vmem:[%s727 + $0x90] sm:$0xf]
        %v2417 = vld [vmem:[%s727 + $0x94] sm:$0xf]
        %v2418 = vld [vmem:[%s727 + $0x98] sm:$0xf]
        %v2419 = vld [vmem:[%s727 + $0x9c] sm:$0xf]
        %v2420 = vld [vmem:[%s727 + $0xa0] sm:$0xf]
        %v2421 = vld [vmem:[%s727 + $0xa4] sm:$0xf]
        %v2422 = vld [vmem:[%s727 + $0xa8] sm:$0xf]
        %v2423 = vld [vmem:[%s727 + $0xac] sm:$0xf]
        %v2424 = vld [vmem:[%s727 + $0xb0] sm:$0xf]
        %v2425 = vld [vmem:[%s727 + $0xb4] sm:$0xf]
        %v2426 = vld [vmem:[%s727 + $0xb8] sm:$0xf]
        %v2427 = vld [vmem:[%s727 + $0xbc] sm:$0xf]
        %v2428 = vld [vmem:[%s727 + $0xc0] sm:$0xf]
        %v2429 = vld [vmem:[%s727 + $0xc4] sm:$0xf]
        %v2430 = vld [vmem:[%s727 + $0xc8] sm:$0xf]
        %v2431 = vld [vmem:[%s727 + $0xcc] sm:$0xf]
        %v2432 = vld [vmem:[%s727 + $0xd0] sm:$0xf]
        %v2433 = vld [vmem:[%s727 + $0xd4] sm:$0xf]
        %v2434 = vld [vmem:[%s727 + $0xd8] sm:$0xf]
        %v2435 = vld [vmem:[%s727 + $0xdc] sm:$0xf]
        %v2436 = vld [vmem:[%s727 + $0xe0] sm:$0xf]
        %v2437 = vld [vmem:[%s727 + $0xe4] sm:$0xf]
        %v2438 = vld [vmem:[%s727 + $0xe8] sm:$0xf]
        %v2439 = vld [vmem:[%s727 + $0xec] sm:$0xf]
        %v2440 = vld [vmem:[%s727 + $0xf0] sm:$0xf]
        %v2441 = vld [vmem:[%s727 + $0xf4] sm:$0xf]
        %v2442 = vld [vmem:[%s727 + $0xf8] sm:$0xf]
        %v2443 = vld [vmem:[%s727 + $0xfc] sm:$0xf]
        %v2444 = vld [vmem:[%s844] sm:$0x1]
        %v2446 = vlaneseq
        %v2447 = vshrl.u32 %v2446, 7
        %v2448 = vsub.s32 0, %v2447
        %v2449 = vrot.slane %v2444, %v2448
        %v2515 = vunpack.c.l.b16 %v2380
        %v2516 = vunpack.c.l.b16 %v2381
        %v2517 = vunpack.c.l.b16 %v2382
        %v2518 = vunpack.c.l.b16 %v2383
        %v2519 = vunpack.c.l.b16 %v2384
        %v2520 = vunpack.c.l.b16 %v2385
        %v2521 = vunpack.c.l.b16 %v2386
        %v2522 = vunpack.c.l.b16 %v2387
        %v2523 = vunpack.c.l.b16 %v2388
        %v2524 = vunpack.c.l.b16 %v2389
        %v2525 = vunpack.c.l.b16 %v2390
        %v2526 = vunpack.c.l.b16 %v2391
        %v2527 = vunpack.c.l.b16 %v2392
        %v2528 = vunpack.c.l.b16 %v2393
        %v2529 = vunpack.c.l.b16 %v2394
        %v2530 = vunpack.c.l.b16 %v2395
        %v2531 = vunpack.c.l.b16 %v2396
        %v2532 = vunpack.c.l.b16 %v2397
        %v2533 = vunpack.c.l.b16 %v2398
        %v2534 = vunpack.c.l.b16 %v2399
        %v2535 = vunpack.c.l.b16 %v2400
        %v2536 = vunpack.c.l.b16 %v2401
        %v2537 = vunpack.c.l.b16 %v2402
        %v2538 = vunpack.c.l.b16 %v2403
        %v2539 = vunpack.c.l.b16 %v2404
        %v2540 = vunpack.c.l.b16 %v2405
        %v2541 = vunpack.c.l.b16 %v2406
        %v2542 = vunpack.c.l.b16 %v2407
        %v2543 = vunpack.c.l.b16 %v2408
        %v2544 = vunpack.c.l.b16 %v2409
        %v2545 = vunpack.c.l.b16 %v2410
        %v2546 = vunpack.c.l.b16 %v2411
        %v2547 = vunpack.c.l.b16 %v2412
        %v2548 = vunpack.c.l.b16 %v2413
        %v2549 = vunpack.c.l.b16 %v2414
        %v2550 = vunpack.c.l.b16 %v2415
        %v2551 = vunpack.c.l.b16 %v2416
        %v2552 = vunpack.c.l.b16 %v2417
        %v2553 = vunpack.c.l.b16 %v2418
        %v2554 = vunpack.c.l.b16 %v2419
        %v2555 = vunpack.c.l.b16 %v2420
        %v2556 = vunpack.c.l.b16 %v2421
        %v2557 = vunpack.c.l.b16 %v2422
        %v2558 = vunpack.c.l.b16 %v2423
        %v2559 = vunpack.c.l.b16 %v2424
        %v2560 = vunpack.c.l.b16 %v2425
        %v2561 = vunpack.c.l.b16 %v2426
        %v2562 = vunpack.c.l.b16 %v2427
        %v2563 = vunpack.c.l.b16 %v2428
        %v2564 = vunpack.c.l.b16 %v2429
        %v2565 = vunpack.c.l.b16 %v2430
        %v2566 = vunpack.c.l.b16 %v2431
        %v2567 = vunpack.c.l.b16 %v2432
        %v2568 = vunpack.c.l.b16 %v2433
        %v2569 = vunpack.c.l.b16 %v2434
        %v2570 = vunpack.c.l.b16 %v2435
        %v2571 = vunpack.c.l.b16 %v2436
        %v2572 = vunpack.c.l.b16 %v2437
        %v2573 = vunpack.c.l.b16 %v2438
        %v2574 = vunpack.c.l.b16 %v2439
        %v2575 = vunpack.c.l.b16 %v2440
        %v2576 = vunpack.c.l.b16 %v2441
        %v2577 = vunpack.c.l.b16 %v2442
        %v2578 = vunpack.c.l.b16 %v2443
        %v2579 = vpack.c.b16 %v2516, %v2515
        %v2580 = vpack.c.b16 %v2518, %v2517
        %v2581 = vpack.c.b16 %v2520, %v2519
        %v2582 = vpack.c.b16 %v2522, %v2521
        %v2583 = vpack.c.b16 %v2524, %v2523
        %v2584 = vpack.c.b16 %v2526, %v2525
        %v2585 = vpack.c.b16 %v2528, %v2527
        %v2586 = vpack.c.b16 %v2530, %v2529
        %v2587 = vpack.c.b16 %v2532, %v2531
        %v2588 = vpack.c.b16 %v2534, %v2533
        %v2589 = vpack.c.b16 %v2536, %v2535
        %v2590 = vpack.c.b16 %v2538, %v2537
        %v2591 = vpack.c.b16 %v2540, %v2539
        %v2592 = vpack.c.b16 %v2542, %v2541
        %v2593 = vpack.c.b16 %v2544, %v2543
        %v2594 = vpack.c.b16 %v2546, %v2545
        %v2595 = vpack.c.b16 %v2548, %v2547
        %v2596 = vpack.c.b16 %v2550, %v2549
        %v2597 = vpack.c.b16 %v2552, %v2551
        %v2598 = vpack.c.b16 %v2554, %v2553
        %v2599 = vpack.c.b16 %v2556, %v2555
        %v2600 = vpack.c.b16 %v2558, %v2557
        %v2601 = vpack.c.b16 %v2560, %v2559
        %v2602 = vpack.c.b16 %v2562, %v2561
        %v2603 = vpack.c.b16 %v2564, %v2563
        %v2604 = vpack.c.b16 %v2566, %v2565
        %v2605 = vpack.c.b16 %v2568, %v2567
        %v2606 = vpack.c.b16 %v2570, %v2569
        %v2607 = vpack.c.b16 %v2572, %v2571
        %v2608 = vpack.c.b16 %v2574, %v2573
        %v2609 = vpack.c.b16 %v2576, %v2575
        %v2610 = vpack.c.b16 %v2578, %v2577
        %2643 = vmatprep.subr.bf16.mxu0 0
        %2644 = vmatpush1.bf16.msra.mxu0 %v2586
        %2645 = vmatprep.subr.bf16.mxu0 0
        %2646 = vmatpush1.bf16.msra.mxu0 %v2585
        %2647 = vmatprep.subr.bf16.mxu0 0
        %2648 = vmatpush1.bf16.msra.mxu0 %v2584
        %2649 = vmatprep.subr.bf16.mxu0 0
        %2650 = vmatpush1.bf16.msra.mxu0 %v2583
        %2651 = vmatprep.subr.bf16.mxu0 0
        %2652 = vmatpush1.bf16.msra.mxu0 %v2582
        %2653 = vmatprep.subr.bf16.mxu0 0
        %2654 = vmatpush1.bf16.msra.mxu0 %v2581
        %2655 = vmatprep.subr.bf16.mxu0 0
        %2656 = vmatpush1.bf16.msra.mxu0 %v2580
        %2657 = vmatprep.subr.bf16.mxu0 0
        %2658 = vmatpush1.bf16.msra.mxu0 %v2579
        %2659 = vmatprep.subr.bf16.mxu0 0
        %2660 = vmatpush2.bf16.msra.mxu0 %v2594
        %2661 = vmatprep.subr.bf16.mxu0 0
        %2662 = vmatpush2.bf16.msra.mxu0 %v2593
        %2663 = vmatprep.subr.bf16.mxu0 0
        %2664 = vmatpush2.bf16.msra.mxu0 %v2592
        %2665 = vmatprep.subr.bf16.mxu0 0
        %2666 = vmatpush2.bf16.msra.mxu0 %v2591
        %2667 = vmatprep.subr.bf16.mxu0 0
        %2668 = vmatpush2.bf16.msra.mxu0 %v2590
        %2669 = vmatprep.subr.bf16.mxu0 0
        %2670 = vmatpush2.bf16.msra.mxu0 %v2589
        %2671 = vmatprep.subr.bf16.mxu0 0
        %2672 = vmatpush2.bf16.msra.mxu0 %v2588
        %2673 = vmatprep.subr.bf16.mxu0 0
        %2674 = vmatpush2.bf16.msra.mxu0 %v2587
        %2675 = vmatprep.mubr.bf16.mxu0 %v2377
        %2676 = vmatmul.mubr.bf16.gmra.mxu0 %v2376
        %v2677 = vpop.f32.mrf.mxu0
        %v2678 = vadd.f32 %v2449, %v2677
        %v2679 = vpop.f32.mrf.mxu0
        %v2680 = vpop.f32.mrf.mxu0
        %v2681 = vadd.f32 %v2449, %v2680
        %v2682 = vpop.f32.mrf.mxu0
        %2683 = vdwg.mxu0
        %2684 = vmatprep.subr.bf16.mxu0 0
        %2685 = vmatpush1.bf16.msra.mxu0 %v2602
        %2686 = vmatprep.subr.bf16.mxu0 0
        %2687 = vmatpush1.bf16.msra.mxu0 %v2601
        %2688 = vmatprep.subr.bf16.mxu0 0
        %2689 = vmatpush1.bf16.msra.mxu0 %v2600
        %2690 = vmatprep.subr.bf16.mxu0 0
        %2691 = vmatpush1.bf16.msra.mxu0 %v2599
        %2692 = vmatprep.subr.bf16.mxu0 0
        %2693 = vmatpush1.bf16.msra.mxu0 %v2598
        %2694 = vmatprep.subr.bf16.mxu0 0
        %2695 = vmatpush1.bf16.msra.mxu0 %v2597
        %2696 = vmatprep.subr.bf16.mxu0 0
        %2697 = vmatpush1.bf16.msra.mxu0 %v2596
        %2698 = vmatprep.subr.bf16.mxu0 0
        %2699 = vmatpush1.bf16.msra.mxu0 %v2595
        %2700 = vmatprep.subr.bf16.mxu0 0
        %2701 = vmatpush2.bf16.msra.mxu0 %v2610
        %2702 = vmatprep.subr.bf16.mxu0 0
        %2703 = vmatpush2.bf16.msra.mxu0 %v2609
        %2704 = vmatprep.subr.bf16.mxu0 0
        %2705 = vmatpush2.bf16.msra.mxu0 %v2608
        %2706 = vmatprep.subr.bf16.mxu0 0
        %2707 = vmatpush2.bf16.msra.mxu0 %v2607
        %2708 = vmatprep.subr.bf16.mxu0 0
        %2709 = vmatpush2.bf16.msra.mxu0 %v2606
        %2710 = vmatprep.subr.bf16.mxu0 0
        %2711 = vmatpush2.bf16.msra.mxu0 %v2605
        %2712 = vmatprep.subr.bf16.mxu0 0
        %2713 = vmatpush2.bf16.msra.mxu0 %v2604
        %2714 = vmatprep.subr.bf16.mxu0 0
        %2715 = vmatpush2.bf16.msra.mxu0 %v2603
        %2716 = vmatprep.mubr.bf16.mxu0 %v2379
        %2717 = vmatmul.mubr.bf16.gmra.mxu0 %v2378
        %v2718 = vpop.f32.mrf.mxu0
        %v2719 = vadd.f32 %v2678, %v2718
        %v2720 = vpop.f32.mrf.mxu0
        %v2721 = vpop.f32.mrf.mxu0
        %v2722 = vadd.f32 %v2681, %v2721
        %v2723 = vpop.f32.mrf.mxu0
        %2724 = vdwg.mxu0
        %v2725 = vadd.f32 %v2719, %v2001
        %v2726 = vadd.f32 %v2722, %v2002
        %v2727 = vld [vmem:[%s847] sm:$0x1]
        %v2728 = vld [vmem:[%s850] sm:$0x1]
        %2729 = vadd.xlane.f32.xlu0 %v2725
        %v2730 = vpop.xlane.xlu0 %2729
        %2731 = vadd.xlane.f32.xlu0 %v2726
        %v2732 = vpop.xlane.xlu0 %2731
        %v2733 = vmul.f32 %v2730, %v1968
        %v2734 = vmul.f32 %v2732, %v1968
        %v2735 = vsub.f32 %v2725, %v2733
        %v2736 = vsub.f32 %v2726, %v2734
        %v2737 = vmul.f32 %v2735, %v2735
        %v2738 = vmul.f32 %v2736, %v2736
        %2739 = vadd.xlane.f32.xlu0 %v2737
        %v2740 = vpop.xlane.xlu0 %2739
        %2741 = vadd.xlane.f32.xlu0 %v2738
        %v2742 = vpop.xlane.xlu0 %2741
        %v2743 = vmul.f32 %v2740, %v1968
        %v2744 = vmul.f32 %v2742, %v1968
        %v2745 = vadd.f32 %v2743, 1e-12
        %v2746 = vadd.f32 %v2744, 1e-12
        %v2747 = vrsqrt.pop %v2745
        %v2748 = vrsqrt.pop %v2746
        %v2749 = vmul.f32 %v2735, %v2747
        %v2750 = vmul.f32 %v2736, %v2748
        %v2752 = vlaneseq
        %v2753 = vshrl.u32 %v2752, 7
        %v2754 = vsub.s32 0, %v2753
        %v2755 = vrot.slane %v2727, %v2754
        %v2757 = vmul.f32 %v2749, %v2755
        %v2758 = vmul.f32 %v2750, %v2755
        %v2760 = vlaneseq
        %v2761 = vshrl.u32 %v2760, 7
        %v2762 = vsub.s32 0, %v2761
        %v2763 = vrot.slane %v2728, %v2762
        %v2765 = vadd.f32 %v2757, %v2763
        %v2766 = vadd.f32 %v2758, %v2763
        %2767 = vst [vmem:[#allocation2] sm:$0xff] %v2765
        %2768 = vst [vmem:[#allocation2 + $0x8] sm:$0xff] %v2766
        %p2769 = scmp.eq.s32.totalorder %s38, 1
        // Predicated region
        $region117: #{bert_class_forward.1} parent=99 // pred_check
          %p2770 = pneg %p2769
        $region118: #{bert_class_forward.1} parent=99 // pred_check_branch
          %2772 = sbr.rel (%p2770) target = $region120
        $region119: #{bert_class_forward.1} parent=99 // pred_region
          %v2774 = vrot.slane %v2766, 7
          %vm2776 = vcmask 1040384
          %v2777 = vsel %vm2776, %v2765, %v2774
          %v2778 = vpack.c.bf16 %v2777, %v2777
          %v2779 = vld [vmem:[%s16] sm:$0xf]
          %v2780 = vld [vmem:[%s16 + $0x4] sm:$0xf]
          %v2781 = vld [vmem:[%s16 + $0x8] sm:$0xf]
          %v2782 = vld [vmem:[%s16 + $0xc] sm:$0xf]
          %v2783 = vld [vmem:[%s16 + $0x10] sm:$0xf]
          %v2784 = vld [vmem:[%s16 + $0x14] sm:$0xf]
          %v2785 = vld [vmem:[%s16 + $0x18] sm:$0xf]
          %v2786 = vld [vmem:[%s16 + $0x1c] sm:$0xf]
          %v2787 = vld [vmem:[%s16 + $0x20] sm:$0xf]
          %v2788 = vld [vmem:[%s16 + $0x24] sm:$0xf]
          %v2789 = vld [vmem:[%s16 + $0x28] sm:$0xf]
          %v2790 = vld [vmem:[%s16 + $0x2c] sm:$0xf]
          %v2791 = vld [vmem:[%s16 + $0x30] sm:$0xf]
          %v2792 = vld [vmem:[%s16 + $0x34] sm:$0xf]
          %v2793 = vld [vmem:[%s16 + $0x38] sm:$0xf]
          %v2794 = vld [vmem:[%s16 + $0x3c] sm:$0xf]
          %v2795 = vld [vmem:[%s17] sm:$0x1]
          %v2797 = vlaneseq
          %v2798 = vshrl.u32 %v2797, 7
          %v2799 = vsub.s32 0, %v2798
          %v2800 = vrot.slane %v2795, %v2799
          %v2818 = vunpack.c.l.b16 %v2779
          %v2819 = vunpack.c.l.b16 %v2780
          %v2820 = vunpack.c.l.b16 %v2781
          %v2821 = vunpack.c.l.b16 %v2782
          %v2822 = vunpack.c.l.b16 %v2783
          %v2823 = vunpack.c.l.b16 %v2784
          %v2824 = vunpack.c.l.b16 %v2785
          %v2825 = vunpack.c.l.b16 %v2786
          %v2826 = vunpack.c.l.b16 %v2787
          %v2827 = vunpack.c.l.b16 %v2788
          %v2828 = vunpack.c.l.b16 %v2789
          %v2829 = vunpack.c.l.b16 %v2790
          %v2830 = vunpack.c.l.b16 %v2791
          %v2831 = vunpack.c.l.b16 %v2792
          %v2832 = vunpack.c.l.b16 %v2793
          %v2833 = vunpack.c.l.b16 %v2794
          %v2834 = vpack.c.b16 %v2819, %v2818
          %v2835 = vpack.c.b16 %v2821, %v2820
          %v2836 = vpack.c.b16 %v2823, %v2822
          %v2837 = vpack.c.b16 %v2825, %v2824
          %v2838 = vpack.c.b16 %v2827, %v2826
          %v2839 = vpack.c.b16 %v2829, %v2828
          %v2840 = vpack.c.b16 %v2831, %v2830
          %v2841 = vpack.c.b16 %v2833, %v2832
          %2850 = vmatprep.subr.bf16.mxu0 0
          %2851 = vmatpush1.bf16.msra.mxu0 %v2841
          %2852 = vmatprep.subr.bf16.mxu0 0
          %2853 = vmatpush1.bf16.msra.mxu0 %v2840
          %2854 = vmatprep.subr.bf16.mxu0 0
          %2855 = vmatpush1.bf16.msra.mxu0 %v2839
          %2856 = vmatprep.subr.bf16.mxu0 0
          %2857 = vmatpush1.bf16.msra.mxu0 %v2838
          %2858 = vmatprep.subr.bf16.mxu0 0
          %2859 = vmatpush1.bf16.msra.mxu0 %v2837
          %2860 = vmatprep.subr.bf16.mxu0 0
          %2861 = vmatpush1.bf16.msra.mxu0 %v2836
          %2862 = vmatprep.subr.bf16.mxu0 0
          %2863 = vmatpush1.bf16.msra.mxu0 %v2835
          %2864 = vmatprep.subr.bf16.mxu0 0
          %2865 = vmatpush1.bf16.msra.mxu0 %v2834
          %2866 = vmatprep.subr.bf16.mxu0 0
          %2867 = vmatpush2.bf16.msra.mxu0 0
          %2868 = vmatprep.subr.bf16.mxu0 0
          %2869 = vmatpush2.bf16.msra.mxu0 0
          %2870 = vmatprep.subr.bf16.mxu0 0
          %2871 = vmatpush2.bf16.msra.mxu0 0
          %2872 = vmatprep.subr.bf16.mxu0 0
          %2873 = vmatpush2.bf16.msra.mxu0 0
          %2874 = vmatprep.subr.bf16.mxu0 0
          %2875 = vmatpush2.bf16.msra.mxu0 0
          %2876 = vmatprep.subr.bf16.mxu0 0
          %2877 = vmatpush2.bf16.msra.mxu0 0
          %2878 = vmatprep.subr.bf16.mxu0 0
          %2879 = vmatpush2.bf16.msra.mxu0 0
          %2880 = vmatprep.subr.bf16.mxu0 0
          %2881 = vmatpush2.bf16.msra.mxu0 0
          %2882 = vmatprep.mubr.bf16.mxu0 0
          %2883 = vmatmul.mubr.bf16.gmra.mxu0 %v2778
          %v2884 = vpop.f32.mrf.mxu0
          %v2885 = vadd.f32 %v2800, %v2884
          %v2886 = vpop.f32.mrf.mxu0
          %v2887 = vpop.f32.mrf.mxu0
          %v2888 = vpop.f32.mrf.mxu0
          %2889 = vdwg.mxu0
          %v2890 = vtanh.pop %v2885
          %v2891 = vpack.c.bf16 %v2890, %v2890
          %v2892 = vld [vmem:[%s18] sm:$0xf]
          %v2893 = vld [vmem:[%s18 + $0x4] sm:$0xf]
          %v2894 = vld [vmem:[%s18 + $0x8] sm:$0xf]
          %v2895 = vld [vmem:[%s18 + $0xc] sm:$0xf]
          %v2896 = vld [vmem:[%s18 + $0x10] sm:$0xf]
          %v2897 = vld [vmem:[%s18 + $0x14] sm:$0xf]
          %v2898 = vld [vmem:[%s18 + $0x18] sm:$0xf]
          %v2899 = vld [vmem:[%s18 + $0x1c] sm:$0xf]
          %v2900 = vld [vmem:[%s18 + $0x20] sm:$0xf]
          %v2901 = vld [vmem:[%s18 + $0x24] sm:$0xf]
          %v2902 = vld [vmem:[%s18 + $0x28] sm:$0xf]
          %v2903 = vld [vmem:[%s18 + $0x2c] sm:$0xf]
          %v2904 = vld [vmem:[%s18 + $0x30] sm:$0xf]
          %v2905 = vld [vmem:[%s18 + $0x34] sm:$0xf]
          %v2906 = vld [vmem:[%s18 + $0x38] sm:$0xf]
          %v2907 = vld [vmem:[%s18 + $0x3c] sm:$0xf]
          %v2908 = vld [vmem:[%s19] sm:$0x1]
          %v2910 = vlaneseq
          %v2911 = vshrl.u32 %v2910, 7
          %v2912 = vsub.s32 0, %v2911
          %v2913 = vrot.slane %v2908, %v2912
          %v2931 = vunpack.c.l.b16 %v2892
          %v2932 = vunpack.c.l.b16 %v2893
          %v2933 = vunpack.c.l.b16 %v2894
          %v2934 = vunpack.c.l.b16 %v2895
          %v2935 = vunpack.c.l.b16 %v2896
          %v2936 = vunpack.c.l.b16 %v2897
          %v2937 = vunpack.c.l.b16 %v2898
          %v2938 = vunpack.c.l.b16 %v2899
          %v2939 = vunpack.c.l.b16 %v2900
          %v2940 = vunpack.c.l.b16 %v2901
          %v2941 = vunpack.c.l.b16 %v2902
          %v2942 = vunpack.c.l.b16 %v2903
          %v2943 = vunpack.c.l.b16 %v2904
          %v2944 = vunpack.c.l.b16 %v2905
          %v2945 = vunpack.c.l.b16 %v2906
          %v2946 = vunpack.c.l.b16 %v2907
          %v2947 = vpack.c.b16 %v2932, %v2931
          %v2948 = vpack.c.b16 %v2934, %v2933
          %v2949 = vpack.c.b16 %v2936, %v2935
          %v2950 = vpack.c.b16 %v2938, %v2937
          %v2951 = vpack.c.b16 %v2940, %v2939
          %v2952 = vpack.c.b16 %v2942, %v2941
          %v2953 = vpack.c.b16 %v2944, %v2943
          %v2954 = vpack.c.b16 %v2946, %v2945
          %2963 = vmatprep.subr.bf16.mxu0 0
          %2964 = vmatpush1.bf16.msra.mxu0 %v2954
          %2965 = vmatprep.subr.bf16.mxu0 0
          %2966 = vmatpush1.bf16.msra.mxu0 %v2953
          %2967 = vmatprep.subr.bf16.mxu0 0
          %2968 = vmatpush1.bf16.msra.mxu0 %v2952
          %2969 = vmatprep.subr.bf16.mxu0 0
          %2970 = vmatpush1.bf16.msra.mxu0 %v2951
          %2971 = vmatprep.subr.bf16.mxu0 0
          %2972 = vmatpush1.bf16.msra.mxu0 %v2950
          %2973 = vmatprep.subr.bf16.mxu0 0
          %2974 = vmatpush1.bf16.msra.mxu0 %v2949
          %2975 = vmatprep.subr.bf16.mxu0 0
          %2976 = vmatpush1.bf16.msra.mxu0 %v2948
          %2977 = vmatprep.subr.bf16.mxu0 0
          %2978 = vmatpush1.bf16.msra.mxu0 %v2947
          %2979 = vmatprep.subr.bf16.mxu0 0
          %2980 = vmatpush2.bf16.msra.mxu0 0
          %2981 = vmatprep.subr.bf16.mxu0 0
          %2982 = vmatpush2.bf16.msra.mxu0 0
          %2983 = vmatprep.subr.bf16.mxu0 0
          %2984 = vmatpush2.bf16.msra.mxu0 0
          %2985 = vmatprep.subr.bf16.mxu0 0
          %2986 = vmatpush2.bf16.msra.mxu0 0
          %2987 = vmatprep.subr.bf16.mxu0 0
          %2988 = vmatpush2.bf16.msra.mxu0 0
          %2989 = vmatprep.subr.bf16.mxu0 0
          %2990 = vmatpush2.bf16.msra.mxu0 0
          %2991 = vmatprep.subr.bf16.mxu0 0
          %2992 = vmatpush2.bf16.msra.mxu0 0
          %2993 = vmatprep.subr.bf16.mxu0 0
          %2994 = vmatpush2.bf16.msra.mxu0 0
          %2995 = vmatprep.mubr.bf16.mxu0 0
          %2996 = vmatmul.mubr.bf16.gmra.mxu0 %v2891
          %v2997 = vpop.f32.mrf.mxu0
          %v2998 = vadd.f32 %v2913, %v2997
          %v2999 = vpop.f32.mrf.mxu0
          %v3000 = vpop.f32.mrf.mxu0
          %v3001 = vpop.f32.mrf.mxu0
          %3002 = vdwg.mxu0
          %3003 = vst [vmem:[#allocation9] sm:$0x3] %v2998
        $region120: #{bert_class_forward.1} parent=99 // pred_fallthru
          _
        // Predicated region
        $region121: #{bert_class_forward.1} parent=99 // pred_check
          %p3004 = pneg %p531
        $region122: #{bert_class_forward.1} parent=99 // pred_check_branch
          %3006 = sbr.rel (%p3004) target = $region124
        $region123: #{bert_class_forward.1} parent=99 // pred_region
          %s3008 = ssub.s32 32, 32
          %3009 = vsyncadd [#allocation5], %s3008
          %s3011 = sshll.u32 [#allocation9], 4
          %s3012 = int_to_ptr.vmem [resolvable:$true] %s3011
          %3014 = dma.vmem_to_hbm [thread:$0]  %s3012, 32, %s20, [#allocation5]
        $region124: #{bert_class_forward.1} parent=99 // pred_fallthru
          _
        // Predicated region
        $region125: #{bert_class_forward.1} parent=99 // pred_check
          %p3015 = pneg %p531
        $region126: #{bert_class_forward.1} parent=99 // pred_check_branch
          %3017 = sbr.rel (%p3015) target = $region128
        $region127: #{bert_class_forward.1} parent=99 // pred_region
          %3018 = dma.done [#allocation5], 32
        $region128: #{bert_class_forward.1} parent=99 // pred_fallthru
          _
      $region100: #{bert_class_forward.1} parent=5 // pred_fallthru
        _
      %p3019 = scmp.le.s32.totalorder 2, %s33
      // Predicated region
      $region129: #{bert_class_forward.1} parent=5 // pred_check
        %p3020 = pneg %p3019
      $region130: #{bert_class_forward.1} parent=5 // pred_check_branch
        %3022 = sbr.rel (%p3020) target = $region132
      $region131: #{bert_class_forward.1} parent=5 // pred_region
        %s3023 = ssub.s32 %s33, 2
      $region132: #{bert_class_forward.1} parent=5 // pred_fallthru
        _
    $region6: #{bert_class_forward.1} parent=1 // loop_footer
      %s37 = sadd.s32 1, %s33
    $region7: #{bert_class_forward.1} parent=1 // loop_footer_branch
      %32 = sbr.rel target = $region3
    $region8: #{bert_class_forward.1} parent=1 // loop_exit
      _
    %3024 = vsyncpa [#allocation4], 1
    %s3025 = scalar_lea.sflag [#allocation4], 1
    %3026 = vsyncpa %s3025, 1
    %3027 = vsyncpa [#allocation7], 1
    %s3028 = scalar_lea.sflag [#allocation7], 1
    %3029 = vsyncpa %s3028, 1
    %3030 = vsyncpa [#allocation5], 1
    %s3031 = scalar_lea.sflag [#allocation5], 1
    %3032 = vsyncpa %s3031, 1

</llo_original>
